<compile_context>
chip_gen: v7x
topology: tpu7x:2x2x1
jax: 0.10.0
libtpu: 0.0.40
codegen_flags: <defaults>
</compile_context>

<pallas_src>
import math

import jax
import jax.numpy as jnp
import numpy as np
from jax.experimental import pallas as pl
from jax.experimental.pallas import tpu as pltpu

L_FREQ = 4                        # multires frequencies for Hann-windowed PE
PE_DIM = 3 + 6 * L_FREQ           # identity + sin/cos per frequency -> 27
TRIG_DIM = 2 * 3 * L_FREQ         # 24 trig rows: [sin f0..f3 (3 each); cos f0..f3]
COND_DIM = 32                     # pose_encoder.n_output_dims
HIDDEN = 64                       # cfg.mlp hidden width
OUT_DIM = 10                      # 3 xyz + 3 scale + 4 rot (packed feature-major)
TILE_N = 8192                     # points (lanes) per grid step; multiple of 128


def _make_kernel(with_loss):
    def kernel(pts_ref, fs_ref, fo_ref, w1x_ref, w1t_ref, b1_ref,
               w2_ref, b2_ref, w3_ref, b3_ref, out_ref, *loss_refs):
        pts = pts_ref[...]                                   # (10, T) f32, feature-major
        xyz = pts[0:3, :]                                    # (3, T)

        # Hann-windowed PE: all sin/cos arguments as ONE (24, T) operand.
        # cos(x) == sin(x + pi/2); the aabb affine and 2^l*pi are folded into fs/fo.
        rep = jnp.concatenate([xyz] * (2 * L_FREQ), axis=0)  # (24, T) sublane replicate
        trig = jnp.sin(rep * fs_ref[...] + fo_ref[...])      # (24, T) f32, single EUP stream

        # layer 1: identity dot (K=3) + trig dot (K=24); window/aabb/cond folded host-side.
        # Operands cast to bf16 only at the dot boundary (f32 accumulation).
        h = jnp.dot(w1x_ref[...], xyz.astype(jnp.bfloat16),
                    preferred_element_type=jnp.float32)
        h = h + jnp.dot(w1t_ref[...], trig.astype(jnp.bfloat16),
                        preferred_element_type=jnp.float32)
        h = jnp.maximum(h + b1_ref[...], 0.0)                              # (64, T)

        # layer 2
        h = jnp.dot(w2_ref[...], h.astype(jnp.bfloat16),
                    preferred_element_type=jnp.float32) + b2_ref[...]
        h = jnp.maximum(h, 0.0)

        # fused head (xyz/scale/rot), kick-in gate baked into w3/b3 host-side
        d = jnp.dot(w3_ref[...], h.astype(jnp.bfloat16),
                    preferred_element_type=jnp.float32) + b3_ref[...]      # (10, T)

        # apply offsets (scale_offset='logit', rot_offset='add'): packed add, lane-dense store
        out_ref[...] = pts + d

        if with_loss:
            loss_ref, = loss_refs
            d_xyz = d[0:3, :]
            s_xyz = jnp.sum(jnp.sqrt(jnp.sum(d_xyz * d_xyz, axis=0, keepdims=True)),
                            axis=1, keepdims=True)                         # (1, 1)
            s_scl = jnp.sum(jnp.abs(d[3:6, :]), keepdims=True)             # (1, 1)
            s_rot = jnp.sum(jnp.abs(d[6:10, :]), keepdims=True)            # (1, 1)
            sub = jax.lax.broadcasted_iota(jnp.int32, (8, 128), 0)
            lane = jax.lax.broadcasted_iota(jnp.int32, (8, 128), 1)
            row0 = sub == 0
            loss_ref[...] = jnp.where(
                row0 & (lane == 0), s_xyz,
                jnp.where(row0 & (lane == 1), s_scl,
                          jnp.where(row0 & (lane == 2), s_rot, 0.0)))
    return kernel


def _hann_freq_weights(iteration, kick_in_iter, full_band_iter):
    """Per-frequency Hann window weights (identity part of the PE is un-windowed)."""
    if iteration < kick_in_iter:
        alpha = 0.0
    else:
        alpha = (iteration - kick_in_iter) / max(full_band_iter - kick_in_iter, 1) * L_FREQ
    return [0.5 * (1.0 - math.cos(math.pi * min(max(alpha - l, 0.0), 1.0)))
            for l in range(L_FREQ)]


def _choose_tile_n(N):
    """Largest lane-tile (multiple of 128) dividing N with >= 2 tiles; else one full tile."""
    t = min(TILE_N, (N // 2) // 128 * 128)
    while t >= 128:
        if N % t == 0:
            return t
        t -= 128
    return N


def init_params(key):
    ks = jax.random.split(key, 6)
    p = {}
    # TODO(synk): HierarchicalPoseEncoder's per-joint kinematic-tree encoder is not
    # provided in the reference; approximated by a 2-layer MLP with matching I/O dims.
    pose_in = 24 * 9 + 24 * 3
    p['pe_w1'] = 0.05 * jax.random.normal(ks[0], (pose_in, 64), jnp.float32)
    p['pe_b1'] = jnp.zeros((64,), jnp.float32)
    p['pe_w2'] = 0.05 * jax.random.normal(ks[1], (64, COND_DIM), jnp.float32)
    p['pe_b2'] = jnp.zeros((COND_DIM,), jnp.float32)
    # HannwCondMLP(3, cond_dim, 3+3+4): in = PE_DIM + COND_DIM, two hidden layers, out = 10
    p['w1p'] = 0.2 * jax.random.normal(ks[2], (PE_DIM, HIDDEN), jnp.float32)
    p['w1c'] = 0.2 * jax.random.normal(ks[3], (COND_DIM, HIDDEN), jnp.float32)
    p['b1'] = jnp.zeros((1, HIDDEN), jnp.float32)
    p['w2'] = 0.2 * jax.random.normal(ks[4], (HIDDEN, HIDDEN), jnp.float32)
    p['b2'] = jnp.zeros((1, HIDDEN), jnp.float32)
    p['w3'] = 0.05 * jax.random.normal(ks[5], (HIDDEN, OUT_DIM), jnp.float32)
    p['b3'] = jnp.zeros((1, OUT_DIM), jnp.float32)
    return p


def hannw_mlp_forward(params, xyz, scaling, rotation, rots, Jtrs,
                      aabb_min, aabb_max, iteration,
                      kick_in_iter=16, full_band_iter=256, compute_loss=True):
    N = xyz.shape[0]
    tile_n = _choose_tile_n(N)
    n_tiles = N // tile_n

    # --- glue: pose encoder (single pose vector) ---
    pose_in = jnp.concatenate([rots.reshape(1, -1), Jtrs.reshape(1, -1)], axis=-1)
    cond = jnp.tanh(pose_in @ params['pe_w1'] + params['pe_b1'])
    cond = (cond @ params['pe_w2'] + params['pe_b2']).astype(jnp.float32)   # (1, COND_DIM)

    # --- aabb.normalize(xyz, sym=True) as an affine x_norm = s*x + o; folded below ---
    s = (2.0 / (aabb_max - aabb_min)).astype(jnp.float32)                   # (3,)
    o = (-aabb_min * s - 1.0).astype(jnp.float32)                           # (3,)

    # --- per-trig-row scale/offset constants: sin(fs*x + fo); cos rows via +pi/2 ---
    freqs = [float(2.0 ** l) * math.pi for l in range(L_FREQ)]
    fs12 = jnp.concatenate([s * f for f in freqs], axis=0)                  # (12,)
    fo12 = jnp.concatenate([o * f for f in freqs], axis=0)                  # (12,)
    fs24 = jnp.concatenate([fs12, fs12], axis=0).reshape(TRIG_DIM, 1)
    fo24 = jnp.concatenate([fo12, fo12 + (math.pi / 2.0)], axis=0).reshape(TRIG_DIM, 1)

    # --- layer-1 weights, feature-major (HIDDEN, K); window / aabb / cond folded ---
    win = _hann_freq_weights(iteration, kick_in_iter, full_band_iter)
    w1p = params['w1p']                                                     # (27, HIDDEN)
    w1x_t = (w1p[0:3, :] * s[:, None]).T                                    # (HIDDEN, 3)
    rows = []
    for l in range(L_FREQ):                                                 # sin rows
        rows.append(w1p[3 + 6 * l: 3 + 6 * l + 3, :] * win[l])
    for l in range(L_FREQ):                                                 # cos rows
        rows.append(w1p[3 + 6 * l + 3: 3 + 6 * l + 6, :] * win[l])
    w1t_t = jnp.concatenate(rows, axis=0).T                                 # (HIDDEN, 24)
    b1_eff = (params['b1'] + cond @ params['w1c'] + o[None, :] @ w1p[0:3, :]).T  # (HIDDEN,1)

    w2_t = params['w2'].T                                                   # (HIDDEN, HIDDEN)
    b2_t = params['b2'].T                                                   # (HIDDEN, 1)
    gate = 0.0 if iteration < kick_in_iter else 1.0                         # kick-in gate
    w3_t = (params['w3'] * gate).T                                          # (10, HIDDEN)
    b3_t = (params['b3'] * gate).T                                          # (10, 1)

    # bf16 only at the matmul boundary; biases / trig constants stay f32.
    w1x_bf = w1x_t.astype(jnp.bfloat16)
    w1t_bf = w1t_t.astype(jnp.bfloat16)
    w2_bf = w2_t.astype(jnp.bfloat16)
    w3_bf = w3_t.astype(jnp.bfloat16)

    # --- pack per-point state feature-major: (10, N) = [xyz; scaling; rotation] ---
    pts = jnp.concatenate([xyz, scaling, rotation], axis=1).T

    def full(shape):
        return pl.BlockSpec(shape, lambda i: (0, 0))

    in_specs = [
        pl.BlockSpec((OUT_DIM, tile_n), lambda i: (0, i)),   # packed points (feature-major)
        full((TRIG_DIM, 1)), full((TRIG_DIM, 1)),            # trig scale / offset
        full((HIDDEN, 3)), full((HIDDEN, TRIG_DIM)),         # w1 identity / trig (bf16)
        full((HIDDEN, 1)),                                   # b1 (+cond folded)
        full((HIDDEN, HIDDEN)), full((HIDDEN, 1)),           # w2 (bf16), b2
        full((OUT_DIM, HIDDEN)), full((OUT_DIM, 1)),         # fused head w3 (bf16), b3
    ]
    out_specs = [pl.BlockSpec((OUT_DIM, tile_n), lambda i: (0, i))]
    out_shapes = [jax.ShapeDtypeStruct((OUT_DIM, N), jnp.float32)]
    if compute_loss:
        out_specs.append(pl.BlockSpec((8, 128), lambda i: (i, 0)))          # per-tile partials
        out_shapes.append(jax.ShapeDtypeStruct((n_tiles * 8, 128), jnp.float32))

    grid_spec = pltpu.PrefetchScalarGridSpec(
        num_scalar_prefetch=0,
        grid=(n_tiles,),
        in_specs=in_specs,
        out_specs=out_specs,
    )
    results = pl.pallas_call(
        _make_kernel(compute_loss),
        out_shape=tuple(out_shapes),
        grid_spec=grid_spec,
        compiler_params=pltpu.CompilerParams(dimension_semantics=("parallel",)),
    )(pts, fs24, fo24, w1x_bf, w1t_bf, b1_eff, w2_bf, b2_t, w3_bf, b3_t)

    out_fm = results[0]                                      # (10, N)
    new_xyz = out_fm[0:3, :].T
    new_scl = out_fm[3:6, :].T
    new_rot = out_fm[6:10, :].T
    if compute_loss:
        sums = results[1].reshape(n_tiles, 8, 128)[:, 0, 0:3].sum(axis=0)   # (3,)
        loss_reg = {
            'nr_xyz': sums[0] / N,
            'nr_scale': sums[1] / N,
            'nr_rot': sums[2] / N,
        }
    else:
        loss_reg = {}
    return (new_xyz, new_scl, new_rot), loss_reg


def _reference(params, xyz, scaling, rotation, rots, Jtrs, aabb_min, aabb_max,
               iteration, kick_in_iter=16, full_band_iter=256):
    N = xyz.shape[0]
    pose_in = jnp.concatenate([rots.reshape(1, -1), Jtrs.reshape(1, -1)], axis=-1)
    cond = jnp.tanh(pose_in @ params['pe_w1'] + params['pe_b1'])
    cond = cond @ params['pe_w2'] + params['pe_b2']
    xyz_norm = (xyz - aabb_min) / (aabb_max - aabb_min) * 2.0 - 1.0
    feats = [xyz_norm]
    for l in range(L_FREQ):
        f = float(2.0 ** l) * math.pi
        feats += [jnp.sin(f * xyz_norm), jnp.cos(f * xyz_norm)]
    wl = _hann_freq_weights(iteration, kick_in_iter, full_band_iter)
    win = [1.0, 1.0, 1.0]
    for l in range(L_FREQ):
        win += [wl[l]] * 6
    win = jnp.asarray(np.array(win, np.float32))
    pe = jnp.concatenate(feats, axis=-1) * win[None, :]
    inp = jnp.concatenate([pe, jnp.broadcast_to(cond, (N, COND_DIM))], axis=-1)
    W1 = jnp.concatenate([params['w1p'], params['w1c']], axis=0)
    h = jax.nn.relu(inp @ W1 + params['b1'])
    h = jax.nn.relu(h @ params['w2'] + params['b2'])
    deltas = h @ params['w3'] + params['b3']
    if iteration < kick_in_iter:
        deltas = deltas * 0.0
    d_xyz, d_scl, d_rot = deltas[:, :3], deltas[:, 3:6], deltas[:, 6:10]
    loss = {
        'nr_xyz': jnp.mean(jnp.linalg.norm(d_xyz, axis=1)),
        'nr_scale': jnp.mean(jnp.sum(jnp.abs(d_scl), axis=1)),
        'nr_rot': jnp.mean(jnp.sum(jnp.abs(d_rot), axis=1)),
    }
    return (xyz + d_xyz, scaling + d_scl, rotation + d_rot), loss


if __name__ == "__main__":
    key = jax.random.PRNGKey(0)
    kp, k1, k2, k3, k4, k5 = jax.random.split(key, 6)
    params = init_params(kp)

    N = 1024
    xyz = jax.random.uniform(k1, (N, 3), jnp.float32, -0.8, 0.8)
    scaling = 0.1 * jax.random.normal(k2, (N, 3), jnp.float32)
    rotation = jax.random.normal(k3, (N, 4), jnp.float32)
    rots = jax.random.normal(k4, (1, 24, 9), jnp.float32)      # camera.rots
    Jtrs = jax.random.normal(k5, (1, 24, 3), jnp.float32)      # camera.Jtrs
    aabb_min = jnp.array([-1.0, -1.2, -1.0], jnp.float32)
    aabb_max = jnp.array([1.0, 1.2, 1.0], jnp.float32)
    iteration = 120

    (nx, ns, nr), losses = hannw_mlp_forward(
        params, xyz, scaling, rotation, rots, Jtrs, aabb_min, aabb_max, iteration)
    jax.block_until_ready((nx, ns, nr, losses['nr_xyz'], losses['nr_scale'], losses['nr_rot']))

    # no-loss variant (compiles the slimmer kernel path)
    (nx2, _, _), empty = hannw_mlp_forward(
        params, xyz, scaling, rotation, rots, Jtrs, aabb_min, aabb_max, iteration,
        compute_loss=False)
    jax.block_until_ready(nx2)
    assert empty == {}

    (rx, rs, rr), rlosses = _reference(
        params, xyz, scaling, rotation, rots, Jtrs, aabb_min, aabb_max, iteration)
    np.testing.assert_allclose(np.asarray(nx), np.asarray(rx), rtol=5e-3, atol=5e-3)
    np.testing.assert_allclose(np.asarray(ns), np.asarray(rs), rtol=5e-3, atol=5e-3)
    np.testing.assert_allclose(np.asarray(nr), np.asarray(rr), rtol=5e-3, atol=5e-3)
    np.testing.assert_allclose(np.asarray(nx2), np.asarray(rx), rtol=5e-3, atol=5e-3)
    for k in ('nr_xyz', 'nr_scale', 'nr_rot'):
        np.testing.assert_allclose(float(losses[k]), float(rlosses[k]), rtol=5e-3, atol=5e-3)

    print("KERNEL_OK")
</pallas_src>

<mosaic_0001>
module attributes {stable_mosaic.version = 11 : i64} {
  func.func @kernel(%arg0: i32, %arg1: memref<10x512xf32, #tpu.memory_space<vmem>>, %arg2: memref<24x1xf32, #tpu.memory_space<vmem>>, %arg3: memref<24x1xf32, #tpu.memory_space<vmem>>, %arg4: memref<64x3xbf16, #tpu.memory_space<vmem>>, %arg5: memref<64x24xbf16, #tpu.memory_space<vmem>>, %arg6: memref<64x1xf32, #tpu.memory_space<vmem>>, %arg7: memref<64x64xbf16, #tpu.memory_space<vmem>>, %arg8: memref<64x1xf32, #tpu.memory_space<vmem>>, %arg9: memref<10x64xbf16, #tpu.memory_space<vmem>>, %arg10: memref<10x1xf32, #tpu.memory_space<vmem>>, %arg11: memref<10x512xf32, #tpu.memory_space<vmem>>, %arg12: memref<8x128xf32, #tpu.memory_space<vmem>>) attributes {dimension_semantics = [#tpu.dimension_semantics<parallel>], iteration_bounds = array<i64: 2>, scalar_prefetch = 0 : i64, scratch_operands = 0 : i64, tpu.core_type = #tpu.core_type<tc>, window_params = [{transform_indices = @transform_0, window_bounds = array<i64: 10, 512>}, {pipeline_mode = #tpu.pipeline_mode<synchronous>, transform_indices = @transform_1, window_bounds = array<i64: 24, 1>}, {pipeline_mode = #tpu.pipeline_mode<synchronous>, transform_indices = @transform_2, window_bounds = array<i64: 24, 1>}, {pipeline_mode = #tpu.pipeline_mode<synchronous>, transform_indices = @transform_3, window_bounds = array<i64: 64, 3>}, {pipeline_mode = #tpu.pipeline_mode<synchronous>, transform_indices = @transform_4, window_bounds = array<i64: 64, 24>}, {pipeline_mode = #tpu.pipeline_mode<synchronous>, transform_indices = @transform_5, window_bounds = array<i64: 64, 1>}, {pipeline_mode = #tpu.pipeline_mode<synchronous>, transform_indices = @transform_6, window_bounds = array<i64: 64, 64>}, {pipeline_mode = #tpu.pipeline_mode<synchronous>, transform_indices = @transform_7, window_bounds = array<i64: 64, 1>}, {pipeline_mode = #tpu.pipeline_mode<synchronous>, transform_indices = @transform_8, window_bounds = array<i64: 10, 64>}, {pipeline_mode = #tpu.pipeline_mode<synchronous>, transform_indices = @transform_9, window_bounds = array<i64: 10, 1>}, {transform_indices = @transform_10, window_bounds = array<i64: 10, 512>}, {transform_indices = @transform_11, window_bounds = array<i64: 8, 128>}]} {
    %c0 = arith.constant 0 : index
    %c0_0 = arith.constant 0 : index
    %0 = vector.load %arg1[%c0, %c0_0] : memref<10x512xf32, #tpu.memory_space<vmem>>, vector<10x512xf32>
    %1 = vector.extract_strided_slice %0 {offsets = [0, 0], sizes = [3, 512], strides = [1, 1]} : vector<10x512xf32> to vector<3x512xf32>
    %2 = tpu.concatenate %1, %1, %1, %1, %1, %1, %1, %1 in 0 : vector<3x512xf32>, vector<3x512xf32>, vector<3x512xf32>, vector<3x512xf32>, vector<3x512xf32>, vector<3x512xf32>, vector<3x512xf32>, vector<3x512xf32> -> vector<24x512xf32>
    %c0_1 = arith.constant 0 : index
    %c0_2 = arith.constant 0 : index
    %3 = vector.load %arg2[%c0_1, %c0_2] : memref<24x1xf32, #tpu.memory_space<vmem>>, vector<24x1xf32>
    %4 = vector.broadcast %3 : vector<24x1xf32> to vector<24x512xf32>
    %5 = arith.mulf %2, %4 : vector<24x512xf32>
    %c0_3 = arith.constant 0 : index
    %c0_4 = arith.constant 0 : index
    %6 = vector.load %arg3[%c0_3, %c0_4] : memref<24x1xf32, #tpu.memory_space<vmem>>, vector<24x1xf32>
    %7 = vector.broadcast %6 : vector<24x1xf32> to vector<24x512xf32>
    %8 = arith.addf %5, %7 : vector<24x512xf32>
    %9 = math.sin %8 : vector<24x512xf32>
    %c0_5 = arith.constant 0 : index
    %c0_6 = arith.constant 0 : index
    %10 = vector.load %arg4[%c0_5, %c0_6] : memref<64x3xbf16, #tpu.memory_space<vmem>>, vector<64x3xbf16>
    %11 = arith.truncf %1 : vector<3x512xf32> to vector<3x512xbf16>
    %cst = arith.constant dense<0.000000e+00> : vector<64x512xf32>
    %12 = tpu.matmul %10, %11, %cst {dimension_numbers = #tpu.dot_dimension_numbers<[1], [0], [0], [1], [0, 0, 1, 1], [], []>} : vector<64x3xbf16>, vector<3x512xbf16>, vector<64x512xf32> -> vector<64x512xf32>
    %c0_7 = arith.constant 0 : index
    %c0_8 = arith.constant 0 : index
    %13 = vector.load %arg5[%c0_7, %c0_8] : memref<64x24xbf16, #tpu.memory_space<vmem>>, vector<64x24xbf16>
    %14 = arith.truncf %9 : vector<24x512xf32> to vector<24x512xbf16>
    %cst_9 = arith.constant dense<0.000000e+00> : vector<64x512xf32>
    %15 = tpu.matmul %13, %14, %cst_9 {dimension_numbers = #tpu.dot_dimension_numbers<[1], [0], [0], [1], [0, 0, 1, 1], [], []>} : vector<64x24xbf16>, vector<24x512xbf16>, vector<64x512xf32> -> vector<64x512xf32>
    %16 = arith.addf %12, %15 : vector<64x512xf32>
    %c0_10 = arith.constant 0 : index
    %c0_11 = arith.constant 0 : index
    %17 = vector.load %arg6[%c0_10, %c0_11] : memref<64x1xf32, #tpu.memory_space<vmem>>, vector<64x1xf32>
    %18 = vector.broadcast %17 : vector<64x1xf32> to vector<64x512xf32>
    %19 = arith.addf %16, %18 : vector<64x512xf32>
    %cst_12 = arith.constant 0.000000e+00 : f32
    %20 = vector.broadcast %cst_12 : f32 to vector<64x512xf32>
    %21 = arith.maximumf %19, %20 : vector<64x512xf32>
    %c0_13 = arith.constant 0 : index
    %c0_14 = arith.constant 0 : index
    %22 = vector.load %arg7[%c0_13, %c0_14] : memref<64x64xbf16, #tpu.memory_space<vmem>>, vector<64x64xbf16>
    %23 = arith.truncf %21 : vector<64x512xf32> to vector<64x512xbf16>
    %cst_15 = arith.constant dense<0.000000e+00> : vector<64x512xf32>
    %24 = tpu.matmul %22, %23, %cst_15 {dimension_numbers = #tpu.dot_dimension_numbers<[1], [0], [0], [1], [0, 0, 1, 1], [], []>} : vector<64x64xbf16>, vector<64x512xbf16>, vector<64x512xf32> -> vector<64x512xf32>
    %c0_16 = arith.constant 0 : index
    %c0_17 = arith.constant 0 : index
    %25 = vector.load %arg8[%c0_16, %c0_17] : memref<64x1xf32, #tpu.memory_space<vmem>>, vector<64x1xf32>
    %26 = vector.broadcast %25 : vector<64x1xf32> to vector<64x512xf32>
    %27 = arith.addf %24, %26 : vector<64x512xf32>
    %cst_18 = arith.constant 0.000000e+00 : f32
    %28 = vector.broadcast %cst_18 : f32 to vector<64x512xf32>
    %29 = arith.maximumf %27, %28 : vector<64x512xf32>
    %c0_19 = arith.constant 0 : index
    %c0_20 = arith.constant 0 : index
    %30 = vector.load %arg9[%c0_19, %c0_20] : memref<10x64xbf16, #tpu.memory_space<vmem>>, vector<10x64xbf16>
    %31 = arith.truncf %29 : vector<64x512xf32> to vector<64x512xbf16>
    %cst_21 = arith.constant dense<0.000000e+00> : vector<10x512xf32>
    %32 = tpu.matmul %30, %31, %cst_21 {dimension_numbers = #tpu.dot_dimension_numbers<[1], [0], [0], [1], [0, 0, 1, 1], [], []>} : vector<10x64xbf16>, vector<64x512xbf16>, vector<10x512xf32> -> vector<10x512xf32>
    %c0_22 = arith.constant 0 : index
    %c0_23 = arith.constant 0 : index
    %33 = vector.load %arg10[%c0_22, %c0_23] : memref<10x1xf32, #tpu.memory_space<vmem>>, vector<10x1xf32>
    %34 = vector.broadcast %33 : vector<10x1xf32> to vector<10x512xf32>
    %35 = arith.addf %32, %34 : vector<10x512xf32>
    %36 = arith.addf %0, %35 : vector<10x512xf32>
    %c0_24 = arith.constant 0 : index
    %c0_25 = arith.constant 0 : index
    %37 = vector.load %arg11[%c0_24, %c0_25] : memref<10x512xf32, #tpu.memory_space<vmem>>, vector<10x512xf32>
    tpu.vector_store %arg11[%c0_24, %c0_25], %36 {strides = array<i32>} : memref<10x512xf32, #tpu.memory_space<vmem>>, vector<10x512xf32>,
    %38 = vector.extract_strided_slice %35 {offsets = [0, 0], sizes = [3, 512], strides = [1, 1]} : vector<10x512xf32> to vector<3x512xf32>
    %39 = arith.mulf %38, %38 : vector<3x512xf32>
    %cst_26 = arith.constant dense<0.000000e+00> : vector<512xf32>
    %40 = vector.multi_reduction <add>, %39, %cst_26 [0] : vector<3x512xf32> to vector<512xf32>
    %41 = vector.shape_cast %40 : vector<512xf32> to vector<1x512xf32>
    %42 = math.sqrt %41 : vector<1x512xf32>
    %cst_27 = arith.constant dense<0.000000e+00> : vector<1xf32>
    %43 = vector.multi_reduction <add>, %42, %cst_27 [1] : vector<1x512xf32> to vector<1xf32>
    %44 = vector.shape_cast %43 : vector<1xf32> to vector<1x1xf32>
    %45 = vector.extract_strided_slice %35 {offsets = [3, 0], sizes = [3, 512], strides = [1, 1]} : vector<10x512xf32> to vector<3x512xf32>
    %46 = math.absf %45 : vector<3x512xf32>
    %47 = vector.shape_cast %46 : vector<3x512xf32> to vector<1x3x512xf32>
    %cst_28 = arith.constant dense<0.000000e+00> : vector<1xf32>
    %48 = vector.multi_reduction <add>, %47, %cst_28 [1, 2] : vector<1x3x512xf32> to vector<1xf32>
    %49 = vector.shape_cast %48 : vector<1xf32> to vector<1x1x1xf32>
    %50 = vector.extract %49[0, 0, 0] : f32 from vector<1x1x1xf32>
    %51 = vector.broadcast %50 : f32 to vector<1x1xf32>
    %52 = vector.extract_strided_slice %35 {offsets = [6, 0], sizes = [4, 512], strides = [1, 1]} : vector<10x512xf32> to vector<4x512xf32>
    %53 = math.absf %52 : vector<4x512xf32>
    %54 = vector.shape_cast %53 : vector<4x512xf32> to vector<1x4x512xf32>
    %cst_29 = arith.constant dense<0.000000e+00> : vector<1xf32>
    %55 = vector.multi_reduction <add>, %54, %cst_29 [1, 2] : vector<1x4x512xf32> to vector<1xf32>
    %56 = vector.shape_cast %55 : vector<1xf32> to vector<1x1x1xf32>
    %57 = vector.extract %56[0, 0, 0] : f32 from vector<1x1x1xf32>
    %58 = vector.broadcast %57 : f32 to vector<1x1xf32>
    %59 = tpu.iota {dimensions = array<i32: 0>} : vector<8x128xi32>
    %60 = tpu.iota {dimensions = array<i32: 1>} : vector<8x128xi32>
    %c0_i32 = arith.constant 0 : i32
    %61 = vector.broadcast %c0_i32 : i32 to vector<8x128xi32>
    %62 = arith.cmpi eq, %59, %61 : vector<8x128xi32>
    %c0_i32_30 = arith.constant 0 : i32
    %63 = vector.broadcast %c0_i32_30 : i32 to vector<8x128xi32>
    %64 = arith.cmpi eq, %60, %63 : vector<8x128xi32>
    %65 = arith.andi %62, %64 : vector<8x128xi1>
    %c1_i32 = arith.constant 1 : i32
    %66 = vector.broadcast %c1_i32 : i32 to vector<8x128xi32>
    %67 = arith.cmpi eq, %60, %66 : vector<8x128xi32>
    %68 = arith.andi %62, %67 : vector<8x128xi1>
    %c2_i32 = arith.constant 2 : i32
    %69 = vector.broadcast %c2_i32 : i32 to vector<8x128xi32>
    %70 = arith.cmpi eq, %60, %69 : vector<8x128xi32>
    %71 = arith.andi %62, %70 : vector<8x128xi1>
    %cst_31 = arith.constant 0.000000e+00 : f32
    %72 = vector.shape_cast %58 : vector<1x1xf32> to vector<1x1xf32>
    %73 = vector.broadcast %72 : vector<1x1xf32> to vector<8x128xf32>
    %74 = vector.broadcast %cst_31 : f32 to vector<8x128xf32>
    %75 = arith.select %71, %73, %74 : vector<8x128xi1>, vector<8x128xf32>
    %76 = vector.shape_cast %51 : vector<1x1xf32> to vector<1x1xf32>
    %77 = vector.broadcast %76 : vector<1x1xf32> to vector<8x128xf32>
    %78 = arith.select %68, %77, %75 : vector<8x128xi1>, vector<8x128xf32>
    %79 = vector.shape_cast %44 : vector<1x1xf32> to vector<1x1xf32>
    %80 = vector.broadcast %79 : vector<1x1xf32> to vector<8x128xf32>
    %81 = arith.select %65, %80, %78 : vector<8x128xi1>, vector<8x128xf32>
    %c0_32 = arith.constant 0 : index
    %c0_33 = arith.constant 0 : index
    %82 = vector.load %arg12[%c0_32, %c0_33] : memref<8x128xf32, #tpu.memory_space<vmem>>, vector<8x128xf32>
    tpu.vector_store %arg12[%c0_32, %c0_33], %81 {strides = array<i32>} : memref<8x128xf32, #tpu.memory_space<vmem>>, vector<8x128xf32>,
    return
  }
  func.func @transform_0(%arg0: i32) -> (i32, i32) {
    %c0_i32 = arith.constant 0 : i32
    %c0_i32_0 = arith.constant 0 : i32
    return %c0_i32, %arg0 : i32, i32
  }
  func.func @transform_1(%arg0: i32) -> (i32, i32) {
    %c0_i32 = arith.constant 0 : i32
    %c0_i32_0 = arith.constant 0 : i32
    %c0_i32_1 = arith.constant 0 : i32
    return %c0_i32, %c0_i32_0 : i32, i32
  }
  func.func @transform_2(%arg0: i32) -> (i32, i32) {
    %c0_i32 = arith.constant 0 : i32
    %c0_i32_0 = arith.constant 0 : i32
    %c0_i32_1 = arith.constant 0 : i32
    return %c0_i32, %c0_i32_0 : i32, i32
  }
  func.func @transform_3(%arg0: i32) -> (i32, i32) {
    %c0_i32 = arith.constant 0 : i32
    %c0_i32_0 = arith.constant 0 : i32
    %c0_i32_1 = arith.constant 0 : i32
    return %c0_i32, %c0_i32_0 : i32, i32
  }
  func.func @transform_4(%arg0: i32) -> (i32, i32) {
    %c0_i32 = arith.constant 0 : i32
    %c0_i32_0 = arith.constant 0 : i32
    %c0_i32_1 = arith.constant 0 : i32
    return %c0_i32, %c0_i32_0 : i32, i32
  }
  func.func @transform_5(%arg0: i32) -> (i32, i32) {
    %c0_i32 = arith.constant 0 : i32
    %c0_i32_0 = arith.constant 0 : i32
    %c0_i32_1 = arith.constant 0 : i32
    return %c0_i32, %c0_i32_0 : i32, i32
  }
  func.func @transform_6(%arg0: i32) -> (i32, i32) {
    %c0_i32 = arith.constant 0 : i32
    %c0_i32_0 = arith.constant 0 : i32
    %c0_i32_1 = arith.constant 0 : i32
    return %c0_i32, %c0_i32_0 : i32, i32
  }
  func.func @transform_7(%arg0: i32) -> (i32, i32) {
    %c0_i32 = arith.constant 0 : i32
    %c0_i32_0 = arith.constant 0 : i32
    %c0_i32_1 = arith.constant 0 : i32
    return %c0_i32, %c0_i32_0 : i32, i32
  }
  func.func @transform_8(%arg0: i32) -> (i32, i32) {
    %c0_i32 = arith.constant 0 : i32
    %c0_i32_0 = arith.constant 0 : i32
    %c0_i32_1 = arith.constant 0 : i32
    return %c0_i32, %c0_i32_0 : i32, i32
  }
  func.func @transform_9(%arg0: i32) -> (i32, i32) {
    %c0_i32 = arith.constant 0 : i32
    %c0_i32_0 = arith.constant 0 : i32
    %c0_i32_1 = arith.constant 0 : i32
    return %c0_i32, %c0_i32_0 : i32, i32
  }
  func.func @transform_10(%arg0: i32) -> (i32, i32) {
    %c0_i32 = arith.constant 0 : i32
    %c0_i32_0 = arith.constant 0 : i32
    return %c0_i32, %arg0 : i32, i32
  }
  func.func @transform_11(%arg0: i32) -> (i32, i32) {
    %c0_i32 = arith.constant 0 : i32
    %c0_i32_0 = arith.constant 0 : i32
    return %arg0, %c0_i32 : i32, i32
  }
}

</mosaic_0001>

<llo_original>
// kernel: tpu_custom_call.1
$region0: #{tpu_custom_call.1}
  #allocation0 [shape = 'u32[]', space=smem, size = 0x4, offset = 0x4, fixed_abs, tag = 'smem constant byte address 0x4 - core index']
  #allocation1 [shape = 'u32[144,128]{1,0:T(1,128)}', space=vmem, size = 0x12000, scoped, tag = 'internal scratch']
  %s0 = inlined_call_operand.vmem [shape: f32[10,1024], index: 0, kind: input, shape index: {}]
  %s1 = inlined_call_operand.vmem [shape: f32[24,1], index: 1, kind: input, shape index: {}]
  %s2 = inlined_call_operand.vmem [shape: f32[24,1], index: 2, kind: input, shape index: {}]
  %s3 = inlined_call_operand.vmem [shape: bf16[64,3], index: 3, kind: input, shape index: {}]
  %s4 = inlined_call_operand.vmem [shape: bf16[64,24], index: 4, kind: input, shape index: {}]
  %s5 = inlined_call_operand.vmem [shape: f32[64,1], index: 5, kind: input, shape index: {}]
  %s6 = inlined_call_operand.vmem [shape: bf16[64,64], index: 6, kind: input, shape index: {}]
  %s7 = inlined_call_operand.vmem [shape: f32[64,1], index: 7, kind: input, shape index: {}]
  %s8 = inlined_call_operand.vmem [shape: bf16[10,64], index: 8, kind: input, shape index: {}]
  %s9 = inlined_call_operand.vmem [shape: f32[10,1], index: 9, kind: input, shape index: {}]
  %s10 = inlined_call_operand.hbm [shape: f32[10,1024], index: 10, kind: output, shape index: {0}]
  %s11 = inlined_call_operand.hbm [shape: f32[16,128], index: 11, kind: output, shape index: {1}]
  %12 = xla_tuple %s10, %s11
  %s13 = sld [smem:[#allocation0]]
  $region104: #{tpu_custom_call.1} parent=0
    _
  %s15 = ssub.s32 1, %s13
  %s16 = scalar_select 0, %s15, %s13
  $region1: #{tpu_custom_call.1} parent=0
    #allocation2 [shape = 'u8[65536]{0}', space=vmem, size = 0x10000, scoped, tag = 'input window, operand 0']
    #allocation3 [shape = 'u8[65536]{0}', space=vmem, size = 0x10000, scoped, tag = 'output window, operand 0']
    #allocation4 [shape = 's32[2]{0}', space=sflag, size = 0x8, scoped, tag = 'scoped memory for tpu_custom_call.1']
    #allocation5 [shape = 'u8[8192]{0}', space=vmem, size = 0x2000, scoped, tag = 'output window, operand 1']
    #allocation6 [shape = 's32[2]{0}', space=sflag, size = 0x8, scoped, tag = 'scoped memory for tpu_custom_call.1']
    %17 = vsyncpa [#allocation4], 0
    %s18 = scalar_lea.sflag [#allocation4], 1
    %19 = vsyncpa %s18, 0
    %20 = vsyncpa [#allocation6], 0
    %s21 = scalar_lea.sflag [#allocation6], 1
    %22 = vsyncpa %s21, 0
    loop: start=0, step=1, limit=4
    $region2: #{tpu_custom_call.1} parent=1 // loop_pre_header
      _
    $region3: #{tpu_custom_call.1} parent=1 // loop_header
      %s24 = sphi 0, %s28
      %p25 = scmp.ge.s32.totalorder %s24, 4
      %s34 = sphi 0, %s36
      %s37 = sphi 0, %s34
      %s38 = sphi 0, %s37
      %s54 = sphi 0, %s38
      %s58 = sphi 0, %s58
      %s60 = sphi 0, %s58
      %s61 = sphi 0, %s60
      %s75 = sphi 0, %s61
      %s79 = sphi 0, %s79
      %s81 = sphi 0, %s79
      %s82 = sphi 0, %s81
      %s96 = sphi 0, %s82
      %s100 = sphi 0, %s100
      %s102 = sphi 0, %s100
      %s103 = sphi 0, %s102
      %s117 = sphi 0, %s103
      %s121 = sphi 0, %s121
      %s123 = sphi 0, %s121
      %s124 = sphi 0, %s123
      %s138 = sphi 0, %s124
      %s142 = sphi 0, %s142
      %s144 = sphi 0, %s142
      %s145 = sphi 0, %s144
      %s159 = sphi 0, %s145
      %s163 = sphi 0, %s163
      %s165 = sphi 0, %s163
      %s166 = sphi 0, %s165
      %s180 = sphi 0, %s166
      %s184 = sphi 0, %s184
      %s186 = sphi 0, %s184
      %s187 = sphi 0, %s186
      %s201 = sphi 0, %s187
      %s205 = sphi 0, %s205
      %s207 = sphi 0, %s205
      %s208 = sphi 0, %s207
      %s222 = sphi 0, %s208
      %s226 = sphi 0, %s226
      %s228 = sphi 0, %s226
      %s229 = sphi 0, %s228
      %s243 = sphi 0, %s229
      %s249 = sphi 0, %s251
      %s252 = sphi 0, %s249
      %s253 = sphi 0, %s252
      %s269 = sphi 0, %s253
      %s275 = sphi 0, %s277
      %s278 = sphi 0, %s275
      %s279 = sphi 0, %s278
      %s295 = sphi 0, %s279
    $region4: #{tpu_custom_call.1} parent=1 // loop_header_branch
      %27 = sbr.rel (%p25) target = $region8
    $region5: #{tpu_custom_call.1} parent=1 // loop_body
      %s29 = ssub.s32 %s24, 1
      %s30 = ssub.s32 %s24, 2
      %s31 = sadd.s32 %s24, 1
      %s32 = ssub.s32 %s24, %s31
      %p33 = scmp.eq.s32.totalorder %s32, 0
      %s35 = sadd.s32 %s34, 1
      %s36 = scalar_select %p33, %s34, %s35
      %p39 = pneg %p33
      %p40 = scmp.eq.s32.totalorder %s24, 1
      %p41 = por %p39, %p40
      %p42 = scmp.ne.s32.totalorder %s34, %s37
      %p43 = scmp.eq.s32.totalorder %s24, 0
      %p44 = por %p42, %p43
      %p45 = scmp.ne.s32.totalorder %s34, %s37
      %p46 = scmp.eq.s32.totalorder %s29, 1
      %p47 = por %p45, %p46
      %p48 = scmp.ne.s32.totalorder %s37, %s38
      %p49 = scmp.eq.s32.totalorder %s29, 0
      %p50 = por %p48, %p49
      %p51 = scmp.ne.s32.totalorder %s37, %s38
      %p52 = scmp.eq.s32.totalorder %s30, 1
      %p53 = por %p51, %p52
      %p55 = scmp.ne.s32.totalorder %s38, %s54
      %p56 = scmp.eq.s32.totalorder %s30, 0
      %p57 = por %p55, %p56
      %s59 = sadd.s32 %s58, 1
      %p62 = scmp.eq.s32.totalorder %s24, 1
      %p63 = scmp.ne.s32.totalorder %s58, %s60
      %p64 = scmp.eq.s32.totalorder %s24, 0
      %p65 = por %p63, %p64
      %p66 = scmp.ne.s32.totalorder %s58, %s60
      %p67 = scmp.eq.s32.totalorder %s29, 1
      %p68 = por %p66, %p67
      %p69 = scmp.ne.s32.totalorder %s60, %s61
      %p70 = scmp.eq.s32.totalorder %s29, 0
      %p71 = por %p69, %p70
      %p72 = scmp.ne.s32.totalorder %s60, %s61
      %p73 = scmp.eq.s32.totalorder %s30, 1
      %p74 = por %p72, %p73
      %p76 = scmp.ne.s32.totalorder %s61, %s75
      %p77 = scmp.eq.s32.totalorder %s30, 0
      %p78 = por %p76, %p77
      %s80 = sadd.s32 %s79, 1
      %p83 = scmp.eq.s32.totalorder %s24, 1
      %p84 = scmp.ne.s32.totalorder %s79, %s81
      %p85 = scmp.eq.s32.totalorder %s24, 0
      %p86 = por %p84, %p85
      %p87 = scmp.ne.s32.totalorder %s79, %s81
      %p88 = scmp.eq.s32.totalorder %s29, 1
      %p89 = por %p87, %p88
      %p90 = scmp.ne.s32.totalorder %s81, %s82
      %p91 = scmp.eq.s32.totalorder %s29, 0
      %p92 = por %p90, %p91
      %p93 = scmp.ne.s32.totalorder %s81, %s82
      %p94 = scmp.eq.s32.totalorder %s30, 1
      %p95 = por %p93, %p94
      %p97 = scmp.ne.s32.totalorder %s82, %s96
      %p98 = scmp.eq.s32.totalorder %s30, 0
      %p99 = por %p97, %p98
      %s101 = sadd.s32 %s100, 1
      %p104 = scmp.eq.s32.totalorder %s24, 1
      %p105 = scmp.ne.s32.totalorder %s100, %s102
      %p106 = scmp.eq.s32.totalorder %s24, 0
      %p107 = por %p105, %p106
      %p108 = scmp.ne.s32.totalorder %s100, %s102
      %p109 = scmp.eq.s32.totalorder %s29, 1
      %p110 = por %p108, %p109
      %p111 = scmp.ne.s32.totalorder %s102, %s103
      %p112 = scmp.eq.s32.totalorder %s29, 0
      %p113 = por %p111, %p112
      %p114 = scmp.ne.s32.totalorder %s102, %s103
      %p115 = scmp.eq.s32.totalorder %s30, 1
      %p116 = por %p114, %p115
      %p118 = scmp.ne.s32.totalorder %s103, %s117
      %p119 = scmp.eq.s32.totalorder %s30, 0
      %p120 = por %p118, %p119
      %s122 = sadd.s32 %s121, 1
      %p125 = scmp.eq.s32.totalorder %s24, 1
      %p126 = scmp.ne.s32.totalorder %s121, %s123
      %p127 = scmp.eq.s32.totalorder %s24, 0
      %p128 = por %p126, %p127
      %p129 = scmp.ne.s32.totalorder %s121, %s123
      %p130 = scmp.eq.s32.totalorder %s29, 1
      %p131 = por %p129, %p130
      %p132 = scmp.ne.s32.totalorder %s123, %s124
      %p133 = scmp.eq.s32.totalorder %s29, 0
      %p134 = por %p132, %p133
      %p135 = scmp.ne.s32.totalorder %s123, %s124
      %p136 = scmp.eq.s32.totalorder %s30, 1
      %p137 = por %p135, %p136
      %p139 = scmp.ne.s32.totalorder %s124, %s138
      %p140 = scmp.eq.s32.totalorder %s30, 0
      %p141 = por %p139, %p140
      %s143 = sadd.s32 %s142, 1
      %p146 = scmp.eq.s32.totalorder %s24, 1
      %p147 = scmp.ne.s32.totalorder %s142, %s144
      %p148 = scmp.eq.s32.totalorder %s24, 0
      %p149 = por %p147, %p148
      %p150 = scmp.ne.s32.totalorder %s142, %s144
      %p151 = scmp.eq.s32.totalorder %s29, 1
      %p152 = por %p150, %p151
      %p153 = scmp.ne.s32.totalorder %s144, %s145
      %p154 = scmp.eq.s32.totalorder %s29, 0
      %p155 = por %p153, %p154
      %p156 = scmp.ne.s32.totalorder %s144, %s145
      %p157 = scmp.eq.s32.totalorder %s30, 1
      %p158 = por %p156, %p157
      %p160 = scmp.ne.s32.totalorder %s145, %s159
      %p161 = scmp.eq.s32.totalorder %s30, 0
      %p162 = por %p160, %p161
      %s164 = sadd.s32 %s163, 1
      %p167 = scmp.eq.s32.totalorder %s24, 1
      %p168 = scmp.ne.s32.totalorder %s163, %s165
      %p169 = scmp.eq.s32.totalorder %s24, 0
      %p170 = por %p168, %p169
      %p171 = scmp.ne.s32.totalorder %s163, %s165
      %p172 = scmp.eq.s32.totalorder %s29, 1
      %p173 = por %p171, %p172
      %p174 = scmp.ne.s32.totalorder %s165, %s166
      %p175 = scmp.eq.s32.totalorder %s29, 0
      %p176 = por %p174, %p175
      %p177 = scmp.ne.s32.totalorder %s165, %s166
      %p178 = scmp.eq.s32.totalorder %s30, 1
      %p179 = por %p177, %p178
      %p181 = scmp.ne.s32.totalorder %s166, %s180
      %p182 = scmp.eq.s32.totalorder %s30, 0
      %p183 = por %p181, %p182
      %s185 = sadd.s32 %s184, 1
      %p188 = scmp.eq.s32.totalorder %s24, 1
      %p189 = scmp.ne.s32.totalorder %s184, %s186
      %p190 = scmp.eq.s32.totalorder %s24, 0
      %p191 = por %p189, %p190
      %p192 = scmp.ne.s32.totalorder %s184, %s186
      %p193 = scmp.eq.s32.totalorder %s29, 1
      %p194 = por %p192, %p193
      %p195 = scmp.ne.s32.totalorder %s186, %s187
      %p196 = scmp.eq.s32.totalorder %s29, 0
      %p197 = por %p195, %p196
      %p198 = scmp.ne.s32.totalorder %s186, %s187
      %p199 = scmp.eq.s32.totalorder %s30, 1
      %p200 = por %p198, %p199
      %p202 = scmp.ne.s32.totalorder %s187, %s201
      %p203 = scmp.eq.s32.totalorder %s30, 0
      %p204 = por %p202, %p203
      %s206 = sadd.s32 %s205, 1
      %p209 = scmp.eq.s32.totalorder %s24, 1
      %p210 = scmp.ne.s32.totalorder %s205, %s207
      %p211 = scmp.eq.s32.totalorder %s24, 0
      %p212 = por %p210, %p211
      %p213 = scmp.ne.s32.totalorder %s205, %s207
      %p214 = scmp.eq.s32.totalorder %s29, 1
      %p215 = por %p213, %p214
      %p216 = scmp.ne.s32.totalorder %s207, %s208
      %p217 = scmp.eq.s32.totalorder %s29, 0
      %p218 = por %p216, %p217
      %p219 = scmp.ne.s32.totalorder %s207, %s208
      %p220 = scmp.eq.s32.totalorder %s30, 1
      %p221 = por %p219, %p220
      %p223 = scmp.ne.s32.totalorder %s208, %s222
      %p224 = scmp.eq.s32.totalorder %s30, 0
      %p225 = por %p223, %p224
      %s227 = sadd.s32 %s226, 1
      %p230 = scmp.eq.s32.totalorder %s24, 1
      %p231 = scmp.ne.s32.totalorder %s226, %s228
      %p232 = scmp.eq.s32.totalorder %s24, 0
      %p233 = por %p231, %p232
      %p234 = scmp.ne.s32.totalorder %s226, %s228
      %p235 = scmp.eq.s32.totalorder %s29, 1
      %p236 = por %p234, %p235
      %p237 = scmp.ne.s32.totalorder %s228, %s229
      %p238 = scmp.eq.s32.totalorder %s29, 0
      %p239 = por %p237, %p238
      %p240 = scmp.ne.s32.totalorder %s228, %s229
      %p241 = scmp.eq.s32.totalorder %s30, 1
      %p242 = por %p240, %p241
      %p244 = scmp.ne.s32.totalorder %s229, %s243
      %p245 = scmp.eq.s32.totalorder %s30, 0
      %p246 = por %p244, %p245
      %s247 = ssub.s32 %s24, %s31
      %p248 = scmp.eq.s32.totalorder %s247, 0
      %s250 = sadd.s32 %s249, 1
      %s251 = scalar_select %p248, %s249, %s250
      %p254 = pneg %p248
      %p255 = scmp.eq.s32.totalorder %s24, 1
      %p256 = por %p254, %p255
      %p257 = scmp.ne.s32.totalorder %s249, %s252
      %p258 = scmp.eq.s32.totalorder %s24, 0
      %p259 = por %p257, %p258
      %p260 = scmp.ne.s32.totalorder %s249, %s252
      %p261 = scmp.eq.s32.totalorder %s29, 1
      %p262 = por %p260, %p261
      %p263 = scmp.ne.s32.totalorder %s252, %s253
      %p264 = scmp.eq.s32.totalorder %s29, 0
      %p265 = por %p263, %p264
      %p266 = scmp.ne.s32.totalorder %s252, %s253
      %p267 = scmp.eq.s32.totalorder %s30, 1
      %p268 = por %p266, %p267
      %p270 = scmp.ne.s32.totalorder %s253, %s269
      %p271 = scmp.eq.s32.totalorder %s30, 0
      %p272 = por %p270, %p271
      %s273 = ssub.s32 %s24, %s31
      %p274 = scmp.eq.s32.totalorder %s273, 0
      %s276 = sadd.s32 %s275, 1
      %s277 = scalar_select %p274, %s275, %s276
      %p280 = pneg %p274
      %p281 = scmp.eq.s32.totalorder %s24, 1
      %p282 = por %p280, %p281
      %p283 = scmp.ne.s32.totalorder %s275, %s278
      %p284 = scmp.eq.s32.totalorder %s24, 0
      %p285 = por %p283, %p284
      %p286 = scmp.ne.s32.totalorder %s275, %s278
      %p287 = scmp.eq.s32.totalorder %s29, 1
      %p288 = por %p286, %p287
      %p289 = scmp.ne.s32.totalorder %s278, %s279
      %p290 = scmp.eq.s32.totalorder %s29, 0
      %p291 = por %p289, %p290
      %p292 = scmp.ne.s32.totalorder %s278, %s279
      %p293 = scmp.eq.s32.totalorder %s30, 1
      %p294 = por %p292, %p293
      %p296 = scmp.ne.s32.totalorder %s279, %s295
      %p297 = scmp.eq.s32.totalorder %s30, 0
      %p298 = por %p296, %p297
      %p299 = scmp.le.s32.totalorder 1, %s24
      %p300 = scmp.lt.s32.totalorder %s24, 3
      %p301 = pnand %p299, %p300
      %p302 = pneg %p301
      // Predicated region
      $region9: #{tpu_custom_call.1} parent=5 // pred_check
        _
      $region10: #{tpu_custom_call.1} parent=5 // pred_check_branch
        %304 = sbr.rel (%p301) target = $region12
      $region11: #{tpu_custom_call.1} parent=5 // pred_region
        %s305 = ssub.s32 %s24, 1
        // Predicated region
        $region13: #{tpu_custom_call.1} parent=11 // pred_check
          %p306 = pneg %p71
        $region14: #{tpu_custom_call.1} parent=11 // pred_check_branch
          %308 = sbr.rel (%p306) target = $region16
        $region15: #{tpu_custom_call.1} parent=11 // pred_region
          _
        $region16: #{tpu_custom_call.1} parent=11 // pred_fallthru
          _
        // Predicated region
        $region17: #{tpu_custom_call.1} parent=11 // pred_check
          %p309 = pneg %p92
        $region18: #{tpu_custom_call.1} parent=11 // pred_check_branch
          %311 = sbr.rel (%p309) target = $region20
        $region19: #{tpu_custom_call.1} parent=11 // pred_region
          _
        $region20: #{tpu_custom_call.1} parent=11 // pred_fallthru
          _
        // Predicated region
        $region21: #{tpu_custom_call.1} parent=11 // pred_check
          %p312 = pneg %p113
        $region22: #{tpu_custom_call.1} parent=11 // pred_check_branch
          %314 = sbr.rel (%p312) target = $region24
        $region23: #{tpu_custom_call.1} parent=11 // pred_region
          _
        $region24: #{tpu_custom_call.1} parent=11 // pred_fallthru
          _
        // Predicated region
        $region25: #{tpu_custom_call.1} parent=11 // pred_check
          %p315 = pneg %p134
        $region26: #{tpu_custom_call.1} parent=11 // pred_check_branch
          %317 = sbr.rel (%p315) target = $region28
        $region27: #{tpu_custom_call.1} parent=11 // pred_region
          _
        $region28: #{tpu_custom_call.1} parent=11 // pred_fallthru
          _
        // Predicated region
        $region29: #{tpu_custom_call.1} parent=11 // pred_check
          %p318 = pneg %p155
        $region30: #{tpu_custom_call.1} parent=11 // pred_check_branch
          %320 = sbr.rel (%p318) target = $region32
        $region31: #{tpu_custom_call.1} parent=11 // pred_region
          _
        $region32: #{tpu_custom_call.1} parent=11 // pred_fallthru
          _
        // Predicated region
        $region33: #{tpu_custom_call.1} parent=11 // pred_check
          %p321 = pneg %p176
        $region34: #{tpu_custom_call.1} parent=11 // pred_check_branch
          %323 = sbr.rel (%p321) target = $region36
        $region35: #{tpu_custom_call.1} parent=11 // pred_region
          _
        $region36: #{tpu_custom_call.1} parent=11 // pred_fallthru
          _
        // Predicated region
        $region37: #{tpu_custom_call.1} parent=11 // pred_check
          %p324 = pneg %p197
        $region38: #{tpu_custom_call.1} parent=11 // pred_check_branch
          %326 = sbr.rel (%p324) target = $region40
        $region39: #{tpu_custom_call.1} parent=11 // pred_region
          _
        $region40: #{tpu_custom_call.1} parent=11 // pred_fallthru
          _
        // Predicated region
        $region41: #{tpu_custom_call.1} parent=11 // pred_check
          %p327 = pneg %p218
        $region42: #{tpu_custom_call.1} parent=11 // pred_check_branch
          %329 = sbr.rel (%p327) target = $region44
        $region43: #{tpu_custom_call.1} parent=11 // pred_region
          _
        $region44: #{tpu_custom_call.1} parent=11 // pred_fallthru
          _
        // Predicated region
        $region45: #{tpu_custom_call.1} parent=11 // pred_check
          %p330 = pneg %p239
        $region46: #{tpu_custom_call.1} parent=11 // pred_check_branch
          %332 = sbr.rel (%p330) target = $region48
        $region47: #{tpu_custom_call.1} parent=11 // pred_region
          _
        $region48: #{tpu_custom_call.1} parent=11 // pred_fallthru
          _
      $region12: #{tpu_custom_call.1} parent=5 // pred_fallthru
        _
      %p333 = scmp.lt.s32.totalorder %s24, 2
      // Predicated region
      $region49: #{tpu_custom_call.1} parent=5 // pred_check
        %p334 = pneg %p333
      $region50: #{tpu_custom_call.1} parent=5 // pred_check_branch
        %336 = sbr.rel (%p334) target = $region52
      $region51: #{tpu_custom_call.1} parent=5 // pred_region
        // Predicated region
        $region53: #{tpu_custom_call.1} parent=51 // pred_check
          %p337 = pneg %p44
        $region54: #{tpu_custom_call.1} parent=51 // pred_check_branch
          %339 = sbr.rel (%p337) target = $region56
        $region55: #{tpu_custom_call.1} parent=51 // pred_region
          %s340 = sand.u32 %s34, 1
          %s341 = sand.u32 %s34, 1
          %s342 = smul.addr %s341, 64
          %s343 = scalar_lea.vmem [#allocation2], %s342
          %s344 = smul.u32 4, %s24
          %s345 = smul.addr %s344, 8
          %s346 = scalar_lea.vmem %s0, %s345
          // Predicated region
          $region57: #{tpu_custom_call.1} parent=55 // pred_check
            _
          $region58: #{tpu_custom_call.1} parent=55 // pred_check_branch
            %348 = sbr.rel (0) target = $region60
          $region59: #{tpu_custom_call.1} parent=55 // pred_region
            // Predicated region
            $region61: #{tpu_custom_call.1} parent=59 // pred_check
              _
            $region62: #{tpu_custom_call.1} parent=59 // pred_check_branch
              %350 = sbr.rel (0) target = $region64
            $region63: #{tpu_custom_call.1} parent=59 // pred_region
              loop: start=0, step=1, limit=1
              $region65: #{tpu_custom_call.1} parent=63 // loop_pre_header
                _
              $region66: #{tpu_custom_call.1} parent=63 // loop_header
                %s352 = sphi 0, %s356
                %p353 = scmp.ge.s32.totalorder %s352, 1
                %s357 = sphi %s346, %s346
                %s358 = sphi %s343, %s343
              $region67: #{tpu_custom_call.1} parent=63 // loop_header_branch
                %355 = sbr.rel (%p353) target = $region71
              $region68: #{tpu_custom_call.1} parent=63 // loop_body
                %v359 = vld [vmem:[%s357] sm:$0xff]
                %360 = vst [vmem:[%s358] sm:$0xff] %v359
                %v361 = vld [vmem:[%s357 + $0x8] sm:$0xff]
                %362 = vst [vmem:[%s358 + $0x8] sm:$0xff] %v361
                %v363 = vld [vmem:[%s357 + $0x10] sm:$0xff]
                %364 = vst [vmem:[%s358 + $0x10] sm:$0xff] %v363
                %v365 = vld [vmem:[%s357 + $0x18] sm:$0xff]
                %366 = vst [vmem:[%s358 + $0x18] sm:$0xff] %v365
                %v367 = vld [vmem:[%s357 + $0x40] sm:$0xff]
                %368 = vst [vmem:[%s358 + $0x20] sm:$0xff] %v367
                %v369 = vld [vmem:[%s357 + $0x48] sm:$0xff]
                %370 = vst [vmem:[%s358 + $0x28] sm:$0xff] %v369
                %v371 = vld [vmem:[%s357 + $0x50] sm:$0xff]
                %372 = vst [vmem:[%s358 + $0x30] sm:$0xff] %v371
                %v373 = vld [vmem:[%s357 + $0x58] sm:$0xff]
                %374 = vst [vmem:[%s358 + $0x38] sm:$0xff] %v373
              $region69: #{tpu_custom_call.1} parent=63 // loop_footer
                %s356 = sadd.s32 1, %s352
              $region70: #{tpu_custom_call.1} parent=63 // loop_footer_branch
                %351 = sbr.rel target = $region66
              $region71: #{tpu_custom_call.1} parent=63 // loop_exit
                _
            $region64: #{tpu_custom_call.1} parent=59 // pred_fallthru
              _
            // Predicated region
            $region72: #{tpu_custom_call.1} parent=59 // pred_check
              _
            $region73: #{tpu_custom_call.1} parent=59 // pred_check_branch
              %376 = sbr.rel target = $region75
            $region74: #{tpu_custom_call.1} parent=59 // pred_region
              _
            $region75: #{tpu_custom_call.1} parent=59 // pred_fallthru
              _
          $region60: #{tpu_custom_call.1} parent=55 // pred_fallthru
            _
          %377 = vnop
        $region56: #{tpu_custom_call.1} parent=51 // pred_fallthru
          _
      $region52: #{tpu_custom_call.1} parent=5 // pred_fallthru
        _
      %p378 = scmp.le.s32.totalorder 1, %s24
      %p379 = scmp.lt.s32.totalorder %s24, 3
      %p380 = pnand %p378, %p379
      %p381 = pneg %p380
      // Predicated region
      $region76: #{tpu_custom_call.1} parent=5 // pred_check
        _
      $region77: #{tpu_custom_call.1} parent=5 // pred_check_branch
        %383 = sbr.rel (%p380) target = $region79
      $region78: #{tpu_custom_call.1} parent=5 // pred_region
        %s384 = ssub.s32 %s24, 1
        %s385 = sand.u32 %s37, 1
        %s386 = sand.u32 %s37, 1
        %s387 = smul.addr %s386, 64
        %s388 = scalar_lea.vmem [#allocation2], %s387
        // Predicated region
        $region80: #{tpu_custom_call.1} parent=78 // pred_check
          %p389 = pneg %p50
        $region81: #{tpu_custom_call.1} parent=78 // pred_check_branch
          %391 = sbr.rel (%p389) target = $region83
        $region82: #{tpu_custom_call.1} parent=78 // pred_region
          _
        $region83: #{tpu_custom_call.1} parent=78 // pred_fallthru
          _
        %s392 = sand.u32 %s37, 1
        %s393 = sand.u32 %s37, 1
        %s394 = smul.addr %s393, 64
        %s395 = scalar_lea.vmem [#allocation2], %s394
        %p396 = pneg %p50
        %p397 = pneg %p47
        %p398 = pneg %p71
        %p399 = pneg %p68
        %p400 = pneg %p92
        %p401 = pneg %p89
        %p402 = pneg %p113
        %p403 = pneg %p110
        %p404 = pneg %p134
        %p405 = pneg %p131
        %p406 = pneg %p155
        %p407 = pneg %p152
        %p408 = pneg %p176
        %p409 = pneg %p173
        %p410 = pneg %p197
        %p411 = pneg %p194
        %p412 = pneg %p218
        %p413 = pneg %p215
        %p414 = pneg %p239
        %p415 = pneg %p236
        %p416 = pneg %p265
        %p417 = pneg %p262
        %s418 = sand.u32 %s252, 1
        %s419 = scalar_lea.sflag [#allocation4], %s418
        %s420 = sand.u32 %s252, 1
        %s421 = smul.addr %s420, 64
        %s422 = scalar_lea.vmem [#allocation3], %s421
        %p423 = pneg %p291
        %p424 = pneg %p288
        %s425 = sand.u32 %s278, 1
        %s426 = scalar_lea.sflag [#allocation6], %s425
        %s427 = sand.u32 %s278, 1
        %s428 = smul.addr %s427, 8
        %s429 = scalar_lea.vmem [#allocation5], %s428
        %s430 = smul.u32 4, %s29
        %s431 = smul.u32 4, %s29
        %v433 = vld [vmem:[%s388] sm:$0xff]
        %v434 = vld [vmem:[%s388 + $0x8] sm:$0xff]
        %v435 = vld [vmem:[%s388 + $0x10] sm:$0xff]
        %v436 = vld [vmem:[%s388 + $0x18] sm:$0xff]
        %v437 = vld [vmem:[%s388 + $0x20] sm:$0x3]
        %v438 = vld [vmem:[%s388 + $0x28] sm:$0x3]
        %v439 = vld [vmem:[%s388 + $0x30] sm:$0x3]
        %v440 = vld [vmem:[%s388 + $0x38] sm:$0x3]
        %v445 = vrot.slane %v433, 5
        %v446 = vrot.slane %v434, 5
        %v447 = vrot.slane %v435, 5
        %v448 = vrot.slane %v436, 5
        %v453 = vrot.slane %v433, 2
        %v454 = vrot.slane %v434, 2
        %v455 = vrot.slane %v435, 2
        %v456 = vrot.slane %v436, 2
        %v461 = vrot.slane %v433, 7
        %v462 = vrot.slane %v434, 7
        %v463 = vrot.slane %v435, 7
        %v464 = vrot.slane %v436, 7
        %v469 = vrot.slane %v433, 4
        %v470 = vrot.slane %v434, 4
        %v471 = vrot.slane %v435, 4
        %v472 = vrot.slane %v436, 4
        %v477 = vrot.slane %v433, 1
        %v478 = vrot.slane %v434, 1
        %v479 = vrot.slane %v435, 1
        %v480 = vrot.slane %v436, 1
        %v485 = vrot.slane %v433, 6
        %v486 = vrot.slane %v434, 6
        %v487 = vrot.slane %v435, 6
        %v488 = vrot.slane %v436, 6
        %v493 = vrot.slane %v433, 3
        %v494 = vrot.slane %v434, 3
        %v495 = vrot.slane %v435, 3
        %v496 = vrot.slane %v436, 3
        %vm501 = vcmask 1042432
        %v502 = vsel %vm501, %v433, %v445
        %v503 = vsel %vm501, %v434, %v446
        %v504 = vsel %vm501, %v435, %v447
        %v505 = vsel %vm501, %v436, %v448
        %vm506 = vcmask 1045504
        %v507 = vsel %vm506, %v502, %v453
        %v508 = vsel %vm506, %v503, %v454
        %v509 = vsel %vm506, %v504, %v455
        %v510 = vsel %vm506, %v505, %v456
        %vm511 = vcmask 1040384
        %v512 = vsel %vm511, %v453, %v461
        %v513 = vsel %vm511, %v454, %v462
        %v514 = vsel %vm511, %v455, %v463
        %v515 = vsel %vm511, %v456, %v464
        %vm516 = vcmask 1043456
        %v517 = vsel %vm516, %v512, %v469
        %v518 = vsel %vm516, %v513, %v470
        %v519 = vsel %vm516, %v514, %v471
        %v520 = vsel %vm516, %v515, %v472
        %vm521 = vcmask 1046528
        %v522 = vsel %vm521, %v517, %v477
        %v523 = vsel %vm521, %v518, %v478
        %v524 = vsel %vm521, %v519, %v479
        %v525 = vsel %vm521, %v520, %v480
        %vm526 = vcmask 1041408
        %v527 = vsel %vm526, %v477, %v485
        %v528 = vsel %vm526, %v478, %v486
        %v529 = vsel %vm526, %v479, %v487
        %v530 = vsel %vm526, %v480, %v488
        %vm531 = vcmask 1044480
        %v532 = vsel %vm531, %v527, %v493
        %v533 = vsel %vm531, %v528, %v494
        %v534 = vsel %vm531, %v529, %v495
        %v535 = vsel %vm531, %v530, %v496
        %v536 = vld [vmem:[%s1] sm:$0xff]
        %v537 = vld [vmem:[%s1 + $0x8] sm:$0xff]
        %v538 = vld [vmem:[%s1 + $0x10] sm:$0xff]
        %540 = vset.pattern.permute.xlu0 0
        %541 = vperm.xlu0 %540, %v536
        %v542 = vpop.permute.xlu0 %541
        %545 = vset.pattern.permute.xlu0 0
        %546 = vperm.xlu0 %545, %v537
        %v547 = vpop.permute.xlu0 %546
        %550 = vset.pattern.permute.xlu0 0
        %551 = vperm.xlu0 %550, %v538
        %v552 = vpop.permute.xlu0 %551
        %v554 = vmul.f32 %v507, %v542
        %v555 = vmul.f32 %v508, %v542
        %v556 = vmul.f32 %v509, %v542
        %v557 = vmul.f32 %v510, %v542
        %v558 = vmul.f32 %v522, %v547
        %v559 = vmul.f32 %v523, %v547
        %v560 = vmul.f32 %v524, %v547
        %v561 = vmul.f32 %v525, %v547
        %v562 = vmul.f32 %v532, %v552
        %v563 = vmul.f32 %v533, %v552
        %v564 = vmul.f32 %v534, %v552
        %v565 = vmul.f32 %v535, %v552
        %v566 = vld [vmem:[%s2] sm:$0xff]
        %v567 = vld [vmem:[%s2 + $0x8] sm:$0xff]
        %v568 = vld [vmem:[%s2 + $0x10] sm:$0xff]
        %570 = vset.pattern.permute.xlu0 0
        %571 = vperm.xlu0 %570, %v566
        %v572 = vpop.permute.xlu0 %571
        %575 = vset.pattern.permute.xlu0 0
        %576 = vperm.xlu0 %575, %v567
        %v577 = vpop.permute.xlu0 %576
        %580 = vset.pattern.permute.xlu0 0
        %581 = vperm.xlu0 %580, %v568
        %v582 = vpop.permute.xlu0 %581
        %v584 = vadd.f32 %v554, %v572
        %v585 = vadd.f32 %v555, %v572
        %v586 = vadd.f32 %v556, %v572
        %v587 = vadd.f32 %v557, %v572
        %v588 = vadd.f32 %v558, %v577
        %v589 = vadd.f32 %v559, %v577
        %v590 = vadd.f32 %v560, %v577
        %v591 = vadd.f32 %v561, %v577
        %v592 = vadd.f32 %v562, %v582
        %v593 = vadd.f32 %v563, %v582
        %v594 = vadd.f32 %v564, %v582
        %v595 = vadd.f32 %v565, %v582
        %v596 = vand.u32 2147483647, %v584
        %vm597 = vcmp.le.f32.partialorder %v596, 0.7853982
        %vm598 = vcmp.lt.s32.totalorder %v584, 0
        %v599 = vand.u32 %v584, 2139095040
        %v600 = vshrl.u32 %v599, 23
        %v601 = vsub.s32 %v600, 127
        %v602 = vand.u32 2147483647, %v584
        %v603 = vand.u32 %v602, 8388607
        %v604 = vor.u32 %v603, 8388608
        %v605 = vsub.s32 0, %v604
        %v606 = vadd.s32 %v601, 1
        %vm607 = vcmp.gt.s32.totalorder %v606, 0
        %v608 = vsel %vm607, %v606, 0
        %v609 = vshrl.u32 %v608, 5
        %v610 = vand.u32 %v608, 31
        %v611 = vsub.s32 32, %v610
        %v612 = vshrl.u32 683565275, %v611
        %v613 = vshll.u32 683565275, %v610
        %v614 = vshrl.u32 2475754826, %v611
        %v615 = vor.u32 %v613, %v614
        %v616 = vshll.u32 2475754826, %v610
        %v617 = vshrl.u32 2131351028, %v611
        %v618 = vor.u32 %v616, %v617
        %v619 = vshll.u32 2131351028, %v610
        %v620 = vshrl.u32 2102212464, %v611
        %v621 = vor.u32 %v619, %v620
        %v622 = vshll.u32 2102212464, %v610
        %v623 = vshrl.u32 920167782, %v611
        %v624 = vor.u32 %v622, %v623
        %v625 = vshll.u32 920167782, %v610
        %v626 = vshrl.u32 1326507024, %v611
        %v627 = vor.u32 %v625, %v626
        %vm628 = vcmp.lt.s32.totalorder %v609, 1
        %vm629 = vcmp.lt.s32.totalorder %v609, 2
        %vm630 = vcmp.lt.s32.totalorder %v609, 3
        %vm631 = vcmp.lt.s32.totalorder %v609, 4
        %v632 = vsel %vm628, %v612, %v615
        %v633 = vsel %vm631, %v621, 2102212464
        %v634 = vsel %vm630, %v618, %v633
        %v635 = vsel %vm629, %v632, %v634
        %v636 = vsel %vm628, %v615, %v618
        %v637 = vsel %vm631, %v624, 920167782
        %v638 = vsel %vm630, %v621, %v637
        %v639 = vsel %vm629, %v636, %v638
        %v640 = vsel %vm628, %v618, %v621
        %v641 = vsel %vm631, %v627, 1326507024
        %v642 = vsel %vm630, %v624, %v641
        %v643 = vsel %vm629, %v640, %v642
        %v644 = vshll.u32 %v604, 8
        %v645 = vmul.u32.u64.compose %v644, %v643
        %v646 = vextract.low.u32 %v645
        %v647 = vextract.high.u32 %v645
        %v648 = vmul.u32.u64.compose %v644, %v639
        %v649 = vextract.low.u32 %v648
        %v650 = vextract.high.u32 %v648
        %v651 = vmul.u32 %v644, %v635
        %v652 = vadd.s32 %v647, %v649
        %vm653 = vc.u32 %v647, %v649
        %v654 = vadd.s32 %v650, 1
        %v655 = vsel %vm653, %v654, %v650
        %v656 = vadd.s32 %v651, %v655
        %v657 = vadd.s32 %v656, 536870912
        %v658 = vshrl.u32 %v657, 30
        %v659 = vshll.u32 %v658, 30
        %v660 = vsub.s32 %v656, %v659
        %vm661 = vcmp.lt.s32.totalorder %v660, 0
        %v662 = vsub.s32 0, %v660
        %v663 = vsel %vm661, %v662, %v660
        %v664 = vclz %v663
        %v665 = vsub.s32 %v664, 2
        %vm666 = vcmp.gt.s32.totalorder 0, %v665
        %v667 = vsel %vm666, 0, %v665
        %v668 = vsub.s32 32, %v667
        %v669 = vshll.u32 %v660, %v667
        %v670 = vshrl.u32 %v652, %v668
        %v671 = vor.u32 %v669, %v670
        %v672 = vsub.s32 4294967266, %v667
        %v673 = vadd.s32 %v672, 127
        %v674 = vshll.u32 %v673, 23
        %v675 = vor.u32 4788187, %v674
        %v676 = vand.u32 2147483647, %v675
        %v678 = vcvt.s32.f32 %v671
        %v679 = vmul.f32 %v678, %v676
        %v680 = vxor.u32 %v679, 2147483648
        %v681 = vsel %vm598, %v680, %v679
        %v682 = vsub.s32 4, %v658
        %v683 = vsel %vm598, %v682, %v658
        %v684 = vsel %vm597, %v584, %v681
        %v685 = vsel %vm597, 0, %v683
        %v686 = vcosq.f32.pop %v684
        %v687 = vsinq.f32.pop %v684
        %vm688 = vweird.f32 %v584
        %v689 = vadd.s32 %v685, 3
        %v690 = vand.u32 %v689, 3
        %vm691 = vcmp.lt.s32.totalorder %v690, 2
        %vm692 = vcmp.eq.s32.totalorder %v690, 0
        %v693 = vxor.u32 %v687, 2147483648
        %v694 = vsel %vm692, %v686, %v693
        %vm695 = vcmp.eq.s32.totalorder %v690, 2
        %v696 = vxor.u32 %v686, 2147483648
        %v697 = vsel %vm695, %v696, %v687
        %v698 = vsel %vm691, %v694, %v697
        %v699 = vsel %vm688, nan, %v698
        %v700 = vand.u32 2147483647, %v585
        %vm701 = vcmp.le.f32.partialorder %v700, 0.7853982
        %vm702 = vcmp.lt.s32.totalorder %v585, 0
        %v703 = vand.u32 %v585, 2139095040
        %v704 = vshrl.u32 %v703, 23
        %v705 = vsub.s32 %v704, 127
        %v706 = vand.u32 2147483647, %v585
        %v707 = vand.u32 %v706, 8388607
        %v708 = vor.u32 %v707, 8388608
        %v709 = vsub.s32 0, %v708
        %v710 = vadd.s32 %v705, 1
        %vm711 = vcmp.gt.s32.totalorder %v710, 0
        %v712 = vsel %vm711, %v710, 0
        %v713 = vshrl.u32 %v712, 5
        %v714 = vand.u32 %v712, 31
        %v715 = vsub.s32 32, %v714
        %v716 = vshrl.u32 683565275, %v715
        %v717 = vshll.u32 683565275, %v714
        %v718 = vshrl.u32 2475754826, %v715
        %v719 = vor.u32 %v717, %v718
        %v720 = vshll.u32 2475754826, %v714
        %v721 = vshrl.u32 2131351028, %v715
        %v722 = vor.u32 %v720, %v721
        %v723 = vshll.u32 2131351028, %v714
        %v724 = vshrl.u32 2102212464, %v715
        %v725 = vor.u32 %v723, %v724
        %v726 = vshll.u32 2102212464, %v714
        %v727 = vshrl.u32 920167782, %v715
        %v728 = vor.u32 %v726, %v727
        %v729 = vshll.u32 920167782, %v714
        %v730 = vshrl.u32 1326507024, %v715
        %v731 = vor.u32 %v729, %v730
        %vm732 = vcmp.lt.s32.totalorder %v713, 1
        %vm733 = vcmp.lt.s32.totalorder %v713, 2
        %vm734 = vcmp.lt.s32.totalorder %v713, 3
        %vm735 = vcmp.lt.s32.totalorder %v713, 4
        %v736 = vsel %vm732, %v716, %v719
        %v737 = vsel %vm735, %v725, 2102212464
        %v738 = vsel %vm734, %v722, %v737
        %v739 = vsel %vm733, %v736, %v738
        %v740 = vsel %vm732, %v719, %v722
        %v741 = vsel %vm735, %v728, 920167782
        %v742 = vsel %vm734, %v725, %v741
        %v743 = vsel %vm733, %v740, %v742
        %v744 = vsel %vm732, %v722, %v725
        %v745 = vsel %vm735, %v731, 1326507024
        %v746 = vsel %vm734, %v728, %v745
        %v747 = vsel %vm733, %v744, %v746
        %v748 = vshll.u32 %v708, 8
        %v749 = vmul.u32.u64.compose %v748, %v747
        %v750 = vextract.low.u32 %v749
        %v751 = vextract.high.u32 %v749
        %v752 = vmul.u32.u64.compose %v748, %v743
        %v753 = vextract.low.u32 %v752
        %v754 = vextract.high.u32 %v752
        %v755 = vmul.u32 %v748, %v739
        %v756 = vadd.s32 %v751, %v753
        %vm757 = vc.u32 %v751, %v753
        %v758 = vadd.s32 %v754, 1
        %v759 = vsel %vm757, %v758, %v754
        %v760 = vadd.s32 %v755, %v759
        %v761 = vadd.s32 %v760, 536870912
        %v762 = vshrl.u32 %v761, 30
        %v763 = vshll.u32 %v762, 30
        %v764 = vsub.s32 %v760, %v763
        %vm765 = vcmp.lt.s32.totalorder %v764, 0
        %v766 = vsub.s32 0, %v764
        %v767 = vsel %vm765, %v766, %v764
        %v768 = vclz %v767
        %v769 = vsub.s32 %v768, 2
        %vm770 = vcmp.gt.s32.totalorder 0, %v769
        %v771 = vsel %vm770, 0, %v769
        %v772 = vsub.s32 32, %v771
        %v773 = vshll.u32 %v764, %v771
        %v774 = vshrl.u32 %v756, %v772
        %v775 = vor.u32 %v773, %v774
        %v776 = vsub.s32 4294967266, %v771
        %v777 = vadd.s32 %v776, 127
        %v778 = vshll.u32 %v777, 23
        %v779 = vor.u32 4788187, %v778
        %v780 = vand.u32 2147483647, %v779
        %v782 = vcvt.s32.f32 %v775
        %v783 = vmul.f32 %v782, %v780
        %v784 = vxor.u32 %v783, 2147483648
        %v785 = vsel %vm702, %v784, %v783
        %v786 = vsub.s32 4, %v762
        %v787 = vsel %vm702, %v786, %v762
        %v788 = vsel %vm701, %v585, %v785
        %v789 = vsel %vm701, 0, %v787
        %v790 = vcosq.f32.pop %v788
        %v791 = vsinq.f32.pop %v788
        %vm792 = vweird.f32 %v585
        %v793 = vadd.s32 %v789, 3
        %v794 = vand.u32 %v793, 3
        %vm795 = vcmp.lt.s32.totalorder %v794, 2
        %vm796 = vcmp.eq.s32.totalorder %v794, 0
        %v797 = vxor.u32 %v791, 2147483648
        %v798 = vsel %vm796, %v790, %v797
        %vm799 = vcmp.eq.s32.totalorder %v794, 2
        %v800 = vxor.u32 %v790, 2147483648
        %v801 = vsel %vm799, %v800, %v791
        %v802 = vsel %vm795, %v798, %v801
        %v803 = vsel %vm792, nan, %v802
        %v804 = vand.u32 2147483647, %v586
        %vm805 = vcmp.le.f32.partialorder %v804, 0.7853982
        %vm806 = vcmp.lt.s32.totalorder %v586, 0
        %v807 = vand.u32 %v586, 2139095040
        %v808 = vshrl.u32 %v807, 23
        %v809 = vsub.s32 %v808, 127
        %v810 = vand.u32 2147483647, %v586
        %v811 = vand.u32 %v810, 8388607
        %v812 = vor.u32 %v811, 8388608
        %v813 = vsub.s32 0, %v812
        %v814 = vadd.s32 %v809, 1
        %vm815 = vcmp.gt.s32.totalorder %v814, 0
        %v816 = vsel %vm815, %v814, 0
        %v817 = vshrl.u32 %v816, 5
        %v818 = vand.u32 %v816, 31
        %v819 = vsub.s32 32, %v818
        %v820 = vshrl.u32 683565275, %v819
        %v821 = vshll.u32 683565275, %v818
        %v822 = vshrl.u32 2475754826, %v819
        %v823 = vor.u32 %v821, %v822
        %v824 = vshll.u32 2475754826, %v818
        %v825 = vshrl.u32 2131351028, %v819
        %v826 = vor.u32 %v824, %v825
        %v827 = vshll.u32 2131351028, %v818
        %v828 = vshrl.u32 2102212464, %v819
        %v829 = vor.u32 %v827, %v828
        %v830 = vshll.u32 2102212464, %v818
        %v831 = vshrl.u32 920167782, %v819
        %v832 = vor.u32 %v830, %v831
        %v833 = vshll.u32 920167782, %v818
        %v834 = vshrl.u32 1326507024, %v819
        %v835 = vor.u32 %v833, %v834
        %vm836 = vcmp.lt.s32.totalorder %v817, 1
        %vm837 = vcmp.lt.s32.totalorder %v817, 2
        %vm838 = vcmp.lt.s32.totalorder %v817, 3
        %vm839 = vcmp.lt.s32.totalorder %v817, 4
        %v840 = vsel %vm836, %v820, %v823
        %v841 = vsel %vm839, %v829, 2102212464
        %v842 = vsel %vm838, %v826, %v841
        %v843 = vsel %vm837, %v840, %v842
        %v844 = vsel %vm836, %v823, %v826
        %v845 = vsel %vm839, %v832, 920167782
        %v846 = vsel %vm838, %v829, %v845
        %v847 = vsel %vm837, %v844, %v846
        %v848 = vsel %vm836, %v826, %v829
        %v849 = vsel %vm839, %v835, 1326507024
        %v850 = vsel %vm838, %v832, %v849
        %v851 = vsel %vm837, %v848, %v850
        %v852 = vshll.u32 %v812, 8
        %v853 = vmul.u32.u64.compose %v852, %v851
        %v854 = vextract.low.u32 %v853
        %v855 = vextract.high.u32 %v853
        %v856 = vmul.u32.u64.compose %v852, %v847
        %v857 = vextract.low.u32 %v856
        %v858 = vextract.high.u32 %v856
        %v859 = vmul.u32 %v852, %v843
        %v860 = vadd.s32 %v855, %v857
        %vm861 = vc.u32 %v855, %v857
        %v862 = vadd.s32 %v858, 1
        %v863 = vsel %vm861, %v862, %v858
        %v864 = vadd.s32 %v859, %v863
        %v865 = vadd.s32 %v864, 536870912
        %v866 = vshrl.u32 %v865, 30
        %v867 = vshll.u32 %v866, 30
        %v868 = vsub.s32 %v864, %v867
        %vm869 = vcmp.lt.s32.totalorder %v868, 0
        %v870 = vsub.s32 0, %v868
        %v871 = vsel %vm869, %v870, %v868
        %v872 = vclz %v871
        %v873 = vsub.s32 %v872, 2
        %vm874 = vcmp.gt.s32.totalorder 0, %v873
        %v875 = vsel %vm874, 0, %v873
        %v876 = vsub.s32 32, %v875
        %v877 = vshll.u32 %v868, %v875
        %v878 = vshrl.u32 %v860, %v876
        %v879 = vor.u32 %v877, %v878
        %v880 = vsub.s32 4294967266, %v875
        %v881 = vadd.s32 %v880, 127
        %v882 = vshll.u32 %v881, 23
        %v883 = vor.u32 4788187, %v882
        %v884 = vand.u32 2147483647, %v883
        %v886 = vcvt.s32.f32 %v879
        %v887 = vmul.f32 %v886, %v884
        %v888 = vxor.u32 %v887, 2147483648
        %v889 = vsel %vm806, %v888, %v887
        %v890 = vsub.s32 4, %v866
        %v891 = vsel %vm806, %v890, %v866
        %v892 = vsel %vm805, %v586, %v889
        %v893 = vsel %vm805, 0, %v891
        %v894 = vcosq.f32.pop %v892
        %v895 = vsinq.f32.pop %v892
        %vm896 = vweird.f32 %v586
        %v897 = vadd.s32 %v893, 3
        %v898 = vand.u32 %v897, 3
        %vm899 = vcmp.lt.s32.totalorder %v898, 2
        %vm900 = vcmp.eq.s32.totalorder %v898, 0
        %v901 = vxor.u32 %v895, 2147483648
        %v902 = vsel %vm900, %v894, %v901
        %vm903 = vcmp.eq.s32.totalorder %v898, 2
        %v904 = vxor.u32 %v894, 2147483648
        %v905 = vsel %vm903, %v904, %v895
        %v906 = vsel %vm899, %v902, %v905
        %v907 = vsel %vm896, nan, %v906
        %v908 = vand.u32 2147483647, %v587
        %vm909 = vcmp.le.f32.partialorder %v908, 0.7853982
        %vm910 = vcmp.lt.s32.totalorder %v587, 0
        %v911 = vand.u32 %v587, 2139095040
        %v912 = vshrl.u32 %v911, 23
        %v913 = vsub.s32 %v912, 127
        %v914 = vand.u32 2147483647, %v587
        %v915 = vand.u32 %v914, 8388607
        %v916 = vor.u32 %v915, 8388608
        %v917 = vsub.s32 0, %v916
        %v918 = vadd.s32 %v913, 1
        %vm919 = vcmp.gt.s32.totalorder %v918, 0
        %v920 = vsel %vm919, %v918, 0
        %v921 = vshrl.u32 %v920, 5
        %v922 = vand.u32 %v920, 31
        %v923 = vsub.s32 32, %v922
        %v924 = vshrl.u32 683565275, %v923
        %v925 = vshll.u32 683565275, %v922
        %v926 = vshrl.u32 2475754826, %v923
        %v927 = vor.u32 %v925, %v926
        %v928 = vshll.u32 2475754826, %v922
        %v929 = vshrl.u32 2131351028, %v923
        %v930 = vor.u32 %v928, %v929
        %v931 = vshll.u32 2131351028, %v922
        %v932 = vshrl.u32 2102212464, %v923
        %v933 = vor.u32 %v931, %v932
        %v934 = vshll.u32 2102212464, %v922
        %v935 = vshrl.u32 920167782, %v923
        %v936 = vor.u32 %v934, %v935
        %v937 = vshll.u32 920167782, %v922
        %v938 = vshrl.u32 1326507024, %v923
        %v939 = vor.u32 %v937, %v938
        %vm940 = vcmp.lt.s32.totalorder %v921, 1
        %vm941 = vcmp.lt.s32.totalorder %v921, 2
        %vm942 = vcmp.lt.s32.totalorder %v921, 3
        %vm943 = vcmp.lt.s32.totalorder %v921, 4
        %v944 = vsel %vm940, %v924, %v927
        %v945 = vsel %vm943, %v933, 2102212464
        %v946 = vsel %vm942, %v930, %v945
        %v947 = vsel %vm941, %v944, %v946
        %v948 = vsel %vm940, %v927, %v930
        %v949 = vsel %vm943, %v936, 920167782
        %v950 = vsel %vm942, %v933, %v949
        %v951 = vsel %vm941, %v948, %v950
        %v952 = vsel %vm940, %v930, %v933
        %v953 = vsel %vm943, %v939, 1326507024
        %v954 = vsel %vm942, %v936, %v953
        %v955 = vsel %vm941, %v952, %v954
        %v956 = vshll.u32 %v916, 8
        %v957 = vmul.u32.u64.compose %v956, %v955
        %v958 = vextract.low.u32 %v957
        %v959 = vextract.high.u32 %v957
        %v960 = vmul.u32.u64.compose %v956, %v951
        %v961 = vextract.low.u32 %v960
        %v962 = vextract.high.u32 %v960
        %v963 = vmul.u32 %v956, %v947
        %v964 = vadd.s32 %v959, %v961
        %vm965 = vc.u32 %v959, %v961
        %v966 = vadd.s32 %v962, 1
        %v967 = vsel %vm965, %v966, %v962
        %v968 = vadd.s32 %v963, %v967
        %v969 = vadd.s32 %v968, 536870912
        %v970 = vshrl.u32 %v969, 30
        %v971 = vshll.u32 %v970, 30
        %v972 = vsub.s32 %v968, %v971
        %vm973 = vcmp.lt.s32.totalorder %v972, 0
        %v974 = vsub.s32 0, %v972
        %v975 = vsel %vm973, %v974, %v972
        %v976 = vclz %v975
        %v977 = vsub.s32 %v976, 2
        %vm978 = vcmp.gt.s32.totalorder 0, %v977
        %v979 = vsel %vm978, 0, %v977
        %v980 = vsub.s32 32, %v979
        %v981 = vshll.u32 %v972, %v979
        %v982 = vshrl.u32 %v964, %v980
        %v983 = vor.u32 %v981, %v982
        %v984 = vsub.s32 4294967266, %v979
        %v985 = vadd.s32 %v984, 127
        %v986 = vshll.u32 %v985, 23
        %v987 = vor.u32 4788187, %v986
        %v988 = vand.u32 2147483647, %v987
        %v990 = vcvt.s32.f32 %v983
        %v991 = vmul.f32 %v990, %v988
        %v992 = vxor.u32 %v991, 2147483648
        %v993 = vsel %vm910, %v992, %v991
        %v994 = vsub.s32 4, %v970
        %v995 = vsel %vm910, %v994, %v970
        %v996 = vsel %vm909, %v587, %v993
        %v997 = vsel %vm909, 0, %v995
        %v998 = vcosq.f32.pop %v996
        %v999 = vsinq.f32.pop %v996
        %vm1000 = vweird.f32 %v587
        %v1001 = vadd.s32 %v997, 3
        %v1002 = vand.u32 %v1001, 3
        %vm1003 = vcmp.lt.s32.totalorder %v1002, 2
        %vm1004 = vcmp.eq.s32.totalorder %v1002, 0
        %v1005 = vxor.u32 %v999, 2147483648
        %v1006 = vsel %vm1004, %v998, %v1005
        %vm1007 = vcmp.eq.s32.totalorder %v1002, 2
        %v1008 = vxor.u32 %v998, 2147483648
        %v1009 = vsel %vm1007, %v1008, %v999
        %v1010 = vsel %vm1003, %v1006, %v1009
        %v1011 = vsel %vm1000, nan, %v1010
        %v1012 = vand.u32 2147483647, %v588
        %vm1013 = vcmp.le.f32.partialorder %v1012, 0.7853982
        %vm1014 = vcmp.lt.s32.totalorder %v588, 0
        %v1015 = vand.u32 %v588, 2139095040
        %v1016 = vshrl.u32 %v1015, 23
        %v1017 = vsub.s32 %v1016, 127
        %v1018 = vand.u32 2147483647, %v588
        %v1019 = vand.u32 %v1018, 8388607
        %v1020 = vor.u32 %v1019, 8388608
        %v1021 = vsub.s32 0, %v1020
        %v1022 = vadd.s32 %v1017, 1
        %vm1023 = vcmp.gt.s32.totalorder %v1022, 0
        %v1024 = vsel %vm1023, %v1022, 0
        %v1025 = vshrl.u32 %v1024, 5
        %v1026 = vand.u32 %v1024, 31
        %v1027 = vsub.s32 32, %v1026
        %v1028 = vshrl.u32 683565275, %v1027
        %v1029 = vshll.u32 683565275, %v1026
        %v1030 = vshrl.u32 2475754826, %v1027
        %v1031 = vor.u32 %v1029, %v1030
        %v1032 = vshll.u32 2475754826, %v1026
        %v1033 = vshrl.u32 2131351028, %v1027
        %v1034 = vor.u32 %v1032, %v1033
        %v1035 = vshll.u32 2131351028, %v1026
        %v1036 = vshrl.u32 2102212464, %v1027
        %v1037 = vor.u32 %v1035, %v1036
        %v1038 = vshll.u32 2102212464, %v1026
        %v1039 = vshrl.u32 920167782, %v1027
        %v1040 = vor.u32 %v1038, %v1039
        %v1041 = vshll.u32 920167782, %v1026
        %v1042 = vshrl.u32 1326507024, %v1027
        %v1043 = vor.u32 %v1041, %v1042
        %vm1044 = vcmp.lt.s32.totalorder %v1025, 1
        %vm1045 = vcmp.lt.s32.totalorder %v1025, 2
        %vm1046 = vcmp.lt.s32.totalorder %v1025, 3
        %vm1047 = vcmp.lt.s32.totalorder %v1025, 4
        %v1048 = vsel %vm1044, %v1028, %v1031
        %v1049 = vsel %vm1047, %v1037, 2102212464
        %v1050 = vsel %vm1046, %v1034, %v1049
        %v1051 = vsel %vm1045, %v1048, %v1050
        %v1052 = vsel %vm1044, %v1031, %v1034
        %v1053 = vsel %vm1047, %v1040, 920167782
        %v1054 = vsel %vm1046, %v1037, %v1053
        %v1055 = vsel %vm1045, %v1052, %v1054
        %v1056 = vsel %vm1044, %v1034, %v1037
        %v1057 = vsel %vm1047, %v1043, 1326507024
        %v1058 = vsel %vm1046, %v1040, %v1057
        %v1059 = vsel %vm1045, %v1056, %v1058
        %v1060 = vshll.u32 %v1020, 8
        %v1061 = vmul.u32.u64.compose %v1060, %v1059
        %v1062 = vextract.low.u32 %v1061
        %v1063 = vextract.high.u32 %v1061
        %v1064 = vmul.u32.u64.compose %v1060, %v1055
        %v1065 = vextract.low.u32 %v1064
        %v1066 = vextract.high.u32 %v1064
        %v1067 = vmul.u32 %v1060, %v1051
        %v1068 = vadd.s32 %v1063, %v1065
        %vm1069 = vc.u32 %v1063, %v1065
        %v1070 = vadd.s32 %v1066, 1
        %v1071 = vsel %vm1069, %v1070, %v1066
        %v1072 = vadd.s32 %v1067, %v1071
        %v1073 = vadd.s32 %v1072, 536870912
        %v1074 = vshrl.u32 %v1073, 30
        %v1075 = vshll.u32 %v1074, 30
        %v1076 = vsub.s32 %v1072, %v1075
        %vm1077 = vcmp.lt.s32.totalorder %v1076, 0
        %v1078 = vsub.s32 0, %v1076
        %v1079 = vsel %vm1077, %v1078, %v1076
        %v1080 = vclz %v1079
        %v1081 = vsub.s32 %v1080, 2
        %vm1082 = vcmp.gt.s32.totalorder 0, %v1081
        %v1083 = vsel %vm1082, 0, %v1081
        %v1084 = vsub.s32 32, %v1083
        %v1085 = vshll.u32 %v1076, %v1083
        %v1086 = vshrl.u32 %v1068, %v1084
        %v1087 = vor.u32 %v1085, %v1086
        %v1088 = vsub.s32 4294967266, %v1083
        %v1089 = vadd.s32 %v1088, 127
        %v1090 = vshll.u32 %v1089, 23
        %v1091 = vor.u32 4788187, %v1090
        %v1092 = vand.u32 2147483647, %v1091
        %v1094 = vcvt.s32.f32 %v1087
        %v1095 = vmul.f32 %v1094, %v1092
        %v1096 = vxor.u32 %v1095, 2147483648
        %v1097 = vsel %vm1014, %v1096, %v1095
        %v1098 = vsub.s32 4, %v1074
        %v1099 = vsel %vm1014, %v1098, %v1074
        %v1100 = vsel %vm1013, %v588, %v1097
        %v1101 = vsel %vm1013, 0, %v1099
        %v1102 = vcosq.f32.pop %v1100
        %v1103 = vsinq.f32.pop %v1100
        %vm1104 = vweird.f32 %v588
        %v1105 = vadd.s32 %v1101, 3
        %v1106 = vand.u32 %v1105, 3
        %vm1107 = vcmp.lt.s32.totalorder %v1106, 2
        %vm1108 = vcmp.eq.s32.totalorder %v1106, 0
        %v1109 = vxor.u32 %v1103, 2147483648
        %v1110 = vsel %vm1108, %v1102, %v1109
        %vm1111 = vcmp.eq.s32.totalorder %v1106, 2
        %v1112 = vxor.u32 %v1102, 2147483648
        %v1113 = vsel %vm1111, %v1112, %v1103
        %v1114 = vsel %vm1107, %v1110, %v1113
        %v1115 = vsel %vm1104, nan, %v1114
        %v1116 = vand.u32 2147483647, %v589
        %vm1117 = vcmp.le.f32.partialorder %v1116, 0.7853982
        %vm1118 = vcmp.lt.s32.totalorder %v589, 0
        %v1119 = vand.u32 %v589, 2139095040
        %v1120 = vshrl.u32 %v1119, 23
        %v1121 = vsub.s32 %v1120, 127
        %v1122 = vand.u32 2147483647, %v589
        %v1123 = vand.u32 %v1122, 8388607
        %v1124 = vor.u32 %v1123, 8388608
        %v1125 = vsub.s32 0, %v1124
        %v1126 = vadd.s32 %v1121, 1
        %vm1127 = vcmp.gt.s32.totalorder %v1126, 0
        %v1128 = vsel %vm1127, %v1126, 0
        %v1129 = vshrl.u32 %v1128, 5
        %v1130 = vand.u32 %v1128, 31
        %v1131 = vsub.s32 32, %v1130
        %v1132 = vshrl.u32 683565275, %v1131
        %v1133 = vshll.u32 683565275, %v1130
        %v1134 = vshrl.u32 2475754826, %v1131
        %v1135 = vor.u32 %v1133, %v1134
        %v1136 = vshll.u32 2475754826, %v1130
        %v1137 = vshrl.u32 2131351028, %v1131
        %v1138 = vor.u32 %v1136, %v1137
        %v1139 = vshll.u32 2131351028, %v1130
        %v1140 = vshrl.u32 2102212464, %v1131
        %v1141 = vor.u32 %v1139, %v1140
        %v1142 = vshll.u32 2102212464, %v1130
        %v1143 = vshrl.u32 920167782, %v1131
        %v1144 = vor.u32 %v1142, %v1143
        %v1145 = vshll.u32 920167782, %v1130
        %v1146 = vshrl.u32 1326507024, %v1131
        %v1147 = vor.u32 %v1145, %v1146
        %vm1148 = vcmp.lt.s32.totalorder %v1129, 1
        %vm1149 = vcmp.lt.s32.totalorder %v1129, 2
        %vm1150 = vcmp.lt.s32.totalorder %v1129, 3
        %vm1151 = vcmp.lt.s32.totalorder %v1129, 4
        %v1152 = vsel %vm1148, %v1132, %v1135
        %v1153 = vsel %vm1151, %v1141, 2102212464
        %v1154 = vsel %vm1150, %v1138, %v1153
        %v1155 = vsel %vm1149, %v1152, %v1154
        %v1156 = vsel %vm1148, %v1135, %v1138
        %v1157 = vsel %vm1151, %v1144, 920167782
        %v1158 = vsel %vm1150, %v1141, %v1157
        %v1159 = vsel %vm1149, %v1156, %v1158
        %v1160 = vsel %vm1148, %v1138, %v1141
        %v1161 = vsel %vm1151, %v1147, 1326507024
        %v1162 = vsel %vm1150, %v1144, %v1161
        %v1163 = vsel %vm1149, %v1160, %v1162
        %v1164 = vshll.u32 %v1124, 8
        %v1165 = vmul.u32.u64.compose %v1164, %v1163
        %v1166 = vextract.low.u32 %v1165
        %v1167 = vextract.high.u32 %v1165
        %v1168 = vmul.u32.u64.compose %v1164, %v1159
        %v1169 = vextract.low.u32 %v1168
        %v1170 = vextract.high.u32 %v1168
        %v1171 = vmul.u32 %v1164, %v1155
        %v1172 = vadd.s32 %v1167, %v1169
        %vm1173 = vc.u32 %v1167, %v1169
        %v1174 = vadd.s32 %v1170, 1
        %v1175 = vsel %vm1173, %v1174, %v1170
        %v1176 = vadd.s32 %v1171, %v1175
        %v1177 = vadd.s32 %v1176, 536870912
        %v1178 = vshrl.u32 %v1177, 30
        %v1179 = vshll.u32 %v1178, 30
        %v1180 = vsub.s32 %v1176, %v1179
        %vm1181 = vcmp.lt.s32.totalorder %v1180, 0
        %v1182 = vsub.s32 0, %v1180
        %v1183 = vsel %vm1181, %v1182, %v1180
        %v1184 = vclz %v1183
        %v1185 = vsub.s32 %v1184, 2
        %vm1186 = vcmp.gt.s32.totalorder 0, %v1185
        %v1187 = vsel %vm1186, 0, %v1185
        %v1188 = vsub.s32 32, %v1187
        %v1189 = vshll.u32 %v1180, %v1187
        %v1190 = vshrl.u32 %v1172, %v1188
        %v1191 = vor.u32 %v1189, %v1190
        %v1192 = vsub.s32 4294967266, %v1187
        %v1193 = vadd.s32 %v1192, 127
        %v1194 = vshll.u32 %v1193, 23
        %v1195 = vor.u32 4788187, %v1194
        %v1196 = vand.u32 2147483647, %v1195
        %v1198 = vcvt.s32.f32 %v1191
        %v1199 = vmul.f32 %v1198, %v1196
        %v1200 = vxor.u32 %v1199, 2147483648
        %v1201 = vsel %vm1118, %v1200, %v1199
        %v1202 = vsub.s32 4, %v1178
        %v1203 = vsel %vm1118, %v1202, %v1178
        %v1204 = vsel %vm1117, %v589, %v1201
        %v1205 = vsel %vm1117, 0, %v1203
        %v1206 = vcosq.f32.pop %v1204
        %v1207 = vsinq.f32.pop %v1204
        %vm1208 = vweird.f32 %v589
        %v1209 = vadd.s32 %v1205, 3
        %v1210 = vand.u32 %v1209, 3
        %vm1211 = vcmp.lt.s32.totalorder %v1210, 2
        %vm1212 = vcmp.eq.s32.totalorder %v1210, 0
        %v1213 = vxor.u32 %v1207, 2147483648
        %v1214 = vsel %vm1212, %v1206, %v1213
        %vm1215 = vcmp.eq.s32.totalorder %v1210, 2
        %v1216 = vxor.u32 %v1206, 2147483648
        %v1217 = vsel %vm1215, %v1216, %v1207
        %v1218 = vsel %vm1211, %v1214, %v1217
        %v1219 = vsel %vm1208, nan, %v1218
        %v1220 = vand.u32 2147483647, %v590
        %vm1221 = vcmp.le.f32.partialorder %v1220, 0.7853982
        %vm1222 = vcmp.lt.s32.totalorder %v590, 0
        %v1223 = vand.u32 %v590, 2139095040
        %v1224 = vshrl.u32 %v1223, 23
        %v1225 = vsub.s32 %v1224, 127
        %v1226 = vand.u32 2147483647, %v590
        %v1227 = vand.u32 %v1226, 8388607
        %v1228 = vor.u32 %v1227, 8388608
        %v1229 = vsub.s32 0, %v1228
        %v1230 = vadd.s32 %v1225, 1
        %vm1231 = vcmp.gt.s32.totalorder %v1230, 0
        %v1232 = vsel %vm1231, %v1230, 0
        %v1233 = vshrl.u32 %v1232, 5
        %v1234 = vand.u32 %v1232, 31
        %v1235 = vsub.s32 32, %v1234
        %v1236 = vshrl.u32 683565275, %v1235
        %v1237 = vshll.u32 683565275, %v1234
        %v1238 = vshrl.u32 2475754826, %v1235
        %v1239 = vor.u32 %v1237, %v1238
        %v1240 = vshll.u32 2475754826, %v1234
        %v1241 = vshrl.u32 2131351028, %v1235
        %v1242 = vor.u32 %v1240, %v1241
        %v1243 = vshll.u32 2131351028, %v1234
        %v1244 = vshrl.u32 2102212464, %v1235
        %v1245 = vor.u32 %v1243, %v1244
        %v1246 = vshll.u32 2102212464, %v1234
        %v1247 = vshrl.u32 920167782, %v1235
        %v1248 = vor.u32 %v1246, %v1247
        %v1249 = vshll.u32 920167782, %v1234
        %v1250 = vshrl.u32 1326507024, %v1235
        %v1251 = vor.u32 %v1249, %v1250
        %vm1252 = vcmp.lt.s32.totalorder %v1233, 1
        %vm1253 = vcmp.lt.s32.totalorder %v1233, 2
        %vm1254 = vcmp.lt.s32.totalorder %v1233, 3
        %vm1255 = vcmp.lt.s32.totalorder %v1233, 4
        %v1256 = vsel %vm1252, %v1236, %v1239
        %v1257 = vsel %vm1255, %v1245, 2102212464
        %v1258 = vsel %vm1254, %v1242, %v1257
        %v1259 = vsel %vm1253, %v1256, %v1258
        %v1260 = vsel %vm1252, %v1239, %v1242
        %v1261 = vsel %vm1255, %v1248, 920167782
        %v1262 = vsel %vm1254, %v1245, %v1261
        %v1263 = vsel %vm1253, %v1260, %v1262
        %v1264 = vsel %vm1252, %v1242, %v1245
        %v1265 = vsel %vm1255, %v1251, 1326507024
        %v1266 = vsel %vm1254, %v1248, %v1265
        %v1267 = vsel %vm1253, %v1264, %v1266
        %v1268 = vshll.u32 %v1228, 8
        %v1269 = vmul.u32.u64.compose %v1268, %v1267
        %v1270 = vextract.low.u32 %v1269
        %v1271 = vextract.high.u32 %v1269
        %v1272 = vmul.u32.u64.compose %v1268, %v1263
        %v1273 = vextract.low.u32 %v1272
        %v1274 = vextract.high.u32 %v1272
        %v1275 = vmul.u32 %v1268, %v1259
        %v1276 = vadd.s32 %v1271, %v1273
        %vm1277 = vc.u32 %v1271, %v1273
        %v1278 = vadd.s32 %v1274, 1
        %v1279 = vsel %vm1277, %v1278, %v1274
        %v1280 = vadd.s32 %v1275, %v1279
        %v1281 = vadd.s32 %v1280, 536870912
        %v1282 = vshrl.u32 %v1281, 30
        %v1283 = vshll.u32 %v1282, 30
        %v1284 = vsub.s32 %v1280, %v1283
        %vm1285 = vcmp.lt.s32.totalorder %v1284, 0
        %v1286 = vsub.s32 0, %v1284
        %v1287 = vsel %vm1285, %v1286, %v1284
        %v1288 = vclz %v1287
        %v1289 = vsub.s32 %v1288, 2
        %vm1290 = vcmp.gt.s32.totalorder 0, %v1289
        %v1291 = vsel %vm1290, 0, %v1289
        %v1292 = vsub.s32 32, %v1291
        %v1293 = vshll.u32 %v1284, %v1291
        %v1294 = vshrl.u32 %v1276, %v1292
        %v1295 = vor.u32 %v1293, %v1294
        %v1296 = vsub.s32 4294967266, %v1291
        %v1297 = vadd.s32 %v1296, 127
        %v1298 = vshll.u32 %v1297, 23
        %v1299 = vor.u32 4788187, %v1298
        %v1300 = vand.u32 2147483647, %v1299
        %v1302 = vcvt.s32.f32 %v1295
        %v1303 = vmul.f32 %v1302, %v1300
        %v1304 = vxor.u32 %v1303, 2147483648
        %v1305 = vsel %vm1222, %v1304, %v1303
        %v1306 = vsub.s32 4, %v1282
        %v1307 = vsel %vm1222, %v1306, %v1282
        %v1308 = vsel %vm1221, %v590, %v1305
        %v1309 = vsel %vm1221, 0, %v1307
        %v1310 = vcosq.f32.pop %v1308
        %v1311 = vsinq.f32.pop %v1308
        %vm1312 = vweird.f32 %v590
        %v1313 = vadd.s32 %v1309, 3
        %v1314 = vand.u32 %v1313, 3
        %vm1315 = vcmp.lt.s32.totalorder %v1314, 2
        %vm1316 = vcmp.eq.s32.totalorder %v1314, 0
        %v1317 = vxor.u32 %v1311, 2147483648
        %v1318 = vsel %vm1316, %v1310, %v1317
        %vm1319 = vcmp.eq.s32.totalorder %v1314, 2
        %v1320 = vxor.u32 %v1310, 2147483648
        %v1321 = vsel %vm1319, %v1320, %v1311
        %v1322 = vsel %vm1315, %v1318, %v1321
        %v1323 = vsel %vm1312, nan, %v1322
        %v1324 = vand.u32 2147483647, %v591
        %vm1325 = vcmp.le.f32.partialorder %v1324, 0.7853982
        %vm1326 = vcmp.lt.s32.totalorder %v591, 0
        %v1327 = vand.u32 %v591, 2139095040
        %v1328 = vshrl.u32 %v1327, 23
        %v1329 = vsub.s32 %v1328, 127
        %v1330 = vand.u32 2147483647, %v591
        %v1331 = vand.u32 %v1330, 8388607
        %v1332 = vor.u32 %v1331, 8388608
        %v1333 = vsub.s32 0, %v1332
        %v1334 = vadd.s32 %v1329, 1
        %vm1335 = vcmp.gt.s32.totalorder %v1334, 0
        %v1336 = vsel %vm1335, %v1334, 0
        %v1337 = vshrl.u32 %v1336, 5
        %v1338 = vand.u32 %v1336, 31
        %v1339 = vsub.s32 32, %v1338
        %v1340 = vshrl.u32 683565275, %v1339
        %v1341 = vshll.u32 683565275, %v1338
        %v1342 = vshrl.u32 2475754826, %v1339
        %v1343 = vor.u32 %v1341, %v1342
        %v1344 = vshll.u32 2475754826, %v1338
        %v1345 = vshrl.u32 2131351028, %v1339
        %v1346 = vor.u32 %v1344, %v1345
        %v1347 = vshll.u32 2131351028, %v1338
        %v1348 = vshrl.u32 2102212464, %v1339
        %v1349 = vor.u32 %v1347, %v1348
        %v1350 = vshll.u32 2102212464, %v1338
        %v1351 = vshrl.u32 920167782, %v1339
        %v1352 = vor.u32 %v1350, %v1351
        %v1353 = vshll.u32 920167782, %v1338
        %v1354 = vshrl.u32 1326507024, %v1339
        %v1355 = vor.u32 %v1353, %v1354
        %vm1356 = vcmp.lt.s32.totalorder %v1337, 1
        %vm1357 = vcmp.lt.s32.totalorder %v1337, 2
        %vm1358 = vcmp.lt.s32.totalorder %v1337, 3
        %vm1359 = vcmp.lt.s32.totalorder %v1337, 4
        %v1360 = vsel %vm1356, %v1340, %v1343
        %v1361 = vsel %vm1359, %v1349, 2102212464
        %v1362 = vsel %vm1358, %v1346, %v1361
        %v1363 = vsel %vm1357, %v1360, %v1362
        %v1364 = vsel %vm1356, %v1343, %v1346
        %v1365 = vsel %vm1359, %v1352, 920167782
        %v1366 = vsel %vm1358, %v1349, %v1365
        %v1367 = vsel %vm1357, %v1364, %v1366
        %v1368 = vsel %vm1356, %v1346, %v1349
        %v1369 = vsel %vm1359, %v1355, 1326507024
        %v1370 = vsel %vm1358, %v1352, %v1369
        %v1371 = vsel %vm1357, %v1368, %v1370
        %v1372 = vshll.u32 %v1332, 8
        %v1373 = vmul.u32.u64.compose %v1372, %v1371
        %v1374 = vextract.low.u32 %v1373
        %v1375 = vextract.high.u32 %v1373
        %v1376 = vmul.u32.u64.compose %v1372, %v1367
        %v1377 = vextract.low.u32 %v1376
        %v1378 = vextract.high.u32 %v1376
        %v1379 = vmul.u32 %v1372, %v1363
        %v1380 = vadd.s32 %v1375, %v1377
        %vm1381 = vc.u32 %v1375, %v1377
        %v1382 = vadd.s32 %v1378, 1
        %v1383 = vsel %vm1381, %v1382, %v1378
        %v1384 = vadd.s32 %v1379, %v1383
        %v1385 = vadd.s32 %v1384, 536870912
        %v1386 = vshrl.u32 %v1385, 30
        %v1387 = vshll.u32 %v1386, 30
        %v1388 = vsub.s32 %v1384, %v1387
        %vm1389 = vcmp.lt.s32.totalorder %v1388, 0
        %v1390 = vsub.s32 0, %v1388
        %v1391 = vsel %vm1389, %v1390, %v1388
        %v1392 = vclz %v1391
        %v1393 = vsub.s32 %v1392, 2
        %vm1394 = vcmp.gt.s32.totalorder 0, %v1393
        %v1395 = vsel %vm1394, 0, %v1393
        %v1396 = vsub.s32 32, %v1395
        %v1397 = vshll.u32 %v1388, %v1395
        %v1398 = vshrl.u32 %v1380, %v1396
        %v1399 = vor.u32 %v1397, %v1398
        %v1400 = vsub.s32 4294967266, %v1395
        %v1401 = vadd.s32 %v1400, 127
        %v1402 = vshll.u32 %v1401, 23
        %v1403 = vor.u32 4788187, %v1402
        %v1404 = vand.u32 2147483647, %v1403
        %v1406 = vcvt.s32.f32 %v1399
        %v1407 = vmul.f32 %v1406, %v1404
        %v1408 = vxor.u32 %v1407, 2147483648
        %v1409 = vsel %vm1326, %v1408, %v1407
        %v1410 = vsub.s32 4, %v1386
        %v1411 = vsel %vm1326, %v1410, %v1386
        %v1412 = vsel %vm1325, %v591, %v1409
        %v1413 = vsel %vm1325, 0, %v1411
        %v1414 = vcosq.f32.pop %v1412
        %v1415 = vsinq.f32.pop %v1412
        %vm1416 = vweird.f32 %v591
        %v1417 = vadd.s32 %v1413, 3
        %v1418 = vand.u32 %v1417, 3
        %vm1419 = vcmp.lt.s32.totalorder %v1418, 2
        %vm1420 = vcmp.eq.s32.totalorder %v1418, 0
        %v1421 = vxor.u32 %v1415, 2147483648
        %v1422 = vsel %vm1420, %v1414, %v1421
        %vm1423 = vcmp.eq.s32.totalorder %v1418, 2
        %v1424 = vxor.u32 %v1414, 2147483648
        %v1425 = vsel %vm1423, %v1424, %v1415
        %v1426 = vsel %vm1419, %v1422, %v1425
        %v1427 = vsel %vm1416, nan, %v1426
        %v1428 = vand.u32 2147483647, %v592
        %vm1429 = vcmp.le.f32.partialorder %v1428, 0.7853982
        %vm1430 = vcmp.lt.s32.totalorder %v592, 0
        %v1431 = vand.u32 %v592, 2139095040
        %v1432 = vshrl.u32 %v1431, 23
        %v1433 = vsub.s32 %v1432, 127
        %v1434 = vand.u32 2147483647, %v592
        %v1435 = vand.u32 %v1434, 8388607
        %v1436 = vor.u32 %v1435, 8388608
        %v1437 = vsub.s32 0, %v1436
        %v1438 = vadd.s32 %v1433, 1
        %vm1439 = vcmp.gt.s32.totalorder %v1438, 0
        %v1440 = vsel %vm1439, %v1438, 0
        %v1441 = vshrl.u32 %v1440, 5
        %v1442 = vand.u32 %v1440, 31
        %v1443 = vsub.s32 32, %v1442
        %v1444 = vshrl.u32 683565275, %v1443
        %v1445 = vshll.u32 683565275, %v1442
        %v1446 = vshrl.u32 2475754826, %v1443
        %v1447 = vor.u32 %v1445, %v1446
        %v1448 = vshll.u32 2475754826, %v1442
        %v1449 = vshrl.u32 2131351028, %v1443
        %v1450 = vor.u32 %v1448, %v1449
        %v1451 = vshll.u32 2131351028, %v1442
        %v1452 = vshrl.u32 2102212464, %v1443
        %v1453 = vor.u32 %v1451, %v1452
        %v1454 = vshll.u32 2102212464, %v1442
        %v1455 = vshrl.u32 920167782, %v1443
        %v1456 = vor.u32 %v1454, %v1455
        %v1457 = vshll.u32 920167782, %v1442
        %v1458 = vshrl.u32 1326507024, %v1443
        %v1459 = vor.u32 %v1457, %v1458
        %vm1460 = vcmp.lt.s32.totalorder %v1441, 1
        %vm1461 = vcmp.lt.s32.totalorder %v1441, 2
        %vm1462 = vcmp.lt.s32.totalorder %v1441, 3
        %vm1463 = vcmp.lt.s32.totalorder %v1441, 4
        %v1464 = vsel %vm1460, %v1444, %v1447
        %v1465 = vsel %vm1463, %v1453, 2102212464
        %v1466 = vsel %vm1462, %v1450, %v1465
        %v1467 = vsel %vm1461, %v1464, %v1466
        %v1468 = vsel %vm1460, %v1447, %v1450
        %v1469 = vsel %vm1463, %v1456, 920167782
        %v1470 = vsel %vm1462, %v1453, %v1469
        %v1471 = vsel %vm1461, %v1468, %v1470
        %v1472 = vsel %vm1460, %v1450, %v1453
        %v1473 = vsel %vm1463, %v1459, 1326507024
        %v1474 = vsel %vm1462, %v1456, %v1473
        %v1475 = vsel %vm1461, %v1472, %v1474
        %v1476 = vshll.u32 %v1436, 8
        %v1477 = vmul.u32.u64.compose %v1476, %v1475
        %v1478 = vextract.low.u32 %v1477
        %v1479 = vextract.high.u32 %v1477
        %v1480 = vmul.u32.u64.compose %v1476, %v1471
        %v1481 = vextract.low.u32 %v1480
        %v1482 = vextract.high.u32 %v1480
        %v1483 = vmul.u32 %v1476, %v1467
        %v1484 = vadd.s32 %v1479, %v1481
        %vm1485 = vc.u32 %v1479, %v1481
        %v1486 = vadd.s32 %v1482, 1
        %v1487 = vsel %vm1485, %v1486, %v1482
        %v1488 = vadd.s32 %v1483, %v1487
        %v1489 = vadd.s32 %v1488, 536870912
        %v1490 = vshrl.u32 %v1489, 30
        %v1491 = vshll.u32 %v1490, 30
        %v1492 = vsub.s32 %v1488, %v1491
        %vm1493 = vcmp.lt.s32.totalorder %v1492, 0
        %v1494 = vsub.s32 0, %v1492
        %v1495 = vsel %vm1493, %v1494, %v1492
        %v1496 = vclz %v1495
        %v1497 = vsub.s32 %v1496, 2
        %vm1498 = vcmp.gt.s32.totalorder 0, %v1497
        %v1499 = vsel %vm1498, 0, %v1497
        %v1500 = vsub.s32 32, %v1499
        %v1501 = vshll.u32 %v1492, %v1499
        %v1502 = vshrl.u32 %v1484, %v1500
        %v1503 = vor.u32 %v1501, %v1502
        %v1504 = vsub.s32 4294967266, %v1499
        %v1505 = vadd.s32 %v1504, 127
        %v1506 = vshll.u32 %v1505, 23
        %v1507 = vor.u32 4788187, %v1506
        %v1508 = vand.u32 2147483647, %v1507
        %v1510 = vcvt.s32.f32 %v1503
        %v1511 = vmul.f32 %v1510, %v1508
        %v1512 = vxor.u32 %v1511, 2147483648
        %v1513 = vsel %vm1430, %v1512, %v1511
        %v1514 = vsub.s32 4, %v1490
        %v1515 = vsel %vm1430, %v1514, %v1490
        %v1516 = vsel %vm1429, %v592, %v1513
        %v1517 = vsel %vm1429, 0, %v1515
        %v1518 = vcosq.f32.pop %v1516
        %v1519 = vsinq.f32.pop %v1516
        %vm1520 = vweird.f32 %v592
        %v1521 = vadd.s32 %v1517, 3
        %v1522 = vand.u32 %v1521, 3
        %vm1523 = vcmp.lt.s32.totalorder %v1522, 2
        %vm1524 = vcmp.eq.s32.totalorder %v1522, 0
        %v1525 = vxor.u32 %v1519, 2147483648
        %v1526 = vsel %vm1524, %v1518, %v1525
        %vm1527 = vcmp.eq.s32.totalorder %v1522, 2
        %v1528 = vxor.u32 %v1518, 2147483648
        %v1529 = vsel %vm1527, %v1528, %v1519
        %v1530 = vsel %vm1523, %v1526, %v1529
        %v1531 = vsel %vm1520, nan, %v1530
        %v1532 = vand.u32 2147483647, %v593
        %vm1533 = vcmp.le.f32.partialorder %v1532, 0.7853982
        %vm1534 = vcmp.lt.s32.totalorder %v593, 0
        %v1535 = vand.u32 %v593, 2139095040
        %v1536 = vshrl.u32 %v1535, 23
        %v1537 = vsub.s32 %v1536, 127
        %v1538 = vand.u32 2147483647, %v593
        %v1539 = vand.u32 %v1538, 8388607
        %v1540 = vor.u32 %v1539, 8388608
        %v1541 = vsub.s32 0, %v1540
        %v1542 = vadd.s32 %v1537, 1
        %vm1543 = vcmp.gt.s32.totalorder %v1542, 0
        %v1544 = vsel %vm1543, %v1542, 0
        %v1545 = vshrl.u32 %v1544, 5
        %v1546 = vand.u32 %v1544, 31
        %v1547 = vsub.s32 32, %v1546
        %v1548 = vshrl.u32 683565275, %v1547
        %v1549 = vshll.u32 683565275, %v1546
        %v1550 = vshrl.u32 2475754826, %v1547
        %v1551 = vor.u32 %v1549, %v1550
        %v1552 = vshll.u32 2475754826, %v1546
        %v1553 = vshrl.u32 2131351028, %v1547
        %v1554 = vor.u32 %v1552, %v1553
        %v1555 = vshll.u32 2131351028, %v1546
        %v1556 = vshrl.u32 2102212464, %v1547
        %v1557 = vor.u32 %v1555, %v1556
        %v1558 = vshll.u32 2102212464, %v1546
        %v1559 = vshrl.u32 920167782, %v1547
        %v1560 = vor.u32 %v1558, %v1559
        %v1561 = vshll.u32 920167782, %v1546
        %v1562 = vshrl.u32 1326507024, %v1547
        %v1563 = vor.u32 %v1561, %v1562
        %vm1564 = vcmp.lt.s32.totalorder %v1545, 1
        %vm1565 = vcmp.lt.s32.totalorder %v1545, 2
        %vm1566 = vcmp.lt.s32.totalorder %v1545, 3
        %vm1567 = vcmp.lt.s32.totalorder %v1545, 4
        %v1568 = vsel %vm1564, %v1548, %v1551
        %v1569 = vsel %vm1567, %v1557, 2102212464
        %v1570 = vsel %vm1566, %v1554, %v1569
        %v1571 = vsel %vm1565, %v1568, %v1570
        %v1572 = vsel %vm1564, %v1551, %v1554
        %v1573 = vsel %vm1567, %v1560, 920167782
        %v1574 = vsel %vm1566, %v1557, %v1573
        %v1575 = vsel %vm1565, %v1572, %v1574
        %v1576 = vsel %vm1564, %v1554, %v1557
        %v1577 = vsel %vm1567, %v1563, 1326507024
        %v1578 = vsel %vm1566, %v1560, %v1577
        %v1579 = vsel %vm1565, %v1576, %v1578
        %v1580 = vshll.u32 %v1540, 8
        %v1581 = vmul.u32.u64.compose %v1580, %v1579
        %v1582 = vextract.low.u32 %v1581
        %v1583 = vextract.high.u32 %v1581
        %v1584 = vmul.u32.u64.compose %v1580, %v1575
        %v1585 = vextract.low.u32 %v1584
        %v1586 = vextract.high.u32 %v1584
        %v1587 = vmul.u32 %v1580, %v1571
        %v1588 = vadd.s32 %v1583, %v1585
        %vm1589 = vc.u32 %v1583, %v1585
        %v1590 = vadd.s32 %v1586, 1
        %v1591 = vsel %vm1589, %v1590, %v1586
        %v1592 = vadd.s32 %v1587, %v1591
        %v1593 = vadd.s32 %v1592, 536870912
        %v1594 = vshrl.u32 %v1593, 30
        %v1595 = vshll.u32 %v1594, 30
        %v1596 = vsub.s32 %v1592, %v1595
        %vm1597 = vcmp.lt.s32.totalorder %v1596, 0
        %v1598 = vsub.s32 0, %v1596
        %v1599 = vsel %vm1597, %v1598, %v1596
        %v1600 = vclz %v1599
        %v1601 = vsub.s32 %v1600, 2
        %vm1602 = vcmp.gt.s32.totalorder 0, %v1601
        %v1603 = vsel %vm1602, 0, %v1601
        %v1604 = vsub.s32 32, %v1603
        %v1605 = vshll.u32 %v1596, %v1603
        %v1606 = vshrl.u32 %v1588, %v1604
        %v1607 = vor.u32 %v1605, %v1606
        %v1608 = vsub.s32 4294967266, %v1603
        %v1609 = vadd.s32 %v1608, 127
        %v1610 = vshll.u32 %v1609, 23
        %v1611 = vor.u32 4788187, %v1610
        %v1612 = vand.u32 2147483647, %v1611
        %v1614 = vcvt.s32.f32 %v1607
        %v1615 = vmul.f32 %v1614, %v1612
        %v1616 = vxor.u32 %v1615, 2147483648
        %v1617 = vsel %vm1534, %v1616, %v1615
        %v1618 = vsub.s32 4, %v1594
        %v1619 = vsel %vm1534, %v1618, %v1594
        %v1620 = vsel %vm1533, %v593, %v1617
        %v1621 = vsel %vm1533, 0, %v1619
        %v1622 = vcosq.f32.pop %v1620
        %v1623 = vsinq.f32.pop %v1620
        %vm1624 = vweird.f32 %v593
        %v1625 = vadd.s32 %v1621, 3
        %v1626 = vand.u32 %v1625, 3
        %vm1627 = vcmp.lt.s32.totalorder %v1626, 2
        %vm1628 = vcmp.eq.s32.totalorder %v1626, 0
        %v1629 = vxor.u32 %v1623, 2147483648
        %v1630 = vsel %vm1628, %v1622, %v1629
        %vm1631 = vcmp.eq.s32.totalorder %v1626, 2
        %v1632 = vxor.u32 %v1622, 2147483648
        %v1633 = vsel %vm1631, %v1632, %v1623
        %v1634 = vsel %vm1627, %v1630, %v1633
        %v1635 = vsel %vm1624, nan, %v1634
        %v1636 = vand.u32 2147483647, %v594
        %vm1637 = vcmp.le.f32.partialorder %v1636, 0.7853982
        %vm1638 = vcmp.lt.s32.totalorder %v594, 0
        %v1639 = vand.u32 %v594, 2139095040
        %v1640 = vshrl.u32 %v1639, 23
        %v1641 = vsub.s32 %v1640, 127
        %v1642 = vand.u32 2147483647, %v594
        %v1643 = vand.u32 %v1642, 8388607
        %v1644 = vor.u32 %v1643, 8388608
        %v1645 = vsub.s32 0, %v1644
        %v1646 = vadd.s32 %v1641, 1
        %vm1647 = vcmp.gt.s32.totalorder %v1646, 0
        %v1648 = vsel %vm1647, %v1646, 0
        %v1649 = vshrl.u32 %v1648, 5
        %v1650 = vand.u32 %v1648, 31
        %v1651 = vsub.s32 32, %v1650
        %v1652 = vshrl.u32 683565275, %v1651
        %v1653 = vshll.u32 683565275, %v1650
        %v1654 = vshrl.u32 2475754826, %v1651
        %v1655 = vor.u32 %v1653, %v1654
        %v1656 = vshll.u32 2475754826, %v1650
        %v1657 = vshrl.u32 2131351028, %v1651
        %v1658 = vor.u32 %v1656, %v1657
        %v1659 = vshll.u32 2131351028, %v1650
        %v1660 = vshrl.u32 2102212464, %v1651
        %v1661 = vor.u32 %v1659, %v1660
        %v1662 = vshll.u32 2102212464, %v1650
        %v1663 = vshrl.u32 920167782, %v1651
        %v1664 = vor.u32 %v1662, %v1663
        %v1665 = vshll.u32 920167782, %v1650
        %v1666 = vshrl.u32 1326507024, %v1651
        %v1667 = vor.u32 %v1665, %v1666
        %vm1668 = vcmp.lt.s32.totalorder %v1649, 1
        %vm1669 = vcmp.lt.s32.totalorder %v1649, 2
        %vm1670 = vcmp.lt.s32.totalorder %v1649, 3
        %vm1671 = vcmp.lt.s32.totalorder %v1649, 4
        %v1672 = vsel %vm1668, %v1652, %v1655
        %v1673 = vsel %vm1671, %v1661, 2102212464
        %v1674 = vsel %vm1670, %v1658, %v1673
        %v1675 = vsel %vm1669, %v1672, %v1674
        %v1676 = vsel %vm1668, %v1655, %v1658
        %v1677 = vsel %vm1671, %v1664, 920167782
        %v1678 = vsel %vm1670, %v1661, %v1677
        %v1679 = vsel %vm1669, %v1676, %v1678
        %v1680 = vsel %vm1668, %v1658, %v1661
        %v1681 = vsel %vm1671, %v1667, 1326507024
        %v1682 = vsel %vm1670, %v1664, %v1681
        %v1683 = vsel %vm1669, %v1680, %v1682
        %v1684 = vshll.u32 %v1644, 8
        %v1685 = vmul.u32.u64.compose %v1684, %v1683
        %v1686 = vextract.low.u32 %v1685
        %v1687 = vextract.high.u32 %v1685
        %v1688 = vmul.u32.u64.compose %v1684, %v1679
        %v1689 = vextract.low.u32 %v1688
        %v1690 = vextract.high.u32 %v1688
        %v1691 = vmul.u32 %v1684, %v1675
        %v1692 = vadd.s32 %v1687, %v1689
        %vm1693 = vc.u32 %v1687, %v1689
        %v1694 = vadd.s32 %v1690, 1
        %v1695 = vsel %vm1693, %v1694, %v1690
        %v1696 = vadd.s32 %v1691, %v1695
        %v1697 = vadd.s32 %v1696, 536870912
        %v1698 = vshrl.u32 %v1697, 30
        %v1699 = vshll.u32 %v1698, 30
        %v1700 = vsub.s32 %v1696, %v1699
        %vm1701 = vcmp.lt.s32.totalorder %v1700, 0
        %v1702 = vsub.s32 0, %v1700
        %v1703 = vsel %vm1701, %v1702, %v1700
        %v1704 = vclz %v1703
        %v1705 = vsub.s32 %v1704, 2
        %vm1706 = vcmp.gt.s32.totalorder 0, %v1705
        %v1707 = vsel %vm1706, 0, %v1705
        %v1708 = vsub.s32 32, %v1707
        %v1709 = vshll.u32 %v1700, %v1707
        %v1710 = vshrl.u32 %v1692, %v1708
        %v1711 = vor.u32 %v1709, %v1710
        %v1712 = vsub.s32 4294967266, %v1707
        %v1713 = vadd.s32 %v1712, 127
        %v1714 = vshll.u32 %v1713, 23
        %v1715 = vor.u32 4788187, %v1714
        %v1716 = vand.u32 2147483647, %v1715
        %v1718 = vcvt.s32.f32 %v1711
        %v1719 = vmul.f32 %v1718, %v1716
        %v1720 = vxor.u32 %v1719, 2147483648
        %v1721 = vsel %vm1638, %v1720, %v1719
        %v1722 = vsub.s32 4, %v1698
        %v1723 = vsel %vm1638, %v1722, %v1698
        %v1724 = vsel %vm1637, %v594, %v1721
        %v1725 = vsel %vm1637, 0, %v1723
        %v1726 = vcosq.f32.pop %v1724
        %v1727 = vsinq.f32.pop %v1724
        %vm1728 = vweird.f32 %v594
        %v1729 = vadd.s32 %v1725, 3
        %v1730 = vand.u32 %v1729, 3
        %vm1731 = vcmp.lt.s32.totalorder %v1730, 2
        %vm1732 = vcmp.eq.s32.totalorder %v1730, 0
        %v1733 = vxor.u32 %v1727, 2147483648
        %v1734 = vsel %vm1732, %v1726, %v1733
        %vm1735 = vcmp.eq.s32.totalorder %v1730, 2
        %v1736 = vxor.u32 %v1726, 2147483648
        %v1737 = vsel %vm1735, %v1736, %v1727
        %v1738 = vsel %vm1731, %v1734, %v1737
        %v1739 = vsel %vm1728, nan, %v1738
        %v1740 = vand.u32 2147483647, %v595
        %vm1741 = vcmp.le.f32.partialorder %v1740, 0.7853982
        %vm1742 = vcmp.lt.s32.totalorder %v595, 0
        %v1743 = vand.u32 %v595, 2139095040
        %v1744 = vshrl.u32 %v1743, 23
        %v1745 = vsub.s32 %v1744, 127
        %v1746 = vand.u32 2147483647, %v595
        %v1747 = vand.u32 %v1746, 8388607
        %v1748 = vor.u32 %v1747, 8388608
        %v1749 = vsub.s32 0, %v1748
        %v1750 = vadd.s32 %v1745, 1
        %vm1751 = vcmp.gt.s32.totalorder %v1750, 0
        %v1752 = vsel %vm1751, %v1750, 0
        %v1753 = vshrl.u32 %v1752, 5
        %v1754 = vand.u32 %v1752, 31
        %v1755 = vsub.s32 32, %v1754
        %v1756 = vshrl.u32 683565275, %v1755
        %v1757 = vshll.u32 683565275, %v1754
        %v1758 = vshrl.u32 2475754826, %v1755
        %v1759 = vor.u32 %v1757, %v1758
        %v1760 = vshll.u32 2475754826, %v1754
        %v1761 = vshrl.u32 2131351028, %v1755
        %v1762 = vor.u32 %v1760, %v1761
        %v1763 = vshll.u32 2131351028, %v1754
        %v1764 = vshrl.u32 2102212464, %v1755
        %v1765 = vor.u32 %v1763, %v1764
        %v1766 = vshll.u32 2102212464, %v1754
        %v1767 = vshrl.u32 920167782, %v1755
        %v1768 = vor.u32 %v1766, %v1767
        %v1769 = vshll.u32 920167782, %v1754
        %v1770 = vshrl.u32 1326507024, %v1755
        %v1771 = vor.u32 %v1769, %v1770
        %vm1772 = vcmp.lt.s32.totalorder %v1753, 1
        %vm1773 = vcmp.lt.s32.totalorder %v1753, 2
        %vm1774 = vcmp.lt.s32.totalorder %v1753, 3
        %vm1775 = vcmp.lt.s32.totalorder %v1753, 4
        %v1776 = vsel %vm1772, %v1756, %v1759
        %v1777 = vsel %vm1775, %v1765, 2102212464
        %v1778 = vsel %vm1774, %v1762, %v1777
        %v1779 = vsel %vm1773, %v1776, %v1778
        %v1780 = vsel %vm1772, %v1759, %v1762
        %v1781 = vsel %vm1775, %v1768, 920167782
        %v1782 = vsel %vm1774, %v1765, %v1781
        %v1783 = vsel %vm1773, %v1780, %v1782
        %v1784 = vsel %vm1772, %v1762, %v1765
        %v1785 = vsel %vm1775, %v1771, 1326507024
        %v1786 = vsel %vm1774, %v1768, %v1785
        %v1787 = vsel %vm1773, %v1784, %v1786
        %v1788 = vshll.u32 %v1748, 8
        %v1789 = vmul.u32.u64.compose %v1788, %v1787
        %v1790 = vextract.low.u32 %v1789
        %v1791 = vextract.high.u32 %v1789
        %v1792 = vmul.u32.u64.compose %v1788, %v1783
        %v1793 = vextract.low.u32 %v1792
        %v1794 = vextract.high.u32 %v1792
        %v1795 = vmul.u32 %v1788, %v1779
        %v1796 = vadd.s32 %v1791, %v1793
        %vm1797 = vc.u32 %v1791, %v1793
        %v1798 = vadd.s32 %v1794, 1
        %v1799 = vsel %vm1797, %v1798, %v1794
        %v1800 = vadd.s32 %v1795, %v1799
        %v1801 = vadd.s32 %v1800, 536870912
        %v1802 = vshrl.u32 %v1801, 30
        %v1803 = vshll.u32 %v1802, 30
        %v1804 = vsub.s32 %v1800, %v1803
        %vm1805 = vcmp.lt.s32.totalorder %v1804, 0
        %v1806 = vsub.s32 0, %v1804
        %v1807 = vsel %vm1805, %v1806, %v1804
        %v1808 = vclz %v1807
        %v1809 = vsub.s32 %v1808, 2
        %vm1810 = vcmp.gt.s32.totalorder 0, %v1809
        %v1811 = vsel %vm1810, 0, %v1809
        %v1812 = vsub.s32 32, %v1811
        %v1813 = vshll.u32 %v1804, %v1811
        %v1814 = vshrl.u32 %v1796, %v1812
        %v1815 = vor.u32 %v1813, %v1814
        %v1816 = vsub.s32 4294967266, %v1811
        %v1817 = vadd.s32 %v1816, 127
        %v1818 = vshll.u32 %v1817, 23
        %v1819 = vor.u32 4788187, %v1818
        %v1820 = vand.u32 2147483647, %v1819
        %v1822 = vcvt.s32.f32 %v1815
        %v1823 = vmul.f32 %v1822, %v1820
        %v1824 = vxor.u32 %v1823, 2147483648
        %v1825 = vsel %vm1742, %v1824, %v1823
        %v1826 = vsub.s32 4, %v1802
        %v1827 = vsel %vm1742, %v1826, %v1802
        %v1828 = vsel %vm1741, %v595, %v1825
        %v1829 = vsel %vm1741, 0, %v1827
        %v1830 = vcosq.f32.pop %v1828
        %v1831 = vsinq.f32.pop %v1828
        %vm1832 = vweird.f32 %v595
        %v1833 = vadd.s32 %v1829, 3
        %v1834 = vand.u32 %v1833, 3
        %vm1835 = vcmp.lt.s32.totalorder %v1834, 2
        %vm1836 = vcmp.eq.s32.totalorder %v1834, 0
        %v1837 = vxor.u32 %v1831, 2147483648
        %v1838 = vsel %vm1836, %v1830, %v1837
        %vm1839 = vcmp.eq.s32.totalorder %v1834, 2
        %v1840 = vxor.u32 %v1830, 2147483648
        %v1841 = vsel %vm1839, %v1840, %v1831
        %v1842 = vsel %vm1835, %v1838, %v1841
        %v1843 = vsel %vm1832, nan, %v1842
        %v1844 = vld [vmem:[%s3] sm:$0xf]
        %v1845 = vld [vmem:[%s3 + $0x4] sm:$0xf]
        %v1846 = vld [vmem:[%s3 + $0x8] sm:$0xf]
        %v1847 = vld [vmem:[%s3 + $0xc] sm:$0xf]
        %v1848 = vld [vmem:[%s3 + $0x10] sm:$0xf]
        %v1849 = vld [vmem:[%s3 + $0x14] sm:$0xf]
        %v1850 = vld [vmem:[%s3 + $0x18] sm:$0xf]
        %v1851 = vld [vmem:[%s3 + $0x1c] sm:$0xf]
        %v1852 = vpack.c.bf16 %v433, %v433
        %v1853 = vpack.c.bf16 %v434, %v434
        %v1854 = vpack.c.bf16 %v435, %v435
        %v1855 = vpack.c.bf16 %v436, %v436
        %v1856 = vld [vmem:[%s4] sm:$0xf]
        %v1857 = vld [vmem:[%s4 + $0x4] sm:$0xf]
        %v1858 = vld [vmem:[%s4 + $0x8] sm:$0xf]
        %v1859 = vld [vmem:[%s4 + $0xc] sm:$0xf]
        %v1860 = vld [vmem:[%s4 + $0x10] sm:$0xf]
        %v1861 = vld [vmem:[%s4 + $0x14] sm:$0xf]
        %v1862 = vld [vmem:[%s4 + $0x18] sm:$0xf]
        %v1863 = vld [vmem:[%s4 + $0x1c] sm:$0xf]
        %v1864 = vpack.c.bf16 %v1115, %v699
        %v1865 = vpack.c.bf16 %v1219, %v803
        %v1866 = vpack.c.bf16 %v1323, %v907
        %v1867 = vpack.c.bf16 %v1427, %v1011
        %v1868 = vpack.c.bf16 %v1531, %v1531
        %v1869 = vpack.c.bf16 %v1635, %v1635
        %v1870 = vpack.c.bf16 %v1739, %v1739
        %v1871 = vpack.c.bf16 %v1843, %v1843
        %v1880 = vunpack.c.l.b16 %v1856
        %v1881 = vunpack.c.l.b16 %v1857
        %v1882 = vunpack.c.l.b16 %v1858
        %v1883 = vunpack.c.l.b16 %v1859
        %v1884 = vunpack.c.l.b16 %v1860
        %v1885 = vunpack.c.l.b16 %v1861
        %v1886 = vunpack.c.l.b16 %v1862
        %v1887 = vunpack.c.l.b16 %v1863
        %v1888 = vpack.c.b16 %v1881, %v1880
        %v1889 = vpack.c.b16 %v1883, %v1882
        %v1890 = vpack.c.b16 %v1885, %v1884
        %v1891 = vpack.c.b16 %v1887, %v1886
        %vm1892 = vcmask 195584
        %v1894 = vsel %vm1892, %v1888, 0
        %v1897 = vsel %vm1892, %v1889, 0
        %v1900 = vsel %vm1892, %v1890, 0
        %v1903 = vsel %vm1892, %v1891, 0
        %v1906 = vsel %vm516, %v1868, 0
        %v1909 = vsel %vm516, %v1869, 0
        %v1912 = vsel %vm516, %v1870, 0
        %v1915 = vsel %vm516, %v1871, 0
        %1917 = vmatprep.subr.bf16.mxu0 %v1865
        %1918 = vmatpush1.bf16.msra.mxu0 %v1864
        %1919 = vmatprep.subr.bf16.mxu0 %v1909
        %1920 = vmatpush1.bf16.msra.mxu0 %v1906
        %1921 = vmatprep.subr.bf16.mxu0 0
        %1922 = vmatpush1.bf16.msra.mxu0 0
        %1923 = vmatprep.subr.bf16.mxu0 0
        %1924 = vmatpush1.bf16.msra.mxu0 0
        %1925 = vmatprep.subr.bf16.mxu0 0
        %1926 = vmatpush1.bf16.msra.mxu0 0
        %1927 = vmatprep.subr.bf16.mxu0 0
        %1928 = vmatpush1.bf16.msra.mxu0 0
        %1929 = vmatprep.subr.bf16.mxu0 0
        %1930 = vmatpush1.bf16.msra.mxu0 0
        %1931 = vmatprep.subr.bf16.mxu0 0
        %1932 = vmatpush1.bf16.msra.mxu0 0
        %1933 = vmatprep.subr.bf16.mxu0 0
        %1934 = vmatpush1.bf16.msra.mxu0 0
        %1935 = vmatprep.subr.bf16.mxu0 0
        %1936 = vmatpush1.bf16.msra.mxu0 0
        %1937 = vmatprep.subr.bf16.mxu0 0
        %1938 = vmatpush1.bf16.msra.mxu0 0
        %1939 = vmatprep.subr.bf16.mxu0 0
        %1940 = vmatpush1.bf16.msra.mxu0 0
        %1941 = vmatprep.subr.bf16.mxu0 0
        %1942 = vmatpush1.bf16.msra.mxu0 0
        %1943 = vmatprep.subr.bf16.mxu0 0
        %1944 = vmatpush1.bf16.msra.mxu0 0
        %1945 = vmatprep.subr.bf16.mxu0 0
        %1946 = vmatpush1.bf16.msra.mxu0 0
        %1947 = vmatprep.subr.bf16.mxu0 0
        %1948 = vmatpush1.bf16.msra.mxu0 0
        %1949 = vmatprep.mubr.bf16.mxu0 0
        %1950 = vmatmul.mubr.bf16.gmra.mrb[0].mxu0 %v1894
        %v1951 = vpop.f32.mrb[0].mxu0
        %v1952 = vadd.f32 0.0, %v1951
        %v1953 = vpop.f32.mrb[0].mxu0
        %v1954 = vadd.f32 0.0, %v1953
        %v1955 = vpop.f32.mrb[0].mxu0
        %v1956 = vadd.f32 0.0, %v1955
        %v1957 = vpop.f32.mrb[0].mxu0
        %v1958 = vadd.f32 0.0, %v1957
        %1959 = vmatprep.mubr.bf16.mxu0 0
        %1960 = vmatmul.mubr.bf16.gmra.mrb[0].mxu0 %v1897
        %v1961 = vpop.f32.mrb[0].mxu0
        %v1962 = vadd.f32 0.0, %v1961
        %v1963 = vpop.f32.mrb[0].mxu0
        %v1964 = vadd.f32 0.0, %v1963
        %v1965 = vpop.f32.mrb[0].mxu0
        %v1966 = vadd.f32 0.0, %v1965
        %v1967 = vpop.f32.mrb[0].mxu0
        %v1968 = vadd.f32 0.0, %v1967
        %1969 = vmatprep.mubr.bf16.mxu0 0
        %1970 = vmatmul.mubr.bf16.gmra.mrb[0].mxu0 %v1900
        %v1971 = vpop.f32.mrb[0].mxu0
        %v1972 = vadd.f32 0.0, %v1971
        %v1973 = vpop.f32.mrb[0].mxu0
        %v1974 = vadd.f32 0.0, %v1973
        %v1975 = vpop.f32.mrb[0].mxu0
        %v1976 = vadd.f32 0.0, %v1975
        %v1977 = vpop.f32.mrb[0].mxu0
        %v1978 = vadd.f32 0.0, %v1977
        %1979 = vmatprep.mubr.bf16.mxu0 0
        %1980 = vmatmul.mubr.bf16.gmra.mrb[0].mxu0 %v1903
        %v1981 = vpop.f32.mrb[0].mxu0
        %v1982 = vadd.f32 0.0, %v1981
        %v1983 = vpop.f32.mrb[0].mxu0
        %v1984 = vadd.f32 0.0, %v1983
        %v1985 = vpop.f32.mrb[0].mxu0
        %v1986 = vadd.f32 0.0, %v1985
        %v1987 = vpop.f32.mrb[0].mxu0
        %v1988 = vadd.f32 0.0, %v1987
        %1989 = vdwg.mxu0
        %1990 = vmatprep.subr.bf16.mxu0 %v1867
        %1991 = vmatpush1.bf16.msra.mxu0 %v1866
        %1992 = vmatprep.subr.bf16.mxu0 %v1915
        %1993 = vmatpush1.bf16.msra.mxu0 %v1912
        %1994 = vmatprep.subr.bf16.mxu0 0
        %1995 = vmatpush1.bf16.msra.mxu0 0
        %1996 = vmatprep.subr.bf16.mxu0 0
        %1997 = vmatpush1.bf16.msra.mxu0 0
        %1998 = vmatprep.subr.bf16.mxu0 0
        %1999 = vmatpush1.bf16.msra.mxu0 0
        %2000 = vmatprep.subr.bf16.mxu0 0
        %2001 = vmatpush1.bf16.msra.mxu0 0
        %2002 = vmatprep.subr.bf16.mxu0 0
        %2003 = vmatpush1.bf16.msra.mxu0 0
        %2004 = vmatprep.subr.bf16.mxu0 0
        %2005 = vmatpush1.bf16.msra.mxu0 0
        %2006 = vmatprep.subr.bf16.mxu0 0
        %2007 = vmatpush1.bf16.msra.mxu0 0
        %2008 = vmatprep.subr.bf16.mxu0 0
        %2009 = vmatpush1.bf16.msra.mxu0 0
        %2010 = vmatprep.subr.bf16.mxu0 0
        %2011 = vmatpush1.bf16.msra.mxu0 0
        %2012 = vmatprep.subr.bf16.mxu0 0
        %2013 = vmatpush1.bf16.msra.mxu0 0
        %2014 = vmatprep.subr.bf16.mxu0 0
        %2015 = vmatpush1.bf16.msra.mxu0 0
        %2016 = vmatprep.subr.bf16.mxu0 0
        %2017 = vmatpush1.bf16.msra.mxu0 0
        %2018 = vmatprep.subr.bf16.mxu0 0
        %2019 = vmatpush1.bf16.msra.mxu0 0
        %2020 = vmatprep.subr.bf16.mxu0 0
        %2021 = vmatpush1.bf16.msra.mxu0 0
        %2022 = vmatprep.mubr.bf16.mxu0 0
        %2023 = vmatmul.mubr.bf16.gmra.mrb[0].mxu0 %v1894
        %v2024 = vpop.f32.mrb[0].mxu0
        %v2025 = vadd.f32 0.0, %v2024
        %v2026 = vpop.f32.mrb[0].mxu0
        %v2027 = vadd.f32 0.0, %v2026
        %v2028 = vpop.f32.mrb[0].mxu0
        %v2029 = vadd.f32 0.0, %v2028
        %v2030 = vpop.f32.mrb[0].mxu0
        %v2031 = vadd.f32 0.0, %v2030
        %2032 = vmatprep.mubr.bf16.mxu0 0
        %2033 = vmatmul.mubr.bf16.gmra.mrb[0].mxu0 %v1897
        %v2034 = vpop.f32.mrb[0].mxu0
        %v2035 = vadd.f32 0.0, %v2034
        %v2036 = vpop.f32.mrb[0].mxu0
        %v2037 = vadd.f32 0.0, %v2036
        %v2038 = vpop.f32.mrb[0].mxu0
        %v2039 = vadd.f32 0.0, %v2038
        %v2040 = vpop.f32.mrb[0].mxu0
        %v2041 = vadd.f32 0.0, %v2040
        %2042 = vmatprep.mubr.bf16.mxu0 0
        %2043 = vmatmul.mubr.bf16.gmra.mrb[0].mxu0 %v1900
        %v2044 = vpop.f32.mrb[0].mxu0
        %v2045 = vadd.f32 0.0, %v2044
        %v2046 = vpop.f32.mrb[0].mxu0
        %v2047 = vadd.f32 0.0, %v2046
        %v2048 = vpop.f32.mrb[0].mxu0
        %v2049 = vadd.f32 0.0, %v2048
        %v2050 = vpop.f32.mrb[0].mxu0
        %v2051 = vadd.f32 0.0, %v2050
        %2052 = vmatprep.mubr.bf16.mxu0 0
        %2053 = vmatmul.mubr.bf16.gmra.mrb[0].mxu0 %v1903
        %v2054 = vpop.f32.mrb[0].mxu0
        %v2055 = vadd.f32 0.0, %v2054
        %v2056 = vpop.f32.mrb[0].mxu0
        %v2057 = vadd.f32 0.0, %v2056
        %v2058 = vpop.f32.mrb[0].mxu0
        %v2059 = vadd.f32 0.0, %v2058
        %v2060 = vpop.f32.mrb[0].mxu0
        %v2061 = vadd.f32 0.0, %v2060
        %2062 = vdwg.mxu0
        %v2071 = vunpack.c.l.b16 %v1844
        %v2072 = vunpack.c.l.b16 %v1845
        %v2073 = vunpack.c.l.b16 %v1846
        %v2074 = vunpack.c.l.b16 %v1847
        %v2075 = vunpack.c.l.b16 %v1848
        %v2076 = vunpack.c.l.b16 %v1849
        %v2077 = vunpack.c.l.b16 %v1850
        %v2078 = vunpack.c.l.b16 %v1851
        %v2079 = vpack.c.b16 %v2072, %v2071
        %v2080 = vpack.c.b16 %v2074, %v2073
        %v2081 = vpack.c.b16 %v2076, %v2075
        %v2082 = vpack.c.b16 %v2078, %v2077
        %vm2083 = vcmask 23552
        %v2085 = vsel %vm2083, %v2079, 0
        %v2088 = vsel %vm2083, %v2080, 0
        %v2091 = vsel %vm2083, %v2081, 0
        %v2094 = vsel %vm2083, %v2082, 0
        %v2096 = vsel %vm511, 4294967295, 65535
        %v2097 = vsel %vm526, %v2096, 0
        %v2099 = vand.u32 %v1852, %v2097
        %v2102 = vand.u32 %v1853, %v2097
        %v2105 = vand.u32 %v1854, %v2097
        %v2108 = vand.u32 %v1855, %v2097
        %2110 = vmatprep.subr.bf16.mxu0 %v2102
        %2111 = vmatpush1.bf16.msra.mxu0 %v2099
        %2112 = vmatprep.subr.bf16.mxu0 0
        %2113 = vmatpush1.bf16.msra.mxu0 0
        %2114 = vmatprep.subr.bf16.mxu0 0
        %2115 = vmatpush1.bf16.msra.mxu0 0
        %2116 = vmatprep.subr.bf16.mxu0 0
        %2117 = vmatpush1.bf16.msra.mxu0 0
        %2118 = vmatprep.subr.bf16.mxu0 0
        %2119 = vmatpush1.bf16.msra.mxu0 0
        %2120 = vmatprep.subr.bf16.mxu0 0
        %2121 = vmatpush1.bf16.msra.mxu0 0
        %2122 = vmatprep.subr.bf16.mxu0 0
        %2123 = vmatpush1.bf16.msra.mxu0 0
        %2124 = vmatprep.subr.bf16.mxu0 0
        %2125 = vmatpush1.bf16.msra.mxu0 0
        %2126 = vmatprep.subr.bf16.mxu0 0
        %2127 = vmatpush1.bf16.msra.mxu0 0
        %2128 = vmatprep.subr.bf16.mxu0 0
        %2129 = vmatpush1.bf16.msra.mxu0 0
        %2130 = vmatprep.subr.bf16.mxu0 0
        %2131 = vmatpush1.bf16.msra.mxu0 0
        %2132 = vmatprep.subr.bf16.mxu0 0
        %2133 = vmatpush1.bf16.msra.mxu0 0
        %2134 = vmatprep.subr.bf16.mxu0 0
        %2135 = vmatpush1.bf16.msra.mxu0 0
        %2136 = vmatprep.subr.bf16.mxu0 0
        %2137 = vmatpush1.bf16.msra.mxu0 0
        %2138 = vmatprep.subr.bf16.mxu0 0
        %2139 = vmatpush1.bf16.msra.mxu0 0
        %2140 = vmatprep.subr.bf16.mxu0 0
        %2141 = vmatpush1.bf16.msra.mxu0 0
        %2142 = vmatprep.mubr.bf16.mxu0 0
        %2143 = vmatmul.mubr.bf16.gmra.mrb[0].mxu0 %v2085
        %v2144 = vpop.f32.mrb[0].mxu0
        %v2145 = vadd.f32 %v1952, %v2144
        %v2146 = vpop.f32.mrb[0].mxu0
        %v2147 = vadd.f32 %v1954, %v2146
        %v2148 = vpop.f32.mrb[0].mxu0
        %v2149 = vadd.f32 %v1956, %v2148
        %v2150 = vpop.f32.mrb[0].mxu0
        %v2151 = vadd.f32 %v1958, %v2150
        %2152 = vmatprep.mubr.bf16.mxu0 0
        %2153 = vmatmul.mubr.bf16.gmra.mrb[0].mxu0 %v2088
        %v2154 = vpop.f32.mrb[0].mxu0
        %v2155 = vadd.f32 %v1962, %v2154
        %v2156 = vpop.f32.mrb[0].mxu0
        %v2157 = vadd.f32 %v1964, %v2156
        %v2158 = vpop.f32.mrb[0].mxu0
        %v2159 = vadd.f32 %v1966, %v2158
        %v2160 = vpop.f32.mrb[0].mxu0
        %v2161 = vadd.f32 %v1968, %v2160
        %2162 = vmatprep.mubr.bf16.mxu0 0
        %2163 = vmatmul.mubr.bf16.gmra.mrb[0].mxu0 %v2091
        %v2164 = vpop.f32.mrb[0].mxu0
        %v2165 = vadd.f32 %v1972, %v2164
        %v2166 = vpop.f32.mrb[0].mxu0
        %v2167 = vadd.f32 %v1974, %v2166
        %v2168 = vpop.f32.mrb[0].mxu0
        %v2169 = vadd.f32 %v1976, %v2168
        %v2170 = vpop.f32.mrb[0].mxu0
        %v2171 = vadd.f32 %v1978, %v2170
        %2172 = vmatprep.mubr.bf16.mxu0 0
        %2173 = vmatmul.mubr.bf16.gmra.mrb[0].mxu0 %v2094
        %v2174 = vpop.f32.mrb[0].mxu0
        %v2175 = vadd.f32 %v1982, %v2174
        %v2176 = vpop.f32.mrb[0].mxu0
        %v2177 = vadd.f32 %v1984, %v2176
        %v2178 = vpop.f32.mrb[0].mxu0
        %v2179 = vadd.f32 %v1986, %v2178
        %v2180 = vpop.f32.mrb[0].mxu0
        %v2181 = vadd.f32 %v1988, %v2180
        %2182 = vdwg.mxu0
        %2183 = vmatprep.subr.bf16.mxu0 %v2108
        %2184 = vmatpush1.bf16.msra.mxu0 %v2105
        %2185 = vmatprep.subr.bf16.mxu0 0
        %2186 = vmatpush1.bf16.msra.mxu0 0
        %2187 = vmatprep.subr.bf16.mxu0 0
        %2188 = vmatpush1.bf16.msra.mxu0 0
        %2189 = vmatprep.subr.bf16.mxu0 0
        %2190 = vmatpush1.bf16.msra.mxu0 0
        %2191 = vmatprep.subr.bf16.mxu0 0
        %2192 = vmatpush1.bf16.msra.mxu0 0
        %2193 = vmatprep.subr.bf16.mxu0 0
        %2194 = vmatpush1.bf16.msra.mxu0 0
        %2195 = vmatprep.subr.bf16.mxu0 0
        %2196 = vmatpush1.bf16.msra.mxu0 0
        %2197 = vmatprep.subr.bf16.mxu0 0
        %2198 = vmatpush1.bf16.msra.mxu0 0
        %2199 = vmatprep.subr.bf16.mxu0 0
        %2200 = vmatpush1.bf16.msra.mxu0 0
        %2201 = vmatprep.subr.bf16.mxu0 0
        %2202 = vmatpush1.bf16.msra.mxu0 0
        %2203 = vmatprep.subr.bf16.mxu0 0
        %2204 = vmatpush1.bf16.msra.mxu0 0
        %2205 = vmatprep.subr.bf16.mxu0 0
        %2206 = vmatpush1.bf16.msra.mxu0 0
        %2207 = vmatprep.subr.bf16.mxu0 0
        %2208 = vmatpush1.bf16.msra.mxu0 0
        %2209 = vmatprep.subr.bf16.mxu0 0
        %2210 = vmatpush1.bf16.msra.mxu0 0
        %2211 = vmatprep.subr.bf16.mxu0 0
        %2212 = vmatpush1.bf16.msra.mxu0 0
        %2213 = vmatprep.subr.bf16.mxu0 0
        %2214 = vmatpush1.bf16.msra.mxu0 0
        %2215 = vmatprep.mubr.bf16.mxu0 0
        %2216 = vmatmul.mubr.bf16.gmra.mrb[0].mxu0 %v2085
        %v2217 = vpop.f32.mrb[0].mxu0
        %v2218 = vadd.f32 %v2025, %v2217
        %v2219 = vpop.f32.mrb[0].mxu0
        %v2220 = vadd.f32 %v2027, %v2219
        %v2221 = vpop.f32.mrb[0].mxu0
        %v2222 = vadd.f32 %v2029, %v2221
        %v2223 = vpop.f32.mrb[0].mxu0
        %v2224 = vadd.f32 %v2031, %v2223
        %2225 = vmatprep.mubr.bf16.mxu0 0
        %2226 = vmatmul.mubr.bf16.gmra.mrb[0].mxu0 %v2088
        %v2227 = vpop.f32.mrb[0].mxu0
        %v2228 = vadd.f32 %v2035, %v2227
        %v2229 = vpop.f32.mrb[0].mxu0
        %v2230 = vadd.f32 %v2037, %v2229
        %v2231 = vpop.f32.mrb[0].mxu0
        %v2232 = vadd.f32 %v2039, %v2231
        %v2233 = vpop.f32.mrb[0].mxu0
        %v2234 = vadd.f32 %v2041, %v2233
        %2235 = vmatprep.mubr.bf16.mxu0 0
        %2236 = vmatmul.mubr.bf16.gmra.mrb[0].mxu0 %v2091
        %v2237 = vpop.f32.mrb[0].mxu0
        %v2238 = vadd.f32 %v2045, %v2237
        %v2239 = vpop.f32.mrb[0].mxu0
        %v2240 = vadd.f32 %v2047, %v2239
        %v2241 = vpop.f32.mrb[0].mxu0
        %v2242 = vadd.f32 %v2049, %v2241
        %v2243 = vpop.f32.mrb[0].mxu0
        %v2244 = vadd.f32 %v2051, %v2243
        %2245 = vmatprep.mubr.bf16.mxu0 0
        %2246 = vmatmul.mubr.bf16.gmra.mrb[0].mxu0 %v2094
        %v2247 = vpop.f32.mrb[0].mxu0
        %v2248 = vadd.f32 %v2055, %v2247
        %v2249 = vpop.f32.mrb[0].mxu0
        %v2250 = vadd.f32 %v2057, %v2249
        %v2251 = vpop.f32.mrb[0].mxu0
        %v2252 = vadd.f32 %v2059, %v2251
        %v2253 = vpop.f32.mrb[0].mxu0
        %v2254 = vadd.f32 %v2061, %v2253
        %2255 = vdwg.mxu0
        %v2256 = vld [vmem:[%s5] sm:$0xff]
        %v2257 = vld [vmem:[%s5 + $0x8] sm:$0xff]
        %v2258 = vld [vmem:[%s5 + $0x10] sm:$0xff]
        %v2259 = vld [vmem:[%s5 + $0x18] sm:$0xff]
        %v2260 = vld [vmem:[%s5 + $0x20] sm:$0xff]
        %v2261 = vld [vmem:[%s5 + $0x28] sm:$0xff]
        %v2262 = vld [vmem:[%s5 + $0x30] sm:$0xff]
        %v2263 = vld [vmem:[%s5 + $0x38] sm:$0xff]
        %2265 = vset.pattern.permute.xlu0 0
        %2266 = vperm.xlu0 %2265, %v2256
        %v2267 = vpop.permute.xlu0 %2266
        %2270 = vset.pattern.permute.xlu0 0
        %2271 = vperm.xlu0 %2270, %v2257
        %v2272 = vpop.permute.xlu0 %2271
        %2275 = vset.pattern.permute.xlu0 0
        %2276 = vperm.xlu0 %2275, %v2258
        %v2277 = vpop.permute.xlu0 %2276
        %2280 = vset.pattern.permute.xlu0 0
        %2281 = vperm.xlu0 %2280, %v2259
        %v2282 = vpop.permute.xlu0 %2281
        %2285 = vset.pattern.permute.xlu0 0
        %2286 = vperm.xlu0 %2285, %v2260
        %v2287 = vpop.permute.xlu0 %2286
        %2290 = vset.pattern.permute.xlu0 0
        %2291 = vperm.xlu0 %2290, %v2261
        %v2292 = vpop.permute.xlu0 %2291
        %2295 = vset.pattern.permute.xlu0 0
        %2296 = vperm.xlu0 %2295, %v2262
        %v2297 = vpop.permute.xlu0 %2296
        %2300 = vset.pattern.permute.xlu0 0
        %2301 = vperm.xlu0 %2300, %v2263
        %v2302 = vpop.permute.xlu0 %2301
        %v2304 = vadd.f32 %v2145, %v2267
        %v2305 = vadd.f32 %v2147, %v2267
        %v2306 = vadd.f32 %v2218, %v2267
        %v2307 = vadd.f32 %v2220, %v2267
        %v2308 = vadd.f32 %v2149, %v2272
        %v2309 = vadd.f32 %v2151, %v2272
        %v2310 = vadd.f32 %v2222, %v2272
        %v2311 = vadd.f32 %v2224, %v2272
        %v2312 = vadd.f32 %v2155, %v2277
        %v2313 = vadd.f32 %v2157, %v2277
        %v2314 = vadd.f32 %v2228, %v2277
        %v2315 = vadd.f32 %v2230, %v2277
        %v2316 = vadd.f32 %v2159, %v2282
        %v2317 = vadd.f32 %v2161, %v2282
        %v2318 = vadd.f32 %v2232, %v2282
        %v2319 = vadd.f32 %v2234, %v2282
        %v2320 = vadd.f32 %v2165, %v2287
        %v2321 = vadd.f32 %v2167, %v2287
        %v2322 = vadd.f32 %v2238, %v2287
        %v2323 = vadd.f32 %v2240, %v2287
        %v2324 = vadd.f32 %v2169, %v2292
        %v2325 = vadd.f32 %v2171, %v2292
        %v2326 = vadd.f32 %v2242, %v2292
        %v2327 = vadd.f32 %v2244, %v2292
        %v2328 = vadd.f32 %v2175, %v2297
        %v2329 = vadd.f32 %v2177, %v2297
        %v2330 = vadd.f32 %v2248, %v2297
        %v2331 = vadd.f32 %v2250, %v2297
        %v2332 = vadd.f32 %v2179, %v2302
        %v2333 = vadd.f32 %v2181, %v2302
        %v2334 = vadd.f32 %v2252, %v2302
        %v2335 = vadd.f32 %v2254, %v2302
        %v2336 = vmax.f32 %v2304, 0.0
        %v2337 = vmax.f32 %v2305, 0.0
        %v2338 = vmax.f32 %v2306, 0.0
        %v2339 = vmax.f32 %v2307, 0.0
        %v2340 = vmax.f32 %v2308, 0.0
        %v2341 = vmax.f32 %v2309, 0.0
        %v2342 = vmax.f32 %v2310, 0.0
        %v2343 = vmax.f32 %v2311, 0.0
        %v2344 = vmax.f32 %v2312, 0.0
        %v2345 = vmax.f32 %v2313, 0.0
        %v2346 = vmax.f32 %v2314, 0.0
        %v2347 = vmax.f32 %v2315, 0.0
        %v2348 = vmax.f32 %v2316, 0.0
        %v2349 = vmax.f32 %v2317, 0.0
        %v2350 = vmax.f32 %v2318, 0.0
        %v2351 = vmax.f32 %v2319, 0.0
        %v2352 = vmax.f32 %v2320, 0.0
        %v2353 = vmax.f32 %v2321, 0.0
        %v2354 = vmax.f32 %v2322, 0.0
        %v2355 = vmax.f32 %v2323, 0.0
        %v2356 = vmax.f32 %v2324, 0.0
        %v2357 = vmax.f32 %v2325, 0.0
        %v2358 = vmax.f32 %v2326, 0.0
        %v2359 = vmax.f32 %v2327, 0.0
        %v2360 = vmax.f32 %v2328, 0.0
        %v2361 = vmax.f32 %v2329, 0.0
        %v2362 = vmax.f32 %v2330, 0.0
        %v2363 = vmax.f32 %v2331, 0.0
        %v2364 = vmax.f32 %v2332, 0.0
        %v2365 = vmax.f32 %v2333, 0.0
        %v2366 = vmax.f32 %v2334, 0.0
        %v2367 = vmax.f32 %v2335, 0.0
        %v2368 = vld [vmem:[%s6] sm:$0xf]
        %v2369 = vld [vmem:[%s6 + $0x4] sm:$0xf]
        %v2370 = vld [vmem:[%s6 + $0x8] sm:$0xf]
        %v2371 = vld [vmem:[%s6 + $0xc] sm:$0xf]
        %v2372 = vld [vmem:[%s6 + $0x10] sm:$0xf]
        %v2373 = vld [vmem:[%s6 + $0x14] sm:$0xf]
        %v2374 = vld [vmem:[%s6 + $0x18] sm:$0xf]
        %v2375 = vld [vmem:[%s6 + $0x1c] sm:$0xf]
        %v2376 = vpack.c.bf16 %v2340, %v2336
        %v2377 = vpack.c.bf16 %v2341, %v2337
        %v2378 = vpack.c.bf16 %v2342, %v2338
        %v2379 = vpack.c.bf16 %v2343, %v2339
        %v2380 = vpack.c.bf16 %v2348, %v2344
        %v2381 = vpack.c.bf16 %v2349, %v2345
        %v2382 = vpack.c.bf16 %v2350, %v2346
        %v2383 = vpack.c.bf16 %v2351, %v2347
        %v2384 = vpack.c.bf16 %v2356, %v2352
        %v2385 = vpack.c.bf16 %v2357, %v2353
        %v2386 = vpack.c.bf16 %v2358, %v2354
        %v2387 = vpack.c.bf16 %v2359, %v2355
        %v2388 = vpack.c.bf16 %v2364, %v2360
        %v2389 = vpack.c.bf16 %v2365, %v2361
        %v2390 = vpack.c.bf16 %v2366, %v2362
        %v2391 = vpack.c.bf16 %v2367, %v2363
        %v2392 = vld [vmem:[%s7] sm:$0xff]
        %v2393 = vld [vmem:[%s7 + $0x8] sm:$0xff]
        %v2394 = vld [vmem:[%s7 + $0x10] sm:$0xff]
        %v2395 = vld [vmem:[%s7 + $0x18] sm:$0xff]
        %v2396 = vld [vmem:[%s7 + $0x20] sm:$0xff]
        %v2397 = vld [vmem:[%s7 + $0x28] sm:$0xff]
        %v2398 = vld [vmem:[%s7 + $0x30] sm:$0xff]
        %v2399 = vld [vmem:[%s7 + $0x38] sm:$0xff]
        %2401 = vset.pattern.permute.xlu0 0
        %2402 = vperm.xlu0 %2401, %v2392
        %v2403 = vpop.permute.xlu0 %2402
        %2406 = vset.pattern.permute.xlu0 0
        %2407 = vperm.xlu0 %2406, %v2393
        %v2408 = vpop.permute.xlu0 %2407
        %2411 = vset.pattern.permute.xlu0 0
        %2412 = vperm.xlu0 %2411, %v2394
        %v2413 = vpop.permute.xlu0 %2412
        %2416 = vset.pattern.permute.xlu0 0
        %2417 = vperm.xlu0 %2416, %v2395
        %v2418 = vpop.permute.xlu0 %2417
        %2421 = vset.pattern.permute.xlu0 0
        %2422 = vperm.xlu0 %2421, %v2396
        %v2423 = vpop.permute.xlu0 %2422
        %2426 = vset.pattern.permute.xlu0 0
        %2427 = vperm.xlu0 %2426, %v2397
        %v2428 = vpop.permute.xlu0 %2427
        %2431 = vset.pattern.permute.xlu0 0
        %2432 = vperm.xlu0 %2431, %v2398
        %v2433 = vpop.permute.xlu0 %2432
        %2436 = vset.pattern.permute.xlu0 0
        %2437 = vperm.xlu0 %2436, %v2399
        %v2438 = vpop.permute.xlu0 %2437
        %v2448 = vunpack.c.l.b16 %v2368
        %v2449 = vunpack.c.l.b16 %v2369
        %v2450 = vunpack.c.l.b16 %v2370
        %v2451 = vunpack.c.l.b16 %v2371
        %v2452 = vunpack.c.l.b16 %v2372
        %v2453 = vunpack.c.l.b16 %v2373
        %v2454 = vunpack.c.l.b16 %v2374
        %v2455 = vunpack.c.l.b16 %v2375
        %v2456 = vpack.c.b16 %v2449, %v2448
        %v2457 = vpack.c.b16 %v2451, %v2450
        %v2458 = vpack.c.b16 %v2453, %v2452
        %v2459 = vpack.c.b16 %v2455, %v2454
        %vm2460 = vcmask 523264
        %v2462 = vsel %vm2460, %v2456, 0
        %v2465 = vsel %vm2460, %v2457, 0
        %v2468 = vsel %vm2460, %v2458, 0
        %v2471 = vsel %vm2460, %v2459, 0
        %2473 = vmatprep.subr.bf16.mxu0 %v2377
        %2474 = vmatpush1.bf16.msra.mxu0 %v2376
        %2475 = vmatprep.subr.bf16.mxu0 %v2381
        %2476 = vmatpush1.bf16.msra.mxu0 %v2380
        %2477 = vmatprep.subr.bf16.mxu0 %v2385
        %2478 = vmatpush1.bf16.msra.mxu0 %v2384
        %2479 = vmatprep.subr.bf16.mxu0 %v2389
        %2480 = vmatpush1.bf16.msra.mxu0 %v2388
        %2481 = vmatprep.subr.bf16.mxu0 0
        %2482 = vmatpush1.bf16.msra.mxu0 0
        %2483 = vmatprep.subr.bf16.mxu0 0
        %2484 = vmatpush1.bf16.msra.mxu0 0
        %2485 = vmatprep.subr.bf16.mxu0 0
        %2486 = vmatpush1.bf16.msra.mxu0 0
        %2487 = vmatprep.subr.bf16.mxu0 0
        %2488 = vmatpush1.bf16.msra.mxu0 0
        %2489 = vmatprep.subr.bf16.mxu0 0
        %2490 = vmatpush1.bf16.msra.mxu0 0
        %2491 = vmatprep.subr.bf16.mxu0 0
        %2492 = vmatpush1.bf16.msra.mxu0 0
        %2493 = vmatprep.subr.bf16.mxu0 0
        %2494 = vmatpush1.bf16.msra.mxu0 0
        %2495 = vmatprep.subr.bf16.mxu0 0
        %2496 = vmatpush1.bf16.msra.mxu0 0
        %2497 = vmatprep.subr.bf16.mxu0 0
        %2498 = vmatpush1.bf16.msra.mxu0 0
        %2499 = vmatprep.subr.bf16.mxu0 0
        %2500 = vmatpush1.bf16.msra.mxu0 0
        %2501 = vmatprep.subr.bf16.mxu0 0
        %2502 = vmatpush1.bf16.msra.mxu0 0
        %2503 = vmatprep.subr.bf16.mxu0 0
        %2504 = vmatpush1.bf16.msra.mxu0 0
        %2505 = vmatprep.mubr.bf16.mxu0 0
        %2506 = vmatmul.mubr.bf16.gmra.mrb[0].mxu0 %v2462
        %v2507 = vpop.f32.mrb[0].mxu0
        %v2508 = vadd.f32 %v2403, %v2507
        %v2509 = vpop.f32.mrb[0].mxu0
        %v2510 = vadd.f32 %v2403, %v2509
        %v2511 = vpop.f32.mrb[0].mxu0
        %v2512 = vadd.f32 %v2408, %v2511
        %v2513 = vpop.f32.mrb[0].mxu0
        %v2514 = vadd.f32 %v2408, %v2513
        %2515 = vmatprep.mubr.bf16.mxu0 0
        %2516 = vmatmul.mubr.bf16.gmra.mrb[0].mxu0 %v2465
        %v2517 = vpop.f32.mrb[0].mxu0
        %v2518 = vadd.f32 %v2413, %v2517
        %v2519 = vpop.f32.mrb[0].mxu0
        %v2520 = vadd.f32 %v2413, %v2519
        %v2521 = vpop.f32.mrb[0].mxu0
        %v2522 = vadd.f32 %v2418, %v2521
        %v2523 = vpop.f32.mrb[0].mxu0
        %v2524 = vadd.f32 %v2418, %v2523
        %2525 = vmatprep.mubr.bf16.mxu0 0
        %2526 = vmatmul.mubr.bf16.gmra.mrb[0].mxu0 %v2468
        %v2527 = vpop.f32.mrb[0].mxu0
        %v2528 = vadd.f32 %v2423, %v2527
        %v2529 = vpop.f32.mrb[0].mxu0
        %v2530 = vadd.f32 %v2423, %v2529
        %v2531 = vpop.f32.mrb[0].mxu0
        %v2532 = vadd.f32 %v2428, %v2531
        %v2533 = vpop.f32.mrb[0].mxu0
        %v2534 = vadd.f32 %v2428, %v2533
        %2535 = vmatprep.mubr.bf16.mxu0 0
        %2536 = vmatmul.mubr.bf16.gmra.mrb[0].mxu0 %v2471
        %v2537 = vpop.f32.mrb[0].mxu0
        %v2538 = vadd.f32 %v2433, %v2537
        %v2539 = vpop.f32.mrb[0].mxu0
        %v2540 = vadd.f32 %v2433, %v2539
        %v2541 = vpop.f32.mrb[0].mxu0
        %v2542 = vadd.f32 %v2438, %v2541
        %v2543 = vpop.f32.mrb[0].mxu0
        %v2544 = vadd.f32 %v2438, %v2543
        %2545 = vdwg.mxu0
        %2546 = vmatprep.subr.bf16.mxu0 %v2379
        %2547 = vmatpush1.bf16.msra.mxu0 %v2378
        %2548 = vmatprep.subr.bf16.mxu0 %v2383
        %2549 = vmatpush1.bf16.msra.mxu0 %v2382
        %2550 = vmatprep.subr.bf16.mxu0 %v2387
        %2551 = vmatpush1.bf16.msra.mxu0 %v2386
        %2552 = vmatprep.subr.bf16.mxu0 %v2391
        %2553 = vmatpush1.bf16.msra.mxu0 %v2390
        %2554 = vmatprep.subr.bf16.mxu0 0
        %2555 = vmatpush1.bf16.msra.mxu0 0
        %2556 = vmatprep.subr.bf16.mxu0 0
        %2557 = vmatpush1.bf16.msra.mxu0 0
        %2558 = vmatprep.subr.bf16.mxu0 0
        %2559 = vmatpush1.bf16.msra.mxu0 0
        %2560 = vmatprep.subr.bf16.mxu0 0
        %2561 = vmatpush1.bf16.msra.mxu0 0
        %2562 = vmatprep.subr.bf16.mxu0 0
        %2563 = vmatpush1.bf16.msra.mxu0 0
        %2564 = vmatprep.subr.bf16.mxu0 0
        %2565 = vmatpush1.bf16.msra.mxu0 0
        %2566 = vmatprep.subr.bf16.mxu0 0
        %2567 = vmatpush1.bf16.msra.mxu0 0
        %2568 = vmatprep.subr.bf16.mxu0 0
        %2569 = vmatpush1.bf16.msra.mxu0 0
        %2570 = vmatprep.subr.bf16.mxu0 0
        %2571 = vmatpush1.bf16.msra.mxu0 0
        %2572 = vmatprep.subr.bf16.mxu0 0
        %2573 = vmatpush1.bf16.msra.mxu0 0
        %2574 = vmatprep.subr.bf16.mxu0 0
        %2575 = vmatpush1.bf16.msra.mxu0 0
        %2576 = vmatprep.subr.bf16.mxu0 0
        %2577 = vmatpush1.bf16.msra.mxu0 0
        %2578 = vmatprep.mubr.bf16.mxu0 0
        %2579 = vmatmul.mubr.bf16.gmra.mrb[0].mxu0 %v2462
        %v2580 = vpop.f32.mrb[0].mxu0
        %v2581 = vadd.f32 %v2403, %v2580
        %v2582 = vpop.f32.mrb[0].mxu0
        %v2583 = vadd.f32 %v2403, %v2582
        %v2584 = vpop.f32.mrb[0].mxu0
        %v2585 = vadd.f32 %v2408, %v2584
        %v2586 = vpop.f32.mrb[0].mxu0
        %v2587 = vadd.f32 %v2408, %v2586
        %2588 = vmatprep.mubr.bf16.mxu0 0
        %2589 = vmatmul.mubr.bf16.gmra.mrb[0].mxu0 %v2465
        %v2590 = vpop.f32.mrb[0].mxu0
        %v2591 = vadd.f32 %v2413, %v2590
        %v2592 = vpop.f32.mrb[0].mxu0
        %v2593 = vadd.f32 %v2413, %v2592
        %v2594 = vpop.f32.mrb[0].mxu0
        %v2595 = vadd.f32 %v2418, %v2594
        %v2596 = vpop.f32.mrb[0].mxu0
        %v2597 = vadd.f32 %v2418, %v2596
        %2598 = vmatprep.mubr.bf16.mxu0 0
        %2599 = vmatmul.mubr.bf16.gmra.mrb[0].mxu0 %v2468
        %v2600 = vpop.f32.mrb[0].mxu0
        %v2601 = vadd.f32 %v2423, %v2600
        %v2602 = vpop.f32.mrb[0].mxu0
        %v2603 = vadd.f32 %v2423, %v2602
        %v2604 = vpop.f32.mrb[0].mxu0
        %v2605 = vadd.f32 %v2428, %v2604
        %v2606 = vpop.f32.mrb[0].mxu0
        %v2607 = vadd.f32 %v2428, %v2606
        %2608 = vmatprep.mubr.bf16.mxu0 0
        %2609 = vmatmul.mubr.bf16.gmra.mrb[0].mxu0 %v2471
        %v2610 = vpop.f32.mrb[0].mxu0
        %v2611 = vadd.f32 %v2433, %v2610
        %v2612 = vpop.f32.mrb[0].mxu0
        %v2613 = vadd.f32 %v2433, %v2612
        %v2614 = vpop.f32.mrb[0].mxu0
        %v2615 = vadd.f32 %v2438, %v2614
        %v2616 = vpop.f32.mrb[0].mxu0
        %v2617 = vadd.f32 %v2438, %v2616
        %2618 = vdwg.mxu0
        %v2619 = vmax.f32 %v2508, 0.0
        %v2620 = vmax.f32 %v2510, 0.0
        %v2621 = vmax.f32 %v2581, 0.0
        %v2622 = vmax.f32 %v2583, 0.0
        %v2623 = vmax.f32 %v2512, 0.0
        %v2624 = vmax.f32 %v2514, 0.0
        %v2625 = vmax.f32 %v2585, 0.0
        %v2626 = vmax.f32 %v2587, 0.0
        %v2627 = vmax.f32 %v2518, 0.0
        %v2628 = vmax.f32 %v2520, 0.0
        %v2629 = vmax.f32 %v2591, 0.0
        %v2630 = vmax.f32 %v2593, 0.0
        %v2631 = vmax.f32 %v2522, 0.0
        %v2632 = vmax.f32 %v2524, 0.0
        %v2633 = vmax.f32 %v2595, 0.0
        %v2634 = vmax.f32 %v2597, 0.0
        %v2635 = vmax.f32 %v2528, 0.0
        %v2636 = vmax.f32 %v2530, 0.0
        %v2637 = vmax.f32 %v2601, 0.0
        %v2638 = vmax.f32 %v2603, 0.0
        %v2639 = vmax.f32 %v2532, 0.0
        %v2640 = vmax.f32 %v2534, 0.0
        %v2641 = vmax.f32 %v2605, 0.0
        %v2642 = vmax.f32 %v2607, 0.0
        %v2643 = vmax.f32 %v2538, 0.0
        %v2644 = vmax.f32 %v2540, 0.0
        %v2645 = vmax.f32 %v2611, 0.0
        %v2646 = vmax.f32 %v2613, 0.0
        %v2647 = vmax.f32 %v2542, 0.0
        %v2648 = vmax.f32 %v2544, 0.0
        %v2649 = vmax.f32 %v2615, 0.0
        %v2650 = vmax.f32 %v2617, 0.0
        %v2651 = vld [vmem:[%s8] sm:$0xf]
        %v2652 = vld [vmem:[%s8 + $0x4] sm:$0x1]
        %v2653 = vpack.c.bf16 %v2623, %v2619
        %v2654 = vpack.c.bf16 %v2624, %v2620
        %v2655 = vpack.c.bf16 %v2625, %v2621
        %v2656 = vpack.c.bf16 %v2626, %v2622
        %v2657 = vpack.c.bf16 %v2631, %v2627
        %v2658 = vpack.c.bf16 %v2632, %v2628
        %v2659 = vpack.c.bf16 %v2633, %v2629
        %v2660 = vpack.c.bf16 %v2634, %v2630
        %v2661 = vpack.c.bf16 %v2639, %v2635
        %v2662 = vpack.c.bf16 %v2640, %v2636
        %v2663 = vpack.c.bf16 %v2641, %v2637
        %v2664 = vpack.c.bf16 %v2642, %v2638
        %v2665 = vpack.c.bf16 %v2647, %v2643
        %v2666 = vpack.c.bf16 %v2648, %v2644
        %v2667 = vpack.c.bf16 %v2649, %v2645
        %v2668 = vpack.c.bf16 %v2650, %v2646
        %v2669 = vld [vmem:[%s9] sm:$0xff]
        %v2670 = vld [vmem:[%s9 + $0x8] sm:$0x3]
        %2672 = vset.pattern.permute.xlu0 0
        %2673 = vperm.xlu0 %2672, %v2669
        %v2674 = vpop.permute.xlu0 %2673
        %2677 = vset.pattern.permute.xlu0 0
        %2678 = vperm.xlu0 %2677, %v2670
        %v2679 = vpop.permute.xlu0 %2678
        %v2683 = vunpack.c.l.b16 %v2651
        %v2684 = vunpack.c.l.b16 %v2652
        %v2685 = vpack.c.b16 %v2684, %v2683
        %v2687 = vsel %vm2460, %v2685, 0
        %2689 = vmatprep.subr.bf16.mxu0 %v2654
        %2690 = vmatpush1.bf16.msra.mxu0 %v2653
        %2691 = vmatprep.subr.bf16.mxu0 %v2658
        %2692 = vmatpush1.bf16.msra.mxu0 %v2657
        %2693 = vmatprep.subr.bf16.mxu0 %v2662
        %2694 = vmatpush1.bf16.msra.mxu0 %v2661
        %2695 = vmatprep.subr.bf16.mxu0 %v2666
        %2696 = vmatpush1.bf16.msra.mxu0 %v2665
        %2697 = vmatprep.subr.bf16.mxu0 0
        %2698 = vmatpush1.bf16.msra.mxu0 0
        %2699 = vmatprep.subr.bf16.mxu0 0
        %2700 = vmatpush1.bf16.msra.mxu0 0
        %2701 = vmatprep.subr.bf16.mxu0 0
        %2702 = vmatpush1.bf16.msra.mxu0 0
        %2703 = vmatprep.subr.bf16.mxu0 0
        %2704 = vmatpush1.bf16.msra.mxu0 0
        %2705 = vmatprep.subr.bf16.mxu0 0
        %2706 = vmatpush1.bf16.msra.mxu0 0
        %2707 = vmatprep.subr.bf16.mxu0 0
        %2708 = vmatpush1.bf16.msra.mxu0 0
        %2709 = vmatprep.subr.bf16.mxu0 0
        %2710 = vmatpush1.bf16.msra.mxu0 0
        %2711 = vmatprep.subr.bf16.mxu0 0
        %2712 = vmatpush1.bf16.msra.mxu0 0
        %2713 = vmatprep.subr.bf16.mxu0 0
        %2714 = vmatpush1.bf16.msra.mxu0 0
        %2715 = vmatprep.subr.bf16.mxu0 0
        %2716 = vmatpush1.bf16.msra.mxu0 0
        %2717 = vmatprep.subr.bf16.mxu0 0
        %2718 = vmatpush1.bf16.msra.mxu0 0
        %2719 = vmatprep.subr.bf16.mxu0 0
        %2720 = vmatpush1.bf16.msra.mxu0 0
        %2721 = vmatprep.mubr.bf16.mxu0 0
        %2722 = vmatmul.mubr.bf16.gmra.mrb[0].mxu0 %v2687
        %v2723 = vpop.f32.mrb[0].mxu0
        %v2724 = vadd.f32 %v2674, %v2723
        %v2725 = vpop.f32.mrb[0].mxu0
        %v2726 = vadd.f32 %v2674, %v2725
        %v2727 = vpop.f32.mrb[0].mxu0
        %v2728 = vadd.f32 %v2679, %v2727
        %v2729 = vpop.f32.mrb[0].mxu0
        %v2730 = vadd.f32 %v2679, %v2729
        %2731 = vdwg.mxu0
        %2732 = vmatprep.subr.bf16.mxu0 %v2656
        %2733 = vmatpush1.bf16.msra.mxu0 %v2655
        %2734 = vmatprep.subr.bf16.mxu0 %v2660
        %2735 = vmatpush1.bf16.msra.mxu0 %v2659
        %2736 = vmatprep.subr.bf16.mxu0 %v2664
        %2737 = vmatpush1.bf16.msra.mxu0 %v2663
        %2738 = vmatprep.subr.bf16.mxu0 %v2668
        %2739 = vmatpush1.bf16.msra.mxu0 %v2667
        %2740 = vmatprep.subr.bf16.mxu0 0
        %2741 = vmatpush1.bf16.msra.mxu0 0
        %2742 = vmatprep.subr.bf16.mxu0 0
        %2743 = vmatpush1.bf16.msra.mxu0 0
        %2744 = vmatprep.subr.bf16.mxu0 0
        %2745 = vmatpush1.bf16.msra.mxu0 0
        %2746 = vmatprep.subr.bf16.mxu0 0
        %2747 = vmatpush1.bf16.msra.mxu0 0
        %2748 = vmatprep.subr.bf16.mxu0 0
        %2749 = vmatpush1.bf16.msra.mxu0 0
        %2750 = vmatprep.subr.bf16.mxu0 0
        %2751 = vmatpush1.bf16.msra.mxu0 0
        %2752 = vmatprep.subr.bf16.mxu0 0
        %2753 = vmatpush1.bf16.msra.mxu0 0
        %2754 = vmatprep.subr.bf16.mxu0 0
        %2755 = vmatpush1.bf16.msra.mxu0 0
        %2756 = vmatprep.subr.bf16.mxu0 0
        %2757 = vmatpush1.bf16.msra.mxu0 0
        %2758 = vmatprep.subr.bf16.mxu0 0
        %2759 = vmatpush1.bf16.msra.mxu0 0
        %2760 = vmatprep.subr.bf16.mxu0 0
        %2761 = vmatpush1.bf16.msra.mxu0 0
        %2762 = vmatprep.subr.bf16.mxu0 0
        %2763 = vmatpush1.bf16.msra.mxu0 0
        %2764 = vmatprep.mubr.bf16.mxu0 0
        %2765 = vmatmul.mubr.bf16.gmra.mrb[0].mxu0 %v2687
        %v2766 = vpop.f32.mrb[0].mxu0
        %v2767 = vadd.f32 %v2674, %v2766
        %v2768 = vpop.f32.mrb[0].mxu0
        %v2769 = vadd.f32 %v2674, %v2768
        %v2770 = vpop.f32.mrb[0].mxu0
        %v2771 = vadd.f32 %v2679, %v2770
        %v2772 = vpop.f32.mrb[0].mxu0
        %v2773 = vadd.f32 %v2679, %v2772
        %2774 = vdwg.mxu0
        %v2775 = vadd.f32 %v433, %v2724
        %v2776 = vadd.f32 %v434, %v2726
        %v2777 = vadd.f32 %v435, %v2767
        %v2778 = vadd.f32 %v436, %v2769
        %v2779 = vadd.f32 %v437, %v2728
        %v2780 = vadd.f32 %v438, %v2730
        %v2781 = vadd.f32 %v439, %v2771
        %v2782 = vadd.f32 %v440, %v2773
        %2783 = vst [vmem:[%s422] sm:$0xff] %v2775
        %2784 = vst [vmem:[%s422 + $0x8] sm:$0xff] %v2776
        %2785 = vst [vmem:[%s422 + $0x10] sm:$0xff] %v2777
        %2786 = vst [vmem:[%s422 + $0x18] sm:$0xff] %v2778
        %2787 = vst [vmem:[%s422 + $0x20] sm:$0x3] %v2779
        %2788 = vst [vmem:[%s422 + $0x28] sm:$0x3] %v2780
        %2789 = vst [vmem:[%s422 + $0x30] sm:$0x3] %v2781
        %2790 = vst [vmem:[%s422 + $0x38] sm:$0x3] %v2782
        %v2791 = vmul.f32 %v2724, %v2724
        %v2792 = vmul.f32 %v2726, %v2726
        %v2793 = vmul.f32 %v2767, %v2767
        %v2794 = vmul.f32 %v2769, %v2769
        %v2795 = vsel %vm501, %v2791, 0.0
        %v2796 = vrot.slane %v2795, 4
        %v2797 = vadd.f32 %v2795, %v2796
        %v2798 = vrot.slane %v2797, 2
        %v2799 = vadd.f32 %v2797, %v2798
        %v2800 = vrot.slane %v2799, 1
        %v2801 = vadd.f32 %v2799, %v2800
        %v2802 = vsel %vm501, %v2792, 0.0
        %v2803 = vrot.slane %v2802, 4
        %v2804 = vadd.f32 %v2802, %v2803
        %v2805 = vrot.slane %v2804, 2
        %v2806 = vadd.f32 %v2804, %v2805
        %v2807 = vrot.slane %v2806, 1
        %v2808 = vadd.f32 %v2806, %v2807
        %v2809 = vsel %vm501, %v2793, 0.0
        %v2810 = vrot.slane %v2809, 4
        %v2811 = vadd.f32 %v2809, %v2810
        %v2812 = vrot.slane %v2811, 2
        %v2813 = vadd.f32 %v2811, %v2812
        %v2814 = vrot.slane %v2813, 1
        %v2815 = vadd.f32 %v2813, %v2814
        %v2816 = vsel %vm501, %v2794, 0.0
        %v2817 = vrot.slane %v2816, 4
        %v2818 = vadd.f32 %v2816, %v2817
        %v2819 = vrot.slane %v2818, 2
        %v2820 = vadd.f32 %v2818, %v2819
        %v2821 = vrot.slane %v2820, 1
        %v2822 = vadd.f32 %v2820, %v2821
        %v2823 = vrsqrt.pop %v2801
        %v2824 = vmul.f32 %v2801, %v2823
        %vm2825 = vcmp.eq.f32.partialorder %v2801, inf
        %v2826 = vsel %vm2825, %v2801, %v2824
        %vm2827 = vcmp.eq.f32.partialorder %v2801, 0.0
        %v2828 = vand.u32 %v2801, 2147483648
        %v2829 = vsel %vm2827, %v2828, %v2826
        %v2830 = vrsqrt.pop %v2808
        %v2831 = vmul.f32 %v2808, %v2830
        %vm2832 = vcmp.eq.f32.partialorder %v2808, inf
        %v2833 = vsel %vm2832, %v2808, %v2831
        %vm2834 = vcmp.eq.f32.partialorder %v2808, 0.0
        %v2835 = vand.u32 %v2808, 2147483648
        %v2836 = vsel %vm2834, %v2835, %v2833
        %v2837 = vrsqrt.pop %v2815
        %v2838 = vmul.f32 %v2815, %v2837
        %vm2839 = vcmp.eq.f32.partialorder %v2815, inf
        %v2840 = vsel %vm2839, %v2815, %v2838
        %vm2841 = vcmp.eq.f32.partialorder %v2815, 0.0
        %v2842 = vand.u32 %v2815, 2147483648
        %v2843 = vsel %vm2841, %v2842, %v2840
        %v2844 = vrsqrt.pop %v2822
        %v2845 = vmul.f32 %v2822, %v2844
        %vm2846 = vcmp.eq.f32.partialorder %v2822, inf
        %v2847 = vsel %vm2846, %v2822, %v2845
        %vm2848 = vcmp.eq.f32.partialorder %v2822, 0.0
        %v2849 = vand.u32 %v2822, 2147483648
        %v2850 = vsel %vm2848, %v2849, %v2847
        %v2851 = vadd.f32 %v2829, %v2836
        %v2852 = vadd.f32 %v2851, %v2843
        %v2853 = vadd.f32 %v2852, %v2850
        %2854 = vadd.xlane.f32.xlu0 %v2853
        %v2855 = vpop.xlane.xlu0 %2854
        %v2856 = vand.u32 2147483647, %v2724
        %v2857 = vand.u32 2147483647, %v2726
        %v2858 = vand.u32 2147483647, %v2767
        %v2859 = vand.u32 2147483647, %v2769
        %v2864 = vrot.slane %v2856, 3
        %v2865 = vrot.slane %v2857, 3
        %v2866 = vrot.slane %v2858, 3
        %v2867 = vrot.slane %v2859, 3
        %v2872 = vsel %vm501, %v2864, 0.0
        %v2873 = vsel %vm501, %v2865, 0.0
        %v2874 = vadd.f32 %v2872, %v2873
        %v2875 = vsel %vm501, %v2866, 0.0
        %v2876 = vadd.f32 %v2874, %v2875
        %v2877 = vsel %vm501, %v2867, 0.0
        %v2878 = vadd.f32 %v2876, %v2877
        %2879 = vadd.xlane.f32.xlu0 %v2878
        %v2880 = vpop.xlane.xlu0 %2879
        %v2881 = vrot.slane %v2880, 4
        %v2882 = vadd.f32 %v2880, %v2881
        %v2883 = vrot.slane %v2882, 2
        %v2884 = vadd.f32 %v2882, %v2883
        %v2885 = vrot.slane %v2884, 1
        %v2886 = vadd.f32 %v2884, %v2885
        %s2887 = vtos %v2886
        %v2888 = vand.u32 2147483647, %v2728
        %v2889 = vand.u32 2147483647, %v2730
        %v2890 = vand.u32 2147483647, %v2771
        %v2891 = vand.u32 2147483647, %v2773
        %v2896 = vrot.slane %v2856, 6
        %v2897 = vrot.slane %v2888, 6
        %v2898 = vsel %vm526, %v2896, %v2897
        %v2899 = vrot.slane %v2857, 6
        %v2900 = vrot.slane %v2889, 6
        %v2901 = vsel %vm526, %v2899, %v2900
        %v2902 = vrot.slane %v2858, 6
        %v2903 = vrot.slane %v2890, 6
        %v2904 = vsel %vm526, %v2902, %v2903
        %v2905 = vrot.slane %v2859, 6
        %v2906 = vrot.slane %v2891, 6
        %v2907 = vsel %vm526, %v2905, %v2906
        %v2912 = vsel %vm516, %v2898, 0.0
        %v2913 = vsel %vm516, %v2901, 0.0
        %v2914 = vadd.f32 %v2912, %v2913
        %v2915 = vsel %vm516, %v2904, 0.0
        %v2916 = vadd.f32 %v2914, %v2915
        %v2917 = vsel %vm516, %v2907, 0.0
        %v2918 = vadd.f32 %v2916, %v2917
        %2919 = vadd.xlane.f32.xlu0 %v2918
        %v2920 = vpop.xlane.xlu0 %2919
        %v2921 = vrot.slane %v2920, 4
        %v2922 = vadd.f32 %v2920, %v2921
        %v2923 = vrot.slane %v2922, 2
        %v2924 = vadd.f32 %v2922, %v2923
        %v2925 = vrot.slane %v2924, 1
        %v2926 = vadd.f32 %v2924, %v2925
        %s2927 = vtos %v2926
        %v2928 = vlaneseq
        %v2929 = vshrl.u32 %v2928, 7
        %v2930 = vlaneseq
        %v2931 = vand.u32 %v2930, 127
        %vm2932 = vcmp.eq.s32.totalorder %v2929, 0
        %vm2933 = vcmp.eq.s32.totalorder %v2931, 0
        %vm2934 = vmand %vm2932, %vm2933
        %vm2935 = vcmp.eq.s32.totalorder %v2931, 1
        %vm2936 = vmand %vm2932, %vm2935
        %vm2937 = vcmp.eq.s32.totalorder %v2931, 2
        %vm2938 = vmand %vm2932, %vm2937
        %v2939 = vstv %s2927
        %v2940 = vsel %vm2938, %v2939, 0.0
        %v2941 = vstv %s2887
        %v2942 = vsel %vm2936, %v2941, %v2940
        %v2943 = vsel %vm2934, %v2855, %v2942
        %2944 = vst [vmem:[%s429] sm:$0xff] %v2943
        %s2945 = sand.u32 %s252, 1
        %s2946 = scalar_lea.sflag [#allocation4], %s2945
        %s2947 = sand.u32 %s252, 1
        %s2948 = smul.addr %s2947, 64
        %s2949 = scalar_lea.vmem [#allocation3], %s2948
        %s2950 = sand.u32 %s278, 1
        %s2951 = scalar_lea.sflag [#allocation6], %s2950
        %s2952 = sand.u32 %s278, 1
        %s2953 = smul.addr %s2952, 8
        %s2954 = scalar_lea.vmem [#allocation5], %s2953
        // Predicated region
        $region84: #{tpu_custom_call.1} parent=78 // pred_check
          %p2955 = pneg %p262
        $region85: #{tpu_custom_call.1} parent=78 // pred_check_branch
          %2957 = sbr.rel (%p2955) target = $region87
        $region86: #{tpu_custom_call.1} parent=78 // pred_region
          %s2958 = smul.u32 4, %s29
          %s2960 = ssub.s32 1024, 1024
          %2961 = vsyncadd %s2946, %s2960
          %s2962 = smul.addr %s2958, 128
          %s2963 = scalar_lea.hbm %s10, %s2962
          %s2964 = sshll.u32 %s2949, 4
          %s2965 = int_to_ptr.vmem [resolvable:$true] %s2964
          %2970 = dma.vmem_to_hbm [thread:$0]  %s2965, 1024, %s2963, %s2946, 512, 1024, 32
        $region87: #{tpu_custom_call.1} parent=78 // pred_fallthru
          _
        // Predicated region
        $region88: #{tpu_custom_call.1} parent=78 // pred_check
          %p2971 = pneg %p288
        $region89: #{tpu_custom_call.1} parent=78 // pred_check_branch
          %2973 = sbr.rel (%p2971) target = $region91
        $region90: #{tpu_custom_call.1} parent=78 // pred_region
          %s2975 = ssub.s32 128, 128
          %2976 = vsyncadd %s2951, %s2975
          %s2977 = smul.addr %s29, 128
          %s2978 = scalar_lea.hbm %s11, %s2977
          %s2980 = sshll.u32 %s2954, 4
          %s2981 = int_to_ptr.vmem [resolvable:$true] %s2980
          %2983 = dma.vmem_to_hbm [thread:$0]  %s2981, 128, %s2978, %s2951
        $region91: #{tpu_custom_call.1} parent=78 // pred_fallthru
          _
      $region79: #{tpu_custom_call.1} parent=5 // pred_fallthru
        _
      %p2984 = scmp.le.s32.totalorder 2, %s24
      // Predicated region
      $region92: #{tpu_custom_call.1} parent=5 // pred_check
        %p2985 = pneg %p2984
      $region93: #{tpu_custom_call.1} parent=5 // pred_check_branch
        %2987 = sbr.rel (%p2985) target = $region95
      $region94: #{tpu_custom_call.1} parent=5 // pred_region
        %s2988 = ssub.s32 %s24, 2
        // Predicated region
        $region96: #{tpu_custom_call.1} parent=94 // pred_check
          %p2989 = pneg %p268
        $region97: #{tpu_custom_call.1} parent=94 // pred_check_branch
          %2991 = sbr.rel (%p2989) target = $region99
        $region98: #{tpu_custom_call.1} parent=94 // pred_region
          %s2992 = sand.u32 %s253, 1
          %s2993 = scalar_lea.sflag [#allocation4], %s2992
          %s2994 = sand.u32 %s253, 1
          %s2995 = smul.addr %s2994, 64
          %s2996 = scalar_lea.vmem [#allocation3], %s2995
          %2997 = dma.done %s2993, 1024
        $region99: #{tpu_custom_call.1} parent=94 // pred_fallthru
          _
        // Predicated region
        $region100: #{tpu_custom_call.1} parent=94 // pred_check
          %p2998 = pneg %p294
        $region101: #{tpu_custom_call.1} parent=94 // pred_check_branch
          %3000 = sbr.rel (%p2998) target = $region103
        $region102: #{tpu_custom_call.1} parent=94 // pred_region
          %s3001 = sand.u32 %s279, 1
          %s3002 = scalar_lea.sflag [#allocation6], %s3001
          %s3003 = sand.u32 %s279, 1
          %s3004 = smul.addr %s3003, 8
          %s3005 = scalar_lea.vmem [#allocation5], %s3004
          %3006 = dma.done %s3002, 128
        $region103: #{tpu_custom_call.1} parent=94 // pred_fallthru
          _
      $region95: #{tpu_custom_call.1} parent=5 // pred_fallthru
        _
    $region6: #{tpu_custom_call.1} parent=1 // loop_footer
      %s28 = sadd.s32 1, %s24
    $region7: #{tpu_custom_call.1} parent=1 // loop_footer_branch
      %23 = sbr.rel target = $region3
    $region8: #{tpu_custom_call.1} parent=1 // loop_exit
      _
    %3007 = vsyncpa [#allocation4], 1
    %s3008 = scalar_lea.sflag [#allocation4], 1
    %3009 = vsyncpa %s3008, 1
    %3010 = vsyncpa [#allocation6], 1
    %s3011 = scalar_lea.sflag [#allocation6], 1
    %3012 = vsyncpa %s3011, 1

</llo_original>
